<compile_context>
chip_gen: v5e
topology: v5e:2x2
jax: 0.10.0
libtpu: 0.0.40
codegen_flags: <defaults>
</compile_context>

<pallas_src>
import functools

import jax
import jax.numpy as jnp
from jax.experimental import pallas as pl
from jax.experimental.pallas import tpu as pltpu


# Tile preferences.  bf16 operands + f32 accumulator at (512, 512, 512) stay
# well under the explicit 32 MiB scoped-VMEM budget even double-buffered.
_TM_PREF = 512
_TN_PREF = 512
_TK_PREF = 512
_VMEM_LIMIT = 32 * 1024 * 1024


# ------------------------------ small helpers -------------------------------

def _round_up(x, m):
    return (x + m - 1) // m * m


def _choose_tile(dim, pref, align):
    """Return (tile, padded_dim) with tile | padded_dim and tile % align == 0."""
    padded = _round_up(dim, align)
    if padded <= pref:
        return padded, padded
    return pref, _round_up(padded, pref)


def _pad2(a, rows, cols):
    r, c = a.shape
    if r == rows and c == cols:
        return a
    return jnp.pad(a, ((0, rows - r), (0, cols - c)))


def _w1x1(w):
    """(O, C, 1, 1) PyTorch conv weight -> (C, O) matmul weight."""
    return w.reshape(w.shape[0], w.shape[1]).T


# --------------------------- tiled matmul kernel -----------------------------

def _mm_kernel(*refs, relu, has_res):
    if has_res:
        x_ref, w_ref, b_ref, r_ref, o_ref, acc_ref = refs
    else:
        x_ref, w_ref, b_ref, o_ref, acc_ref = refs
        r_ref = None

    @pl.when(pl.program_id(2) == 0)
    def _():
        acc_ref[...] = jnp.zeros_like(acc_ref)

    acc_ref[...] += jnp.dot(x_ref[...], w_ref[...],
                            preferred_element_type=jnp.float32)

    @pl.when(pl.program_id(2) == pl.num_programs(2) - 1)
    def _():
        out = acc_ref[...] + b_ref[...]
        if r_ref is not None:
            out = out + r_ref[...].astype(jnp.float32)
        if relu:
            out = jnp.maximum(out, 0.0)
        o_ref[...] = out.astype(o_ref.dtype)


def pallas_matmul_bias(x, w, b, residual=None, relu=False,
                       out_dtype=jnp.float32):
    """out = relu?(x @ w + b (+ residual)).

    x:(M,K) w:(K,N) b:(N,) residual:(M,N).  x/w/residual travel in bf16; the
    bias, residual add and accumulator are f32.  K and N are zero-padded to
    128 so every MXU pass and every store is full-width / lane-dense; M tiles
    are 16-aligned for bf16 sublane packing."""
    M, K = x.shape
    N = w.shape[1]

    tm, Mp = _choose_tile(M, _TM_PREF, 16)
    tk, Kp = _choose_tile(K, _TK_PREF, 128)
    tn, Np = _choose_tile(N, _TN_PREF, 128)

    xp = _pad2(x.astype(jnp.bfloat16), Mp, Kp)
    wp = _pad2(w.astype(jnp.bfloat16), Kp, Np)
    bp = jnp.pad(b.astype(jnp.float32), (0, Np - N)).reshape(1, Np)

    in_specs = [
        pl.BlockSpec((tm, tk), lambda i, j, k: (i, k)),
        pl.BlockSpec((tk, tn), lambda i, j, k: (k, j)),
        pl.BlockSpec((1, tn), lambda i, j, k: (0, j)),
    ]
    args = [xp, wp, bp]
    res_bytes = 0
    if residual is not None:
        rp = _pad2(residual.astype(jnp.bfloat16), Mp, Np)
        in_specs.append(pl.BlockSpec((tm, tn), lambda i, j, k: (i, j)))
        args.append(rp)
        res_bytes = Mp * Np * 2

    kernel = functools.partial(_mm_kernel, relu=relu,
                               has_res=residual is not None)
    out_bytes = Mp * Np * jnp.dtype(out_dtype).itemsize

    out = pl.pallas_call(
        kernel,
        out_shape=jax.ShapeDtypeStruct((Mp, Np), out_dtype),
        grid=(Mp // tm, Np // tn, Kp // tk),
        in_specs=in_specs,
        out_specs=pl.BlockSpec((tm, tn), lambda i, j, k: (i, j)),
        scratch_shapes=[pltpu.VMEM((tm, tn), jnp.float32)],
        compiler_params=pltpu.CompilerParams(
            dimension_semantics=("parallel", "parallel", "arbitrary"),
            vmem_limit_bytes=_VMEM_LIMIT),
        cost_estimate=pl.CostEstimate(
            flops=2 * Mp * Np * Kp,
            transcendentals=0,
            bytes_accessed=Mp * Kp * 2 + Kp * Np * 2 + Np * 4
                           + res_bytes + out_bytes),
    )(*args)
    return out[:M, :N]


# ------------------------ fused pair of 1x1 convs ----------------------------

def _fused_1x1_kernel(x_ref, w1_ref, b1_ref, w2_ref, b2_ref, o_ref, *,
                      res_first, res_second, relu_out):
    x = x_ref[...]                                                 # bf16 (tm,Kp)
    h = jnp.dot(x, w1_ref[...],
                preferred_element_type=jnp.float32) + b1_ref[...]
    if res_first:
        h = h + x.astype(jnp.float32)                              # needs Kp==N1p
    out = jnp.dot(h.astype(jnp.bfloat16), w2_ref[...],
                  preferred_element_type=jnp.float32) + b2_ref[...]
    if res_second:
        out = out + h
    if relu_out:
        out = jnp.maximum(out, 0.0)
    o_ref[...] = out.astype(o_ref.dtype)


def pallas_fused_1x1(x, w1, b1, w2, b2, *, res_first=False, res_second=False,
                     relu_out=False, out_dtype=jnp.float32):
    """Two back-to-back 1x1 convs (matmuls) in one kernel; the intermediate
    activation never leaves VMEM.  x:(M,K) w1:(K,N1) w2:(N1,N2); x travels in
    bf16, residual adds happen in f32."""
    M, K = x.shape
    N1 = w1.shape[1]
    N2 = w2.shape[1]
    if res_first:
        assert K == N1, "residual after first matmul needs K == N1"
    if res_second:
        assert N1 == N2, "residual after second matmul needs N1 == N2"

    Kp = _round_up(K, 128)
    N1p = _round_up(N1, 128)
    N2p = _round_up(N2, 128)
    if res_first:
        Kp = N1p = max(Kp, N1p)
    tm, Mp = _choose_tile(M, _TM_PREF, 16)

    xp = _pad2(x.astype(jnp.bfloat16), Mp, Kp)
    w1p = _pad2(w1, Kp, N1p).astype(jnp.bfloat16)
    b1p = jnp.pad(b1.astype(jnp.float32), (0, N1p - N1)).reshape(1, N1p)
    w2p = _pad2(w2, N1p, N2p).astype(jnp.bfloat16)
    b2p = jnp.pad(b2.astype(jnp.float32), (0, N2p - N2)).reshape(1, N2p)

    kernel = functools.partial(_fused_1x1_kernel, res_first=res_first,
                               res_second=res_second, relu_out=relu_out)

    out = pl.pallas_call(
        kernel,
        out_shape=jax.ShapeDtypeStruct((Mp, N2p), out_dtype),
        grid=(Mp // tm,),
        in_specs=[
            pl.BlockSpec((tm, Kp), lambda i: (i, 0)),
            pl.BlockSpec((Kp, N1p), lambda i: (0, 0)),
            pl.BlockSpec((1, N1p), lambda i: (0, 0)),
            pl.BlockSpec((N1p, N2p), lambda i: (0, 0)),
            pl.BlockSpec((1, N2p), lambda i: (0, 0)),
        ],
        out_specs=pl.BlockSpec((tm, N2p), lambda i: (i, 0)),
        compiler_params=pltpu.CompilerParams(
            dimension_semantics=("parallel",),
            vmem_limit_bytes=_VMEM_LIMIT),
        cost_estimate=pl.CostEstimate(
            flops=2 * Mp * (Kp * N1p + N1p * N2p),
            transcendentals=0,
            bytes_accessed=Mp * Kp * 2 + Kp * N1p * 2 + N1p * N2p * 2
                           + Mp * N2p * jnp.dtype(out_dtype).itemsize),
    )(xp, w1p, b1p, w2p, b2p)
    return out[:M, :N2]


# ------------------------------- VQ codebook ---------------------------------

def _vq_kernel(z_ref, et_ref, e_ref, esq_ref, q_ref, idx_ref, err_ref, *,
               k_valid):
    z = z_ref[...]                           # (tile, Dp) f32, padded cols zero
    # Distance matmul in bf16 (argmin-tolerant); ||z||^2 is constant per row
    # and does not change the argmin, so it is skipped.
    ze = jnp.dot(z.astype(jnp.bfloat16), et_ref[...],
                 preferred_element_type=jnp.float32)        # (tile, Kp)
    score = esq_ref[...] - 2.0 * ze

    col = jax.lax.broadcasted_iota(jnp.int32, score.shape, 1)
    score = jnp.where(col < k_valid, score, 1e30)            # mask padded codes

    min_s = jnp.min(score, axis=1, keepdims=True)
    colf = col.astype(jnp.float32)
    kp = score.shape[1]
    idx = jnp.min(jnp.where(score <= min_s, colf, float(kp)),
                  axis=1, keepdims=True)                      # first-index tie break
    onehot = (colf == idx).astype(jnp.float32)                # (tile, Kp)

    # Gather matmul stays f32 so quantized values are exact codebook rows.
    q = jnp.dot(onehot, e_ref[...], preferred_element_type=jnp.float32)
    q_ref[...] = q
    idx_ref[...] = idx

    diff = q - z
    err_ref[...] = jnp.sum(diff * diff, axis=1, keepdims=True)  # (tile, 1)


def pallas_vq(z_flat, embedding):
    """Nearest-code quantization + MSE(z_q, z) + perplexity.

    The grid over latent rows is fully parallel (per-row index / squared-error
    outputs); the tiny scalar reductions happen outside in XLA so v7x's two
    TensorCores can split the kernel."""
    n, d = z_flat.shape
    k = embedding.shape[0]

    d_pad = _round_up(d, 128)
    k_pad = _round_up(k, 128)
    tile_rows, n_pad = _choose_tile(n, _TM_PREF, 8)

    e_f32 = embedding.astype(jnp.float32)
    zp = _pad2(z_flat.astype(jnp.float32), n_pad, d_pad)
    ep = _pad2(e_f32, k_pad, d_pad)                              # f32 gather table
    etp = _pad2(e_f32.T, d_pad, k_pad).astype(jnp.bfloat16)      # bf16, pre-transposed
    esq = jnp.pad(jnp.sum(e_f32 * e_f32, axis=1),
                  (0, k_pad - k)).reshape(1, k_pad)              # precomputed norms

    kernel = functools.partial(_vq_kernel, k_valid=k)

    q, idx, err = pl.pallas_call(
        kernel,
        out_shape=(
            jax.ShapeDtypeStruct((n_pad, d_pad), jnp.float32),
            jax.ShapeDtypeStruct((n_pad, 1), jnp.float32),
            jax.ShapeDtypeStruct((n_pad, 1), jnp.float32),
        ),
        grid=(n_pad // tile_rows,),
        in_specs=[
            pl.BlockSpec((tile_rows, d_pad), lambda i: (i, 0)),
            pl.BlockSpec((d_pad, k_pad), lambda i: (0, 0)),
            pl.BlockSpec((k_pad, d_pad), lambda i: (0, 0)),
            pl.BlockSpec((1, k_pad), lambda i: (0, 0)),
        ],
        out_specs=(
            pl.BlockSpec((tile_rows, d_pad), lambda i: (i, 0)),
            pl.BlockSpec((tile_rows, 1), lambda i: (i, 0)),
            pl.BlockSpec((tile_rows, 1), lambda i: (i, 0)),
        ),
        compiler_params=pltpu.CompilerParams(
            dimension_semantics=("parallel",),
            vmem_limit_bytes=_VMEM_LIMIT),
        cost_estimate=pl.CostEstimate(
            flops=4 * n_pad * d_pad * k_pad,
            transcendentals=0,
            bytes_accessed=n_pad * d_pad * 8 + d_pad * k_pad * 2
                           + k_pad * d_pad * 4 + n_pad * 8),
    )(zp, etp, ep, esq)

    q = q[:n, :d]
    idx = idx[:n, 0].astype(jnp.int32)
    loss = jnp.sum(err[:n, 0]) / float(n * d)
    counts = jnp.zeros((k,), jnp.float32).at[idx].add(1.0)
    avg = counts / float(n)
    perplexity = jnp.exp(-jnp.sum(avg * jnp.log(avg + 1e-10)))
    return q, loss, perplexity


# ------------------------------ conv glue (NHWC) -----------------------------

def conv2d(x, w, b, stride=1, padding=0, residual=None, relu=False,
           out_dtype=jnp.bfloat16):
    """PyTorch-semantics Conv2d via im2col + tiled Pallas matmul.
    x:(B,H,W,C) NHWC; w:(O,C,KH,KW) PyTorch layout; residual NHWC (output shape)."""
    # Cast BEFORE im2col so the KH*KW-expanded patch buffer is written once, in bf16.
    # TODO(synk): replace im2col with a (kh,kw) tap-loop grid axis reading shifted
    # windows of the NHWC tensor directly, removing the expanded HBM buffer.
    x = x.astype(jnp.bfloat16)
    B, H, W_, C = x.shape
    O, _, KH, KW = w.shape
    OH = (H + 2 * padding - KH) // stride + 1
    OW = (W_ + 2 * padding - KW) // stride + 1
    xp = jnp.pad(x, ((0, 0), (padding, padding), (padding, padding), (0, 0)))
    cols = []
    for i in range(KH):
        for j in range(KW):
            cols.append(xp[:, i:i + stride * (OH - 1) + 1:stride,
                              j:j + stride * (OW - 1) + 1:stride, :])
    patches = jnp.stack(cols, axis=3)                    # (B, OH, OW, KH*KW, C) bf16
    patches = patches.reshape(B * OH * OW, KH * KW * C)
    wmat = w.transpose(2, 3, 1, 0).reshape(KH * KW * C, O)   # rows = (kh,kw,c)
    res_flat = None
    if residual is not None:
        res_flat = residual.astype(jnp.bfloat16).reshape(B * OH * OW, O)
    out = pallas_matmul_bias(patches, wmat, b, residual=res_flat, relu=relu,
                             out_dtype=out_dtype)
    return out.reshape(B, OH, OW, O)


def conv_transpose2d(x, w, b, out_dtype=jnp.bfloat16):
    """PyTorch ConvTranspose2d with kernel_size == stride, padding=0.

    Non-overlapping: each input pixel emits a KHxKW output block -> one matmul.
    x:(B,H,W,Cin) NHWC; w:(Cin,Cout,KH,KW) PyTorch layout; b:(Cout,)."""
    # TODO(synk): fold the pixel interleave into the matmul out_specs (kh as a
    # grid axis scattering row groups) to remove this HBM relayout entirely.
    B, H, W_, C = x.shape
    _, O, KH, KW = w.shape
    xf = x.reshape(B * H * W_, C)
    wmat = w.reshape(C, O * KH * KW)                     # cols = (o, kh, kw)
    bvec = jnp.repeat(b, KH * KW)
    out = pallas_matmul_bias(xf, wmat, bvec, out_dtype=out_dtype)
    out = out.reshape(B, H, W_, O, KH, KW)               # interleave in out_dtype
    out = out.transpose(0, 1, 4, 2, 5, 3)                # (B, H, KH, W, KW, O)
    return out.reshape(B, H * KH, W_ * KW, O)


# --------------------------- module forward passes ---------------------------

def encoder_forward(p, x):
    x = conv2d(x, p["sc1_w"], p["sc1_b"], stride=2, padding=1)
    x = conv2d(x, p["sc2_w"], p["sc2_b"], stride=2, padding=1, relu=True)
    x = conv2d(x, p["rc1_w"], p["rc1_b"], stride=1, padding=1, residual=x, relu=True)
    # fused 1x1 pair: y = rc2(x) + x ; z = proj(y).  Output f32 for the VQ step.
    B, H, W_, C = x.shape
    zf = pallas_fused_1x1(
        x.reshape(B * H * W_, C),
        _w1x1(p["rc2_w"]), p["rc2_b"],
        _w1x1(p["proj_w"]), p["proj_b"],
        res_first=True, out_dtype=jnp.float32)
    return zf.reshape(B, H, W_, p["proj_w"].shape[0])


def codebook_forward(embedding, z):
    # z NHWC (B, H, W, D) -> (B*H*W, D) -> VQ -> back to NHWC.
    B, H, W_, D = z.shape
    q, mse, perp = pallas_vq(z.reshape(B * H * W_, D), embedding)
    zq = q.reshape(B, H, W_, D)
    # Straight-through estimator is the identity in the forward pass; the
    # commitment and codebook losses share the same forward value MSE(z_q, z).
    return zq, mse, mse, perp


def decoder_forward(p, x):
    # fused 1x1 pair: h = in_proj(x) ; y = relu(rc1(h) + h), emitted in bf16.
    B, H, W_, D = x.shape
    hf = pallas_fused_1x1(
        x.astype(jnp.bfloat16).reshape(B * H * W_, D),
        _w1x1(p["in_w"]), p["in_b"],
        _w1x1(p["rc1_w"]), p["rc1_b"],
        res_second=True, relu_out=True, out_dtype=jnp.bfloat16)
    h = hf.reshape(B, H, W_, p["rc1_w"].shape[0])
    y = conv2d(h, p["rc2_w"], p["rc2_b"], stride=1, padding=1, residual=h, relu=True)
    y = conv_transpose2d(y, p["tc1_w"], p["tc1_b"], out_dtype=jnp.bfloat16)
    y = conv_transpose2d(y, p["tc2_w"], p["tc2_b"], out_dtype=jnp.float32)
    return y


def model_forward(params, x):
    # x is NCHW at the module boundary (PyTorch convention); internal is NHWC.
    x = x.transpose(0, 2, 3, 1)
    z = encoder_forward(params["enc"], x)
    zq, commitment_loss, codebook_loss, perplexity = codebook_forward(
        params["codebook"], z)
    x_hat = decoder_forward(params["dec"], zq)
    return x_hat.transpose(0, 3, 1, 2), commitment_loss, codebook_loss, perplexity


# -------------------------------- param init ---------------------------------

def _conv_init(key, out_c, in_c, kh, kw):
    k1, k2 = jax.random.split(key)
    bound = 1.0 / float(in_c * kh * kw) ** 0.5
    w = jax.random.uniform(k1, (out_c, in_c, kh, kw), jnp.float32, -bound, bound)
    b = jax.random.uniform(k2, (out_c,), jnp.float32, -bound, bound)
    return w, b


def _tconv_init(key, in_c, out_c, kh, kw):
    k1, k2 = jax.random.split(key)
    bound = 1.0 / float(out_c * kh * kw) ** 0.5
    w = jax.random.uniform(k1, (in_c, out_c, kh, kw), jnp.float32, -bound, bound)
    b = jax.random.uniform(k2, (out_c,), jnp.float32, -bound, bound)
    return w, b


if __name__ == "__main__":
    INPUT_DIM = 3
    HIDDEN_DIM = 32      # small stand-in for the module's hidden_dim=512
    LATENT_DIM = 16      # encoder output_dim == codebook embedding dim
    OUTPUT_DIM = 3
    N_EMBEDDINGS = 32
    B, H, W = 2, 16, 16

    keys = jax.random.split(jax.random.PRNGKey(0), 12)

    enc = {}
    enc["sc1_w"], enc["sc1_b"] = _conv_init(keys[0], HIDDEN_DIM, INPUT_DIM, 4, 4)
    enc["sc2_w"], enc["sc2_b"] = _conv_init(keys[1], HIDDEN_DIM, HIDDEN_DIM, 4, 4)
    enc["rc1_w"], enc["rc1_b"] = _conv_init(keys[2], HIDDEN_DIM, HIDDEN_DIM, 3, 3)
    enc["rc2_w"], enc["rc2_b"] = _conv_init(keys[3], HIDDEN_DIM, HIDDEN_DIM, 1, 1)
    enc["proj_w"], enc["proj_b"] = _conv_init(keys[4], LATENT_DIM, HIDDEN_DIM, 1, 1)

    dec = {}
    dec["in_w"], dec["in_b"] = _conv_init(keys[5], HIDDEN_DIM, LATENT_DIM, 1, 1)
    dec["rc1_w"], dec["rc1_b"] = _conv_init(keys[6], HIDDEN_DIM, HIDDEN_DIM, 1, 1)
    dec["rc2_w"], dec["rc2_b"] = _conv_init(keys[7], HIDDEN_DIM, HIDDEN_DIM, 3, 3)
    dec["tc1_w"], dec["tc1_b"] = _tconv_init(keys[8], HIDDEN_DIM, HIDDEN_DIM, 2, 2)
    dec["tc2_w"], dec["tc2_b"] = _tconv_init(keys[9], HIDDEN_DIM, OUTPUT_DIM, 2, 2)

    codebook = jax.random.uniform(
        keys[10], (N_EMBEDDINGS, LATENT_DIM), jnp.float32,
        -1.0 / N_EMBEDDINGS, 1.0 / N_EMBEDDINGS)

    params = {"enc": enc, "dec": dec, "codebook": codebook}
    x = jax.random.normal(keys[11], (B, INPUT_DIM, H, W), jnp.float32)

    x_hat, commitment_loss, codebook_loss, perplexity = jax.jit(model_forward)(params, x)
    jax.block_until_ready((x_hat, commitment_loss, codebook_loss, perplexity))

    assert x_hat.shape == (B, OUTPUT_DIM, H, W), x_hat.shape
    assert commitment_loss.shape == () and codebook_loss.shape == ()
    assert perplexity.shape == ()
    print("KERNEL_OK")
</pallas_src>

<mosaic_0001>
module attributes {stable_mosaic.version = 11 : i64} {
  func.func @_mm_kernel(%arg0: i32, %arg1: i32, %arg2: i32, %arg3: memref<128x128xbf16, #tpu.memory_space<vmem>>, %arg4: memref<128x128xbf16, #tpu.memory_space<vmem>>, %arg5: memref<1x128xf32, #tpu.memory_space<vmem>>, %arg6: memref<128x128xbf16, #tpu.memory_space<vmem>>, %arg7: memref<128x128xf32, #tpu.memory_space<vmem>>) attributes {dimension_semantics = [#tpu.dimension_semantics<parallel>, #tpu.dimension_semantics<parallel>, #tpu.dimension_semantics<arbitrary>], iteration_bounds = array<i64: 1, 1, 1>, scalar_prefetch = 0 : i64, scratch_operands = 1 : i64, tpu.core_type = #tpu.core_type<tc>, window_params = [{transform_indices = @transform_0, window_bounds = array<i64: 128, 128>}, {transform_indices = @transform_1, window_bounds = array<i64: 128, 128>}, {transform_indices = @transform_2, window_bounds = array<i64: 1, 128>}, {transform_indices = @transform_3, window_bounds = array<i64: 128, 128>}]} {
    %c0_i32 = arith.constant 0 : i32
    %0 = arith.cmpi eq, %arg2, %c0_i32 : i32
    %1 = arith.extui %0 : i1 to i32
    %c0_i32_0 = arith.constant 0 : i32
    %2 = arith.cmpi ne, %1, %c0_i32_0 : i32
    scf.if %2 {
      %cst_10 = arith.constant 0.000000e+00 : f32
      %12 = vector.broadcast %cst_10 : f32 to vector<128x128xf32>
      %c0_11 = arith.constant 0 : index
      %c0_12 = arith.constant 0 : index
      %13 = vector.load %arg7[%c0_11, %c0_12] : memref<128x128xf32, #tpu.memory_space<vmem>>, vector<128x128xf32>
      tpu.vector_store %arg7[%c0_11, %c0_12], %12 {strides = array<i32>} : memref<128x128xf32, #tpu.memory_space<vmem>>, vector<128x128xf32>,
    } else {
    }
    %c0 = arith.constant 0 : index
    %c0_1 = arith.constant 0 : index
    %3 = vector.load %arg7[%c0, %c0_1] : memref<128x128xf32, #tpu.memory_space<vmem>>, vector<128x128xf32>
    %c0_2 = arith.constant 0 : index
    %c0_3 = arith.constant 0 : index
    %4 = vector.load %arg3[%c0_2, %c0_3] : memref<128x128xbf16, #tpu.memory_space<vmem>>, vector<128x128xbf16>
    %c0_4 = arith.constant 0 : index
    %c0_5 = arith.constant 0 : index
    %5 = vector.load %arg4[%c0_4, %c0_5] : memref<128x128xbf16, #tpu.memory_space<vmem>>, vector<128x128xbf16>
    %cst = arith.constant dense<0.000000e+00> : vector<128x128xf32>
    %6 = tpu.matmul %4, %5, %cst {dimension_numbers = #tpu.dot_dimension_numbers<[1], [0], [0], [1], [0, 0, 1, 1], [], []>} : vector<128x128xbf16>, vector<128x128xbf16>, vector<128x128xf32> -> vector<128x128xf32>
    %7 = arith.addf %3, %6 : vector<128x128xf32>
    %c0_6 = arith.constant 0 : index
    %c0_7 = arith.constant 0 : index
    %8 = vector.load %arg7[%c0_6, %c0_7] : memref<128x128xf32, #tpu.memory_space<vmem>>, vector<128x128xf32>
    tpu.vector_store %arg7[%c0_6, %c0_7], %7 {strides = array<i32>} : memref<128x128xf32, #tpu.memory_space<vmem>>, vector<128x128xf32>,
    %c0_i32_8 = arith.constant 0 : i32
    %9 = arith.cmpi eq, %arg2, %c0_i32_8 : i32
    %10 = arith.extui %9 : i1 to i32
    %c0_i32_9 = arith.constant 0 : i32
    %11 = arith.cmpi ne, %10, %c0_i32_9 : i32
    scf.if %11 {
      %c0_10 = arith.constant 0 : index
      %c0_11 = arith.constant 0 : index
      %12 = vector.load %arg7[%c0_10, %c0_11] : memref<128x128xf32, #tpu.memory_space<vmem>>, vector<128x128xf32>
      %c0_12 = arith.constant 0 : index
      %c0_13 = arith.constant 0 : index
      %13 = vector.load %arg5[%c0_12, %c0_13] : memref<1x128xf32, #tpu.memory_space<vmem>>, vector<1x128xf32>
      %14 = vector.broadcast %13 : vector<1x128xf32> to vector<128x128xf32>
      %15 = arith.addf %12, %14 : vector<128x128xf32>
      %16 = arith.truncf %15 : vector<128x128xf32> to vector<128x128xbf16>
      %c0_14 = arith.constant 0 : index
      %c0_15 = arith.constant 0 : index
      %17 = vector.load %arg6[%c0_14, %c0_15] : memref<128x128xbf16, #tpu.memory_space<vmem>>, vector<128x128xbf16>
      tpu.vector_store %arg6[%c0_14, %c0_15], %16 {strides = array<i32>} : memref<128x128xbf16, #tpu.memory_space<vmem>>, vector<128x128xbf16>,
    } else {
    }
    return
  }
  func.func @transform_0(%arg0: i32, %arg1: i32, %arg2: i32) -> (i32, i32) {
    %c0_i32 = arith.constant 0 : i32
    return %arg0, %arg2 : i32, i32
  }
  func.func @transform_1(%arg0: i32, %arg1: i32, %arg2: i32) -> (i32, i32) {
    %c0_i32 = arith.constant 0 : i32
    return %arg2, %arg1 : i32, i32
  }
  func.func @transform_2(%arg0: i32, %arg1: i32, %arg2: i32) -> (i32, i32) {
    %c0_i32 = arith.constant 0 : i32
    %c0_i32_0 = arith.constant 0 : i32
    return %c0_i32, %arg1 : i32, i32
  }
  func.func @transform_3(%arg0: i32, %arg1: i32, %arg2: i32) -> (i32, i32) {
    %c0_i32 = arith.constant 0 : i32
    return %arg0, %arg1 : i32, i32
  }
}

module attributes {stable_mosaic.version = 11 : i64} {
  func.func @_mm_kernel(%arg0: i32, %arg1: i32, %arg2: i32, %arg3: memref<32x512xbf16, #tpu.memory_space<vmem>>, %arg4: memref<512x128xbf16, #tpu.memory_space<vmem>>, %arg5: memref<1x128xf32, #tpu.memory_space<vmem>>, %arg6: memref<32x128xbf16, #tpu.memory_space<vmem>>, %arg7: memref<32x128xf32, #tpu.memory_space<vmem>>) attributes {dimension_semantics = [#tpu.dimension_semantics<parallel>, #tpu.dimension_semantics<parallel>, #tpu.dimension_semantics<arbitrary>], iteration_bounds = array<i64: 1, 1, 1>, scalar_prefetch = 0 : i64, scratch_operands = 1 : i64, tpu.core_type = #tpu.core_type<tc>, window_params = [{transform_indices = @transform_0, window_bounds = array<i64: 32, 512>}, {transform_indices = @transform_1, window_bounds = array<i64: 512, 128>}, {transform_indices = @transform_2, window_bounds = array<i64: 1, 128>}, {transform_indices = @transform_3, window_bounds = array<i64: 32, 128>}]} {
    %c0_i32 = arith.constant 0 : i32
    %0 = arith.cmpi eq, %arg2, %c0_i32 : i32
    %1 = arith.extui %0 : i1 to i32
    %c0_i32_0 = arith.constant 0 : i32
    %2 = arith.cmpi ne, %1, %c0_i32_0 : i32
    scf.if %2 {
      %cst_10 = arith.constant 0.000000e+00 : f32
      %12 = vector.broadcast %cst_10 : f32 to vector<32x128xf32>
      %c0_11 = arith.constant 0 : index
      %c0_12 = arith.constant 0 : index
      %13 = vector.load %arg7[%c0_11, %c0_12] : memref<32x128xf32, #tpu.memory_space<vmem>>, vector<32x128xf32>
      tpu.vector_store %arg7[%c0_11, %c0_12], %12 {strides = array<i32>} : memref<32x128xf32, #tpu.memory_space<vmem>>, vector<32x128xf32>,
    } else {
    }
    %c0 = arith.constant 0 : index
    %c0_1 = arith.constant 0 : index
    %3 = vector.load %arg7[%c0, %c0_1] : memref<32x128xf32, #tpu.memory_space<vmem>>, vector<32x128xf32>
    %c0_2 = arith.constant 0 : index
    %c0_3 = arith.constant 0 : index
    %4 = vector.load %arg3[%c0_2, %c0_3] : memref<32x512xbf16, #tpu.memory_space<vmem>>, vector<32x512xbf16>
    %c0_4 = arith.constant 0 : index
    %c0_5 = arith.constant 0 : index
    %5 = vector.load %arg4[%c0_4, %c0_5] : memref<512x128xbf16, #tpu.memory_space<vmem>>, vector<512x128xbf16>
    %cst = arith.constant dense<0.000000e+00> : vector<32x128xf32>
    %6 = tpu.matmul %4, %5, %cst {dimension_numbers = #tpu.dot_dimension_numbers<[1], [0], [0], [1], [0, 0, 1, 1], [], []>} : vector<32x512xbf16>, vector<512x128xbf16>, vector<32x128xf32> -> vector<32x128xf32>
    %7 = arith.addf %3, %6 : vector<32x128xf32>
    %c0_6 = arith.constant 0 : index
    %c0_7 = arith.constant 0 : index
    %8 = vector.load %arg7[%c0_6, %c0_7] : memref<32x128xf32, #tpu.memory_space<vmem>>, vector<32x128xf32>
    tpu.vector_store %arg7[%c0_6, %c0_7], %7 {strides = array<i32>} : memref<32x128xf32, #tpu.memory_space<vmem>>, vector<32x128xf32>,
    %c0_i32_8 = arith.constant 0 : i32
    %9 = arith.cmpi eq, %arg2, %c0_i32_8 : i32
    %10 = arith.extui %9 : i1 to i32
    %c0_i32_9 = arith.constant 0 : i32
    %11 = arith.cmpi ne, %10, %c0_i32_9 : i32
    scf.if %11 {
      %c0_10 = arith.constant 0 : index
      %c0_11 = arith.constant 0 : index
      %12 = vector.load %arg7[%c0_10, %c0_11] : memref<32x128xf32, #tpu.memory_space<vmem>>, vector<32x128xf32>
      %c0_12 = arith.constant 0 : index
      %c0_13 = arith.constant 0 : index
      %13 = vector.load %arg5[%c0_12, %c0_13] : memref<1x128xf32, #tpu.memory_space<vmem>>, vector<1x128xf32>
      %14 = vector.broadcast %13 : vector<1x128xf32> to vector<32x128xf32>
      %15 = arith.addf %12, %14 : vector<32x128xf32>
      %cst_14 = arith.constant 0.000000e+00 : f32
      %16 = vector.broadcast %cst_14 : f32 to vector<32x128xf32>
      %17 = arith.maximumf %15, %16 : vector<32x128xf32>
      %18 = arith.truncf %17 : vector<32x128xf32> to vector<32x128xbf16>
      %c0_15 = arith.constant 0 : index
      %c0_16 = arith.constant 0 : index
      %19 = vector.load %arg6[%c0_15, %c0_16] : memref<32x128xbf16, #tpu.memory_space<vmem>>, vector<32x128xbf16>
      tpu.vector_store %arg6[%c0_15, %c0_16], %18 {strides = array<i32>} : memref<32x128xbf16, #tpu.memory_space<vmem>>, vector<32x128xbf16>,
    } else {
    }
    return
  }
  func.func @transform_0(%arg0: i32, %arg1: i32, %arg2: i32) -> (i32, i32) {
    %c0_i32 = arith.constant 0 : i32
    return %arg0, %arg2 : i32, i32
  }
  func.func @transform_1(%arg0: i32, %arg1: i32, %arg2: i32) -> (i32, i32) {
    %c0_i32 = arith.constant 0 : i32
    return %arg2, %arg1 : i32, i32
  }
  func.func @transform_2(%arg0: i32, %arg1: i32, %arg2: i32) -> (i32, i32) {
    %c0_i32 = arith.constant 0 : i32
    %c0_i32_0 = arith.constant 0 : i32
    return %c0_i32, %arg1 : i32, i32
  }
  func.func @transform_3(%arg0: i32, %arg1: i32, %arg2: i32) -> (i32, i32) {
    %c0_i32 = arith.constant 0 : i32
    return %arg0, %arg1 : i32, i32
  }
}

module attributes {stable_mosaic.version = 11 : i64} {
  func.func @_mm_kernel(%arg0: i32, %arg1: i32, %arg2: i32, %arg3: memref<32x384xbf16, #tpu.memory_space<vmem>>, %arg4: memref<384x128xbf16, #tpu.memory_space<vmem>>, %arg5: memref<1x128xf32, #tpu.memory_space<vmem>>, %arg6: memref<32x128xbf16, #tpu.memory_space<vmem>>, %arg7: memref<32x128xbf16, #tpu.memory_space<vmem>>, %arg8: memref<32x128xf32, #tpu.memory_space<vmem>>) attributes {dimension_semantics = [#tpu.dimension_semantics<parallel>, #tpu.dimension_semantics<parallel>, #tpu.dimension_semantics<arbitrary>], iteration_bounds = array<i64: 1, 1, 1>, scalar_prefetch = 0 : i64, scratch_operands = 1 : i64, tpu.core_type = #tpu.core_type<tc>, window_params = [{transform_indices = @transform_0, window_bounds = array<i64: 32, 384>}, {transform_indices = @transform_1, window_bounds = array<i64: 384, 128>}, {transform_indices = @transform_2, window_bounds = array<i64: 1, 128>}, {transform_indices = @transform_3, window_bounds = array<i64: 32, 128>}, {transform_indices = @transform_4, window_bounds = array<i64: 32, 128>}]} {
    %c0_i32 = arith.constant 0 : i32
    %0 = arith.cmpi eq, %arg2, %c0_i32 : i32
    %1 = arith.extui %0 : i1 to i32
    %c0_i32_0 = arith.constant 0 : i32
    %2 = arith.cmpi ne, %1, %c0_i32_0 : i32
    scf.if %2 {
      %cst_10 = arith.constant 0.000000e+00 : f32
      %12 = vector.broadcast %cst_10 : f32 to vector<32x128xf32>
      %c0_11 = arith.constant 0 : index
      %c0_12 = arith.constant 0 : index
      %13 = vector.load %arg8[%c0_11, %c0_12] : memref<32x128xf32, #tpu.memory_space<vmem>>, vector<32x128xf32>
      tpu.vector_store %arg8[%c0_11, %c0_12], %12 {strides = array<i32>} : memref<32x128xf32, #tpu.memory_space<vmem>>, vector<32x128xf32>,
    } else {
    }
    %c0 = arith.constant 0 : index
    %c0_1 = arith.constant 0 : index
    %3 = vector.load %arg8[%c0, %c0_1] : memref<32x128xf32, #tpu.memory_space<vmem>>, vector<32x128xf32>
    %c0_2 = arith.constant 0 : index
    %c0_3 = arith.constant 0 : index
    %4 = vector.load %arg3[%c0_2, %c0_3] : memref<32x384xbf16, #tpu.memory_space<vmem>>, vector<32x384xbf16>
    %c0_4 = arith.constant 0 : index
    %c0_5 = arith.constant 0 : index
    %5 = vector.load %arg4[%c0_4, %c0_5] : memref<384x128xbf16, #tpu.memory_space<vmem>>, vector<384x128xbf16>
    %cst = arith.constant dense<0.000000e+00> : vector<32x128xf32>
    %6 = tpu.matmul %4, %5, %cst {dimension_numbers = #tpu.dot_dimension_numbers<[1], [0], [0], [1], [0, 0, 1, 1], [], []>} : vector<32x384xbf16>, vector<384x128xbf16>, vector<32x128xf32> -> vector<32x128xf32>
    %7 = arith.addf %3, %6 : vector<32x128xf32>
    %c0_6 = arith.constant 0 : index
    %c0_7 = arith.constant 0 : index
    %8 = vector.load %arg8[%c0_6, %c0_7] : memref<32x128xf32, #tpu.memory_space<vmem>>, vector<32x128xf32>
    tpu.vector_store %arg8[%c0_6, %c0_7], %7 {strides = array<i32>} : memref<32x128xf32, #tpu.memory_space<vmem>>, vector<32x128xf32>,
    %c0_i32_8 = arith.constant 0 : i32
    %9 = arith.cmpi eq, %arg2, %c0_i32_8 : i32
    %10 = arith.extui %9 : i1 to i32
    %c0_i32_9 = arith.constant 0 : i32
    %11 = arith.cmpi ne, %10, %c0_i32_9 : i32
    scf.if %11 {
      %c0_10 = arith.constant 0 : index
      %c0_11 = arith.constant 0 : index
      %12 = vector.load %arg8[%c0_10, %c0_11] : memref<32x128xf32, #tpu.memory_space<vmem>>, vector<32x128xf32>
      %c0_12 = arith.constant 0 : index
      %c0_13 = arith.constant 0 : index
      %13 = vector.load %arg5[%c0_12, %c0_13] : memref<1x128xf32, #tpu.memory_space<vmem>>, vector<1x128xf32>
      %14 = vector.broadcast %13 : vector<1x128xf32> to vector<32x128xf32>
      %15 = arith.addf %12, %14 : vector<32x128xf32>
      %c0_14 = arith.constant 0 : index
      %c0_15 = arith.constant 0 : index
      %16 = vector.load %arg6[%c0_14, %c0_15] : memref<32x128xbf16, #tpu.memory_space<vmem>>, vector<32x128xbf16>
      %17 = arith.extf %16 : vector<32x128xbf16> to vector<32x128xf32>
      %18 = arith.addf %15, %17 : vector<32x128xf32>
      %cst_16 = arith.constant 0.000000e+00 : f32
      %19 = vector.broadcast %cst_16 : f32 to vector<32x128xf32>
      %20 = arith.maximumf %18, %19 : vector<32x128xf32>
      %21 = arith.truncf %20 : vector<32x128xf32> to vector<32x128xbf16>
      %c0_17 = arith.constant 0 : index
      %c0_18 = arith.constant 0 : index
      %22 = vector.load %arg7[%c0_17, %c0_18] : memref<32x128xbf16, #tpu.memory_space<vmem>>, vector<32x128xbf16>
      tpu.vector_store %arg7[%c0_17, %c0_18], %21 {strides = array<i32>} : memref<32x128xbf16, #tpu.memory_space<vmem>>, vector<32x128xbf16>,
    } else {
    }
    return
  }
  func.func @transform_0(%arg0: i32, %arg1: i32, %arg2: i32) -> (i32, i32) {
    %c0_i32 = arith.constant 0 : i32
    return %arg0, %arg2 : i32, i32
  }
  func.func @transform_1(%arg0: i32, %arg1: i32, %arg2: i32) -> (i32, i32) {
    %c0_i32 = arith.constant 0 : i32
    return %arg2, %arg1 : i32, i32
  }
  func.func @transform_2(%arg0: i32, %arg1: i32, %arg2: i32) -> (i32, i32) {
    %c0_i32 = arith.constant 0 : i32
    %c0_i32_0 = arith.constant 0 : i32
    return %c0_i32, %arg1 : i32, i32
  }
  func.func @transform_3(%arg0: i32, %arg1: i32, %arg2: i32) -> (i32, i32) {
    %c0_i32 = arith.constant 0 : i32
    return %arg0, %arg1 : i32, i32
  }
  func.func @transform_4(%arg0: i32, %arg1: i32, %arg2: i32) -> (i32, i32) {
    %c0_i32 = arith.constant 0 : i32
    return %arg0, %arg1 : i32, i32
  }
}

module attributes {stable_mosaic.version = 11 : i64} {
  func.func @_fused_1x1_kernel(%arg0: i32, %arg1: memref<32x128xbf16, #tpu.memory_space<vmem>>, %arg2: memref<128x128xbf16, #tpu.memory_space<vmem>>, %arg3: memref<1x128xf32, #tpu.memory_space<vmem>>, %arg4: memref<128x128xbf16, #tpu.memory_space<vmem>>, %arg5: memref<1x128xf32, #tpu.memory_space<vmem>>, %arg6: memref<32x128xf32, #tpu.memory_space<vmem>>) attributes {dimension_semantics = [#tpu.dimension_semantics<parallel>], iteration_bounds = array<i64: 1>, scalar_prefetch = 0 : i64, scratch_operands = 0 : i64, tpu.core_type = #tpu.core_type<tc>, window_params = [{transform_indices = @transform_0, window_bounds = array<i64: 32, 128>}, {pipeline_mode = #tpu.pipeline_mode<synchronous>, transform_indices = @transform_1, window_bounds = array<i64: 128, 128>}, {pipeline_mode = #tpu.pipeline_mode<synchronous>, transform_indices = @transform_2, window_bounds = array<i64: 1, 128>}, {pipeline_mode = #tpu.pipeline_mode<synchronous>, transform_indices = @transform_3, window_bounds = array<i64: 128, 128>}, {pipeline_mode = #tpu.pipeline_mode<synchronous>, transform_indices = @transform_4, window_bounds = array<i64: 1, 128>}, {transform_indices = @transform_5, window_bounds = array<i64: 32, 128>}]} {
    %c0 = arith.constant 0 : index
    %c0_0 = arith.constant 0 : index
    %0 = vector.load %arg1[%c0, %c0_0] : memref<32x128xbf16, #tpu.memory_space<vmem>>, vector<32x128xbf16>
    %c0_1 = arith.constant 0 : index
    %c0_2 = arith.constant 0 : index
    %1 = vector.load %arg2[%c0_1, %c0_2] : memref<128x128xbf16, #tpu.memory_space<vmem>>, vector<128x128xbf16>
    %cst = arith.constant dense<0.000000e+00> : vector<32x128xf32>
    %2 = tpu.matmul %0, %1, %cst {dimension_numbers = #tpu.dot_dimension_numbers<[1], [0], [0], [1], [0, 0, 1, 1], [], []>} : vector<32x128xbf16>, vector<128x128xbf16>, vector<32x128xf32> -> vector<32x128xf32>
    %c0_3 = arith.constant 0 : index
    %c0_4 = arith.constant 0 : index
    %3 = vector.load %arg3[%c0_3, %c0_4] : memref<1x128xf32, #tpu.memory_space<vmem>>, vector<1x128xf32>
    %4 = vector.broadcast %3 : vector<1x128xf32> to vector<32x128xf32>
    %5 = arith.addf %2, %4 : vector<32x128xf32>
    %6 = arith.extf %0 : vector<32x128xbf16> to vector<32x128xf32>
    %7 = arith.addf %5, %6 : vector<32x128xf32>
    %8 = arith.truncf %7 : vector<32x128xf32> to vector<32x128xbf16>
    %c0_5 = arith.constant 0 : index
    %c0_6 = arith.constant 0 : index
    %9 = vector.load %arg4[%c0_5, %c0_6] : memref<128x128xbf16, #tpu.memory_space<vmem>>, vector<128x128xbf16>
    %cst_7 = arith.constant dense<0.000000e+00> : vector<32x128xf32>
    %10 = tpu.matmul %8, %9, %cst_7 {dimension_numbers = #tpu.dot_dimension_numbers<[1], [0], [0], [1], [0, 0, 1, 1], [], []>} : vector<32x128xbf16>, vector<128x128xbf16>, vector<32x128xf32> -> vector<32x128xf32>
    %c0_8 = arith.constant 0 : index
    %c0_9 = arith.constant 0 : index
    %11 = vector.load %arg5[%c0_8, %c0_9] : memref<1x128xf32, #tpu.memory_space<vmem>>, vector<1x128xf32>
    %12 = vector.broadcast %11 : vector<1x128xf32> to vector<32x128xf32>
    %13 = arith.addf %10, %12 : vector<32x128xf32>
    %c0_10 = arith.constant 0 : index
    %c0_11 = arith.constant 0 : index
    %14 = vector.load %arg6[%c0_10, %c0_11] : memref<32x128xf32, #tpu.memory_space<vmem>>, vector<32x128xf32>
    tpu.vector_store %arg6[%c0_10, %c0_11], %13 {strides = array<i32>} : memref<32x128xf32, #tpu.memory_space<vmem>>, vector<32x128xf32>,
    return
  }
  func.func @transform_0(%arg0: i32) -> (i32, i32) {
    %c0_i32 = arith.constant 0 : i32
    %c0_i32_0 = arith.constant 0 : i32
    return %arg0, %c0_i32 : i32, i32
  }
  func.func @transform_1(%arg0: i32) -> (i32, i32) {
    %c0_i32 = arith.constant 0 : i32
    %c0_i32_0 = arith.constant 0 : i32
    %c0_i32_1 = arith.constant 0 : i32
    return %c0_i32, %c0_i32_0 : i32, i32
  }
  func.func @transform_2(%arg0: i32) -> (i32, i32) {
    %c0_i32 = arith.constant 0 : i32
    %c0_i32_0 = arith.constant 0 : i32
    %c0_i32_1 = arith.constant 0 : i32
    return %c0_i32, %c0_i32_0 : i32, i32
  }
  func.func @transform_3(%arg0: i32) -> (i32, i32) {
    %c0_i32 = arith.constant 0 : i32
    %c0_i32_0 = arith.constant 0 : i32
    %c0_i32_1 = arith.constant 0 : i32
    return %c0_i32, %c0_i32_0 : i32, i32
  }
  func.func @transform_4(%arg0: i32) -> (i32, i32) {
    %c0_i32 = arith.constant 0 : i32
    %c0_i32_0 = arith.constant 0 : i32
    %c0_i32_1 = arith.constant 0 : i32
    return %c0_i32, %c0_i32_0 : i32, i32
  }
  func.func @transform_5(%arg0: i32) -> (i32, i32) {
    %c0_i32 = arith.constant 0 : i32
    %c0_i32_0 = arith.constant 0 : i32
    return %arg0, %c0_i32 : i32, i32
  }
}

module attributes {stable_mosaic.version = 11 : i64} {
  func.func @_fused_1x1_kernel(%arg0: i32, %arg1: memref<32x128xbf16, #tpu.memory_space<vmem>>, %arg2: memref<128x128xbf16, #tpu.memory_space<vmem>>, %arg3: memref<1x128xf32, #tpu.memory_space<vmem>>, %arg4: memref<128x128xbf16, #tpu.memory_space<vmem>>, %arg5: memref<1x128xf32, #tpu.memory_space<vmem>>, %arg6: memref<32x128xbf16, #tpu.memory_space<vmem>>) attributes {dimension_semantics = [#tpu.dimension_semantics<parallel>], iteration_bounds = array<i64: 1>, scalar_prefetch = 0 : i64, scratch_operands = 0 : i64, tpu.core_type = #tpu.core_type<tc>, window_params = [{transform_indices = @transform_0, window_bounds = array<i64: 32, 128>}, {pipeline_mode = #tpu.pipeline_mode<synchronous>, transform_indices = @transform_1, window_bounds = array<i64: 128, 128>}, {pipeline_mode = #tpu.pipeline_mode<synchronous>, transform_indices = @transform_2, window_bounds = array<i64: 1, 128>}, {pipeline_mode = #tpu.pipeline_mode<synchronous>, transform_indices = @transform_3, window_bounds = array<i64: 128, 128>}, {pipeline_mode = #tpu.pipeline_mode<synchronous>, transform_indices = @transform_4, window_bounds = array<i64: 1, 128>}, {transform_indices = @transform_5, window_bounds = array<i64: 32, 128>}]} {
    %c0 = arith.constant 0 : index
    %c0_0 = arith.constant 0 : index
    %0 = vector.load %arg1[%c0, %c0_0] : memref<32x128xbf16, #tpu.memory_space<vmem>>, vector<32x128xbf16>
    %c0_1 = arith.constant 0 : index
    %c0_2 = arith.constant 0 : index
    %1 = vector.load %arg2[%c0_1, %c0_2] : memref<128x128xbf16, #tpu.memory_space<vmem>>, vector<128x128xbf16>
    %cst = arith.constant dense<0.000000e+00> : vector<32x128xf32>
    %2 = tpu.matmul %0, %1, %cst {dimension_numbers = #tpu.dot_dimension_numbers<[1], [0], [0], [1], [0, 0, 1, 1], [], []>} : vector<32x128xbf16>, vector<128x128xbf16>, vector<32x128xf32> -> vector<32x128xf32>
    %c0_3 = arith.constant 0 : index
    %c0_4 = arith.constant 0 : index
    %3 = vector.load %arg3[%c0_3, %c0_4] : memref<1x128xf32, #tpu.memory_space<vmem>>, vector<1x128xf32>
    %4 = vector.broadcast %3 : vector<1x128xf32> to vector<32x128xf32>
    %5 = arith.addf %2, %4 : vector<32x128xf32>
    %6 = arith.truncf %5 : vector<32x128xf32> to vector<32x128xbf16>
    %c0_5 = arith.constant 0 : index
    %c0_6 = arith.constant 0 : index
    %7 = vector.load %arg4[%c0_5, %c0_6] : memref<128x128xbf16, #tpu.memory_space<vmem>>, vector<128x128xbf16>
    %cst_7 = arith.constant dense<0.000000e+00> : vector<32x128xf32>
    %8 = tpu.matmul %6, %7, %cst_7 {dimension_numbers = #tpu.dot_dimension_numbers<[1], [0], [0], [1], [0, 0, 1, 1], [], []>} : vector<32x128xbf16>, vector<128x128xbf16>, vector<32x128xf32> -> vector<32x128xf32>
    %c0_8 = arith.constant 0 : index
    %c0_9 = arith.constant 0 : index
    %9 = vector.load %arg5[%c0_8, %c0_9] : memref<1x128xf32, #tpu.memory_space<vmem>>, vector<1x128xf32>
    %10 = vector.broadcast %9 : vector<1x128xf32> to vector<32x128xf32>
    %11 = arith.addf %8, %10 : vector<32x128xf32>
    %12 = arith.addf %11, %5 : vector<32x128xf32>
    %cst_10 = arith.constant 0.000000e+00 : f32
    %13 = vector.broadcast %cst_10 : f32 to vector<32x128xf32>
    %14 = arith.maximumf %12, %13 : vector<32x128xf32>
    %15 = arith.truncf %14 : vector<32x128xf32> to vector<32x128xbf16>
    %c0_11 = arith.constant 0 : index
    %c0_12 = arith.constant 0 : index
    %16 = vector.load %arg6[%c0_11, %c0_12] : memref<32x128xbf16, #tpu.memory_space<vmem>>, vector<32x128xbf16>
    tpu.vector_store %arg6[%c0_11, %c0_12], %15 {strides = array<i32>} : memref<32x128xbf16, #tpu.memory_space<vmem>>, vector<32x128xbf16>,
    return
  }
  func.func @transform_0(%arg0: i32) -> (i32, i32) {
    %c0_i32 = arith.constant 0 : i32
    %c0_i32_0 = arith.constant 0 : i32
    return %arg0, %c0_i32 : i32, i32
  }
  func.func @transform_1(%arg0: i32) -> (i32, i32) {
    %c0_i32 = arith.constant 0 : i32
    %c0_i32_0 = arith.constant 0 : i32
    %c0_i32_1 = arith.constant 0 : i32
    return %c0_i32, %c0_i32_0 : i32, i32
  }
  func.func @transform_2(%arg0: i32) -> (i32, i32) {
    %c0_i32 = arith.constant 0 : i32
    %c0_i32_0 = arith.constant 0 : i32
    %c0_i32_1 = arith.constant 0 : i32
    return %c0_i32, %c0_i32_0 : i32, i32
  }
  func.func @transform_3(%arg0: i32) -> (i32, i32) {
    %c0_i32 = arith.constant 0 : i32
    %c0_i32_0 = arith.constant 0 : i32
    %c0_i32_1 = arith.constant 0 : i32
    return %c0_i32, %c0_i32_0 : i32, i32
  }
  func.func @transform_4(%arg0: i32) -> (i32, i32) {
    %c0_i32 = arith.constant 0 : i32
    %c0_i32_0 = arith.constant 0 : i32
    %c0_i32_1 = arith.constant 0 : i32
    return %c0_i32, %c0_i32_0 : i32, i32
  }
  func.func @transform_5(%arg0: i32) -> (i32, i32) {
    %c0_i32 = arith.constant 0 : i32
    %c0_i32_0 = arith.constant 0 : i32
    return %arg0, %c0_i32 : i32, i32
  }
}

module attributes {stable_mosaic.version = 11 : i64} {
  func.func @_vq_kernel(%arg0: i32, %arg1: memref<32x128xf32, #tpu.memory_space<vmem>>, %arg2: memref<128x128xbf16, #tpu.memory_space<vmem>>, %arg3: memref<128x128xf32, #tpu.memory_space<vmem>>, %arg4: memref<1x128xf32, #tpu.memory_space<vmem>>, %arg5: memref<32x128xf32, #tpu.memory_space<vmem>>, %arg6: memref<32x1xf32, #tpu.memory_space<vmem>>, %arg7: memref<32x1xf32, #tpu.memory_space<vmem>>) attributes {dimension_semantics = [#tpu.dimension_semantics<parallel>], iteration_bounds = array<i64: 1>, scalar_prefetch = 0 : i64, scratch_operands = 0 : i64, tpu.core_type = #tpu.core_type<tc>, window_params = [{transform_indices = @transform_0, window_bounds = array<i64: 32, 128>}, {pipeline_mode = #tpu.pipeline_mode<synchronous>, transform_indices = @transform_1, window_bounds = array<i64: 128, 128>}, {pipeline_mode = #tpu.pipeline_mode<synchronous>, transform_indices = @transform_2, window_bounds = array<i64: 128, 128>}, {pipeline_mode = #tpu.pipeline_mode<synchronous>, transform_indices = @transform_3, window_bounds = array<i64: 1, 128>}, {transform_indices = @transform_4, window_bounds = array<i64: 32, 128>}, {transform_indices = @transform_5, window_bounds = array<i64: 32, 1>}, {transform_indices = @transform_6, window_bounds = array<i64: 32, 1>}]} {
    %c0 = arith.constant 0 : index
    %c0_0 = arith.constant 0 : index
    %0 = vector.load %arg1[%c0, %c0_0] : memref<32x128xf32, #tpu.memory_space<vmem>>, vector<32x128xf32>
    %1 = arith.truncf %0 : vector<32x128xf32> to vector<32x128xbf16>
    %c0_1 = arith.constant 0 : index
    %c0_2 = arith.constant 0 : index
    %2 = vector.load %arg2[%c0_1, %c0_2] : memref<128x128xbf16, #tpu.memory_space<vmem>>, vector<128x128xbf16>
    %cst = arith.constant dense<0.000000e+00> : vector<32x128xf32>
    %3 = tpu.matmul %1, %2, %cst {dimension_numbers = #tpu.dot_dimension_numbers<[1], [0], [0], [1], [0, 0, 1, 1], [], []>} : vector<32x128xbf16>, vector<128x128xbf16>, vector<32x128xf32> -> vector<32x128xf32>
    %c0_3 = arith.constant 0 : index
    %c0_4 = arith.constant 0 : index
    %4 = vector.load %arg4[%c0_3, %c0_4] : memref<1x128xf32, #tpu.memory_space<vmem>>, vector<1x128xf32>
    %cst_5 = arith.constant 2.000000e+00 : f32
    %5 = vector.broadcast %cst_5 : f32 to vector<32x128xf32>
    %6 = arith.mulf %5, %3 : vector<32x128xf32>
    %7 = vector.broadcast %4 : vector<1x128xf32> to vector<32x128xf32>
    %8 = arith.subf %7, %6 : vector<32x128xf32>
    %9 = tpu.iota {dimensions = array<i32: 1>} : vector<32x128xi32>
    %c32_i32 = arith.constant 32 : i32
    %10 = vector.broadcast %c32_i32 : i32 to vector<32x128xi32>
    %11 = arith.cmpi slt, %9, %10 : vector<32x128xi32>
    %cst_6 = arith.constant 1.000000e+30 : f32
    %12 = vector.broadcast %cst_6 : f32 to vector<32x128xf32>
    %13 = arith.select %11, %8, %12 : vector<32x128xi1>, vector<32x128xf32>
    %cst_7 = arith.constant dense<0x7F800000> : vector<32xf32>
    %14 = vector.multi_reduction <minimumf>, %13, %cst_7 [1] : vector<32x128xf32> to vector<32xf32>
    %15 = vector.shape_cast %14 : vector<32xf32> to vector<32x1xf32>
    %16 = arith.sitofp %9 : vector<32x128xi32> to vector<32x128xf32>
    %17 = vector.broadcast %15 : vector<32x1xf32> to vector<32x128xf32>
    %18 = arith.cmpf ole, %13, %17 : vector<32x128xf32>
    %cst_8 = arith.constant 1.280000e+02 : f32
    %19 = vector.broadcast %cst_8 : f32 to vector<32x128xf32>
    %20 = arith.select %18, %16, %19 : vector<32x128xi1>, vector<32x128xf32>
    %cst_9 = arith.constant dense<0x7F800000> : vector<32xf32>
    %21 = vector.multi_reduction <minimumf>, %20, %cst_9 [1] : vector<32x128xf32> to vector<32xf32>
    %22 = vector.shape_cast %21 : vector<32xf32> to vector<32x1xf32>
    %23 = vector.broadcast %22 : vector<32x1xf32> to vector<32x128xf32>
    %24 = arith.cmpf oeq, %16, %23 : vector<32x128xf32>
    %25 = arith.extui %24 : vector<32x128xi1> to vector<32x128xi32>
    %26 = arith.sitofp %25 : vector<32x128xi32> to vector<32x128xf32>
    %c0_10 = arith.constant 0 : index
    %c0_11 = arith.constant 0 : index
    %27 = vector.load %arg3[%c0_10, %c0_11] : memref<128x128xf32, #tpu.memory_space<vmem>>, vector<128x128xf32>
    %cst_12 = arith.constant dense<0.000000e+00> : vector<32x128xf32>
    %28 = tpu.matmul %26, %27, %cst_12 {dimension_numbers = #tpu.dot_dimension_numbers<[1], [0], [0], [1], [0, 0, 1, 1], [], []>} : vector<32x128xf32>, vector<128x128xf32>, vector<32x128xf32> -> vector<32x128xf32>
    %c0_13 = arith.constant 0 : index
    %c0_14 = arith.constant 0 : index
    %29 = vector.load %arg5[%c0_13, %c0_14] : memref<32x128xf32, #tpu.memory_space<vmem>>, vector<32x128xf32>
    tpu.vector_store %arg5[%c0_13, %c0_14], %28 {strides = array<i32>} : memref<32x128xf32, #tpu.memory_space<vmem>>, vector<32x128xf32>,
    %c0_15 = arith.constant 0 : index
    %c0_16 = arith.constant 0 : index
    %30 = vector.load %arg6[%c0_15, %c0_16] : memref<32x1xf32, #tpu.memory_space<vmem>>, vector<32x1xf32>
    tpu.vector_store %arg6[%c0_15, %c0_16], %22 {strides = array<i32>} : memref<32x1xf32, #tpu.memory_space<vmem>>, vector<32x1xf32>,
    %31 = arith.subf %28, %0 : vector<32x128xf32>
    %32 = arith.mulf %31, %31 : vector<32x128xf32>
    %cst_17 = arith.constant dense<0.000000e+00> : vector<32xf32>
    %33 = vector.multi_reduction <add>, %32, %cst_17 [1] : vector<32x128xf32> to vector<32xf32>
    %34 = vector.shape_cast %33 : vector<32xf32> to vector<32x1xf32>
    %c0_18 = arith.constant 0 : index
    %c0_19 = arith.constant 0 : index
    %35 = vector.load %arg7[%c0_18, %c0_19] : memref<32x1xf32, #tpu.memory_space<vmem>>, vector<32x1xf32>
    tpu.vector_store %arg7[%c0_18, %c0_19], %34 {strides = array<i32>} : memref<32x1xf32, #tpu.memory_space<vmem>>, vector<32x1xf32>,
    return
  }
  func.func @transform_0(%arg0: i32) -> (i32, i32) {
    %c0_i32 = arith.constant 0 : i32
    %c0_i32_0 = arith.constant 0 : i32
    return %arg0, %c0_i32 : i32, i32
  }
  func.func @transform_1(%arg0: i32) -> (i32, i32) {
    %c0_i32 = arith.constant 0 : i32
    %c0_i32_0 = arith.constant 0 : i32
    %c0_i32_1 = arith.constant 0 : i32
    return %c0_i32, %c0_i32_0 : i32, i32
  }
  func.func @transform_2(%arg0: i32) -> (i32, i32) {
    %c0_i32 = arith.constant 0 : i32
    %c0_i32_0 = arith.constant 0 : i32
    %c0_i32_1 = arith.constant 0 : i32
    return %c0_i32, %c0_i32_0 : i32, i32
  }
  func.func @transform_3(%arg0: i32) -> (i32, i32) {
    %c0_i32 = arith.constant 0 : i32
    %c0_i32_0 = arith.constant 0 : i32
    %c0_i32_1 = arith.constant 0 : i32
    return %c0_i32, %c0_i32_0 : i32, i32
  }
  func.func @transform_4(%arg0: i32) -> (i32, i32) {
    %c0_i32 = arith.constant 0 : i32
    %c0_i32_0 = arith.constant 0 : i32
    return %arg0, %c0_i32 : i32, i32
  }
  func.func @transform_5(%arg0: i32) -> (i32, i32) {
    %c0_i32 = arith.constant 0 : i32
    %c0_i32_0 = arith.constant 0 : i32
    return %arg0, %c0_i32 : i32, i32
  }
  func.func @transform_6(%arg0: i32) -> (i32, i32) {
    %c0_i32 = arith.constant 0 : i32
    %c0_i32_0 = arith.constant 0 : i32
    return %arg0, %c0_i32 : i32, i32
  }
}

module attributes {stable_mosaic.version = 11 : i64} {
  func.func @_mm_kernel(%arg0: i32, %arg1: i32, %arg2: i32, %arg3: memref<32x128xbf16, #tpu.memory_space<vmem>>, %arg4: memref<128x128xbf16, #tpu.memory_space<vmem>>, %arg5: memref<1x128xf32, #tpu.memory_space<vmem>>, %arg6: memref<32x128xbf16, #tpu.memory_space<vmem>>, %arg7: memref<32x128xf32, #tpu.memory_space<vmem>>) attributes {dimension_semantics = [#tpu.dimension_semantics<parallel>, #tpu.dimension_semantics<parallel>, #tpu.dimension_semantics<arbitrary>], iteration_bounds = array<i64: 1, 1, 1>, scalar_prefetch = 0 : i64, scratch_operands = 1 : i64, tpu.core_type = #tpu.core_type<tc>, window_params = [{transform_indices = @transform_0, window_bounds = array<i64: 32, 128>}, {transform_indices = @transform_1, window_bounds = array<i64: 128, 128>}, {transform_indices = @transform_2, window_bounds = array<i64: 1, 128>}, {transform_indices = @transform_3, window_bounds = array<i64: 32, 128>}]} {
    %c0_i32 = arith.constant 0 : i32
    %0 = arith.cmpi eq, %arg2, %c0_i32 : i32
    %1 = arith.extui %0 : i1 to i32
    %c0_i32_0 = arith.constant 0 : i32
    %2 = arith.cmpi ne, %1, %c0_i32_0 : i32
    scf.if %2 {
      %cst_10 = arith.constant 0.000000e+00 : f32
      %12 = vector.broadcast %cst_10 : f32 to vector<32x128xf32>
      %c0_11 = arith.constant 0 : index
      %c0_12 = arith.constant 0 : index
      %13 = vector.load %arg7[%c0_11, %c0_12] : memref<32x128xf32, #tpu.memory_space<vmem>>, vector<32x128xf32>
      tpu.vector_store %arg7[%c0_11, %c0_12], %12 {strides = array<i32>} : memref<32x128xf32, #tpu.memory_space<vmem>>, vector<32x128xf32>,
    } else {
    }
    %c0 = arith.constant 0 : index
    %c0_1 = arith.constant 0 : index
    %3 = vector.load %arg7[%c0, %c0_1] : memref<32x128xf32, #tpu.memory_space<vmem>>, vector<32x128xf32>
    %c0_2 = arith.constant 0 : index
    %c0_3 = arith.constant 0 : index
    %4 = vector.load %arg3[%c0_2, %c0_3] : memref<32x128xbf16, #tpu.memory_space<vmem>>, vector<32x128xbf16>
    %c0_4 = arith.constant 0 : index
    %c0_5 = arith.constant 0 : index
    %5 = vector.load %arg4[%c0_4, %c0_5] : memref<128x128xbf16, #tpu.memory_space<vmem>>, vector<128x128xbf16>
    %cst = arith.constant dense<0.000000e+00> : vector<32x128xf32>
    %6 = tpu.matmul %4, %5, %cst {dimension_numbers = #tpu.dot_dimension_numbers<[1], [0], [0], [1], [0, 0, 1, 1], [], []>} : vector<32x128xbf16>, vector<128x128xbf16>, vector<32x128xf32> -> vector<32x128xf32>
    %7 = arith.addf %3, %6 : vector<32x128xf32>
    %c0_6 = arith.constant 0 : index
    %c0_7 = arith.constant 0 : index
    %8 = vector.load %arg7[%c0_6, %c0_7] : memref<32x128xf32, #tpu.memory_space<vmem>>, vector<32x128xf32>
    tpu.vector_store %arg7[%c0_6, %c0_7], %7 {strides = array<i32>} : memref<32x128xf32, #tpu.memory_space<vmem>>, vector<32x128xf32>,
    %c0_i32_8 = arith.constant 0 : i32
    %9 = arith.cmpi eq, %arg2, %c0_i32_8 : i32
    %10 = arith.extui %9 : i1 to i32
    %c0_i32_9 = arith.constant 0 : i32
    %11 = arith.cmpi ne, %10, %c0_i32_9 : i32
    scf.if %11 {
      %c0_10 = arith.constant 0 : index
      %c0_11 = arith.constant 0 : index
      %12 = vector.load %arg7[%c0_10, %c0_11] : memref<32x128xf32, #tpu.memory_space<vmem>>, vector<32x128xf32>
      %c0_12 = arith.constant 0 : index
      %c0_13 = arith.constant 0 : index
      %13 = vector.load %arg5[%c0_12, %c0_13] : memref<1x128xf32, #tpu.memory_space<vmem>>, vector<1x128xf32>
      %14 = vector.broadcast %13 : vector<1x128xf32> to vector<32x128xf32>
      %15 = arith.addf %12, %14 : vector<32x128xf32>
      %16 = arith.truncf %15 : vector<32x128xf32> to vector<32x128xbf16>
      %c0_14 = arith.constant 0 : index
      %c0_15 = arith.constant 0 : index
      %17 = vector.load %arg6[%c0_14, %c0_15] : memref<32x128xbf16, #tpu.memory_space<vmem>>, vector<32x128xbf16>
      tpu.vector_store %arg6[%c0_14, %c0_15], %16 {strides = array<i32>} : memref<32x128xbf16, #tpu.memory_space<vmem>>, vector<32x128xbf16>,
    } else {
    }
    return
  }
  func.func @transform_0(%arg0: i32, %arg1: i32, %arg2: i32) -> (i32, i32) {
    %c0_i32 = arith.constant 0 : i32
    return %arg0, %arg2 : i32, i32
  }
  func.func @transform_1(%arg0: i32, %arg1: i32, %arg2: i32) -> (i32, i32) {
    %c0_i32 = arith.constant 0 : i32
    return %arg2, %arg1 : i32, i32
  }
  func.func @transform_2(%arg0: i32, %arg1: i32, %arg2: i32) -> (i32, i32) {
    %c0_i32 = arith.constant 0 : i32
    %c0_i32_0 = arith.constant 0 : i32
    return %c0_i32, %arg1 : i32, i32
  }
  func.func @transform_3(%arg0: i32, %arg1: i32, %arg2: i32) -> (i32, i32) {
    %c0_i32 = arith.constant 0 : i32
    return %arg0, %arg1 : i32, i32
  }
}

module attributes {stable_mosaic.version = 11 : i64} {
  func.func @_mm_kernel(%arg0: i32, %arg1: i32, %arg2: i32, %arg3: memref<128x128xbf16, #tpu.memory_space<vmem>>, %arg4: memref<128x128xbf16, #tpu.memory_space<vmem>>, %arg5: memref<1x128xf32, #tpu.memory_space<vmem>>, %arg6: memref<128x128xf32, #tpu.memory_space<vmem>>, %arg7: memref<128x128xf32, #tpu.memory_space<vmem>>) attributes {dimension_semantics = [#tpu.dimension_semantics<parallel>, #tpu.dimension_semantics<parallel>, #tpu.dimension_semantics<arbitrary>], iteration_bounds = array<i64: 1, 1, 1>, scalar_prefetch = 0 : i64, scratch_operands = 1 : i64, tpu.core_type = #tpu.core_type<tc>, window_params = [{transform_indices = @transform_0, window_bounds = array<i64: 128, 128>}, {transform_indices = @transform_1, window_bounds = array<i64: 128, 128>}, {transform_indices = @transform_2, window_bounds = array<i64: 1, 128>}, {transform_indices = @transform_3, window_bounds = array<i64: 128, 128>}]} {
    %c0_i32 = arith.constant 0 : i32
    %0 = arith.cmpi eq, %arg2, %c0_i32 : i32
    %1 = arith.extui %0 : i1 to i32
    %c0_i32_0 = arith.constant 0 : i32
    %2 = arith.cmpi ne, %1, %c0_i32_0 : i32
    scf.if %2 {
      %cst_10 = arith.constant 0.000000e+00 : f32
      %12 = vector.broadcast %cst_10 : f32 to vector<128x128xf32>
      %c0_11 = arith.constant 0 : index
      %c0_12 = arith.constant 0 : index
      %13 = vector.load %arg7[%c0_11, %c0_12] : memref<128x128xf32, #tpu.memory_space<vmem>>, vector<128x128xf32>
      tpu.vector_store %arg7[%c0_11, %c0_12], %12 {strides = array<i32>} : memref<128x128xf32, #tpu.memory_space<vmem>>, vector<128x128xf32>,
    } else {
    }
    %c0 = arith.constant 0 : index
    %c0_1 = arith.constant 0 : index
    %3 = vector.load %arg7[%c0, %c0_1] : memref<128x128xf32, #tpu.memory_space<vmem>>, vector<128x128xf32>
    %c0_2 = arith.constant 0 : index
    %c0_3 = arith.constant 0 : index
    %4 = vector.load %arg3[%c0_2, %c0_3] : memref<128x128xbf16, #tpu.memory_space<vmem>>, vector<128x128xbf16>
    %c0_4 = arith.constant 0 : index
    %c0_5 = arith.constant 0 : index
    %5 = vector.load %arg4[%c0_4, %c0_5] : memref<128x128xbf16, #tpu.memory_space<vmem>>, vector<128x128xbf16>
    %cst = arith.constant dense<0.000000e+00> : vector<128x128xf32>
    %6 = tpu.matmul %4, %5, %cst {dimension_numbers = #tpu.dot_dimension_numbers<[1], [0], [0], [1], [0, 0, 1, 1], [], []>} : vector<128x128xbf16>, vector<128x128xbf16>, vector<128x128xf32> -> vector<128x128xf32>
    %7 = arith.addf %3, %6 : vector<128x128xf32>
    %c0_6 = arith.constant 0 : index
    %c0_7 = arith.constant 0 : index
    %8 = vector.load %arg7[%c0_6, %c0_7] : memref<128x128xf32, #tpu.memory_space<vmem>>, vector<128x128xf32>
    tpu.vector_store %arg7[%c0_6, %c0_7], %7 {strides = array<i32>} : memref<128x128xf32, #tpu.memory_space<vmem>>, vector<128x128xf32>,
    %c0_i32_8 = arith.constant 0 : i32
    %9 = arith.cmpi eq, %arg2, %c0_i32_8 : i32
    %10 = arith.extui %9 : i1 to i32
    %c0_i32_9 = arith.constant 0 : i32
    %11 = arith.cmpi ne, %10, %c0_i32_9 : i32
    scf.if %11 {
      %c0_10 = arith.constant 0 : index
      %c0_11 = arith.constant 0 : index
      %12 = vector.load %arg7[%c0_10, %c0_11] : memref<128x128xf32, #tpu.memory_space<vmem>>, vector<128x128xf32>
      %c0_12 = arith.constant 0 : index
      %c0_13 = arith.constant 0 : index
      %13 = vector.load %arg5[%c0_12, %c0_13] : memref<1x128xf32, #tpu.memory_space<vmem>>, vector<1x128xf32>
      %14 = vector.broadcast %13 : vector<1x128xf32> to vector<128x128xf32>
      %15 = arith.addf %12, %14 : vector<128x128xf32>
      %c0_14 = arith.constant 0 : index
      %c0_15 = arith.constant 0 : index
      %16 = vector.load %arg6[%c0_14, %c0_15] : memref<128x128xf32, #tpu.memory_space<vmem>>, vector<128x128xf32>
      tpu.vector_store %arg6[%c0_14, %c0_15], %15 {strides = array<i32>} : memref<128x128xf32, #tpu.memory_space<vmem>>, vector<128x128xf32>,
    } else {
    }
    return
  }
  func.func @transform_0(%arg0: i32, %arg1: i32, %arg2: i32) -> (i32, i32) {
    %c0_i32 = arith.constant 0 : i32
    return %arg0, %arg2 : i32, i32
  }
  func.func @transform_1(%arg0: i32, %arg1: i32, %arg2: i32) -> (i32, i32) {
    %c0_i32 = arith.constant 0 : i32
    return %arg2, %arg1 : i32, i32
  }
  func.func @transform_2(%arg0: i32, %arg1: i32, %arg2: i32) -> (i32, i32) {
    %c0_i32 = arith.constant 0 : i32
    %c0_i32_0 = arith.constant 0 : i32
    return %c0_i32, %arg1 : i32, i32
  }
  func.func @transform_3(%arg0: i32, %arg1: i32, %arg2: i32) -> (i32, i32) {
    %c0_i32 = arith.constant 0 : i32
    return %arg0, %arg1 : i32, i32
  }
}

</mosaic_0001>

<llo_original>
// kernel: model_forward.9
$region0: #{model_forward.9}
  #allocation0 [shape = 'u32[]', space=smem, size = 0x4, offset = 0x4, fixed_abs, tag = 'smem constant byte address 0x4 - core index']
  #allocation1 [shape = 'u32[72,128]{1,0:T(1,128)}', space=vmem, size = 0x9000, scoped, tag = 'internal scratch']
  #allocation2 [shape = 'f32[128,128]{1,0:T(8,128)}', space=vmem, size = 0x10000, scoped, tag = 'scratch operand']
  %s0 = inlined_call_operand.vmem [shape: bf16[128,128], index: 0, kind: input, shape index: {}]
  %s1 = inlined_call_operand.vmem [shape: bf16[128,128], index: 1, kind: input, shape index: {}]
  %s2 = inlined_call_operand.vmem [shape: f32[1,128], index: 2, kind: input, shape index: {}]
  %s3 = inlined_call_operand.vmem [shape: bf16[128,128], index: 3, kind: output, shape index: {}]
  %s4 = sld [smem:[#allocation0]]
  $region30: #{model_forward.9} parent=0
    _
  %s6 = ssub.s32 1, %s4
  %s7 = scalar_select 0, %s6, %s4
  // Predicated region
  $region2: #{model_forward.9} parent=0 // pred_check
    _
  $region3: #{model_forward.9} parent=0 // pred_check_branch
    %9 = sbr.rel (0) target = $region5
  $region4: #{model_forward.9} parent=0 // pred_region
    _
  $region5: #{model_forward.9} parent=0 // pred_fallthru
    _
  // Predicated region
  $region6: #{model_forward.9} parent=0 // pred_check
    _
  $region7: #{model_forward.9} parent=0 // pred_check_branch
    %11 = sbr.rel (0) target = $region9
  $region8: #{model_forward.9} parent=0 // pred_region
    _
  $region9: #{model_forward.9} parent=0 // pred_fallthru
    _
  // Predicated region
  $region10: #{model_forward.9} parent=0 // pred_check
    _
  $region11: #{model_forward.9} parent=0 // pred_check_branch
    %13 = sbr.rel (0) target = $region13
  $region12: #{model_forward.9} parent=0 // pred_region
    _
  $region13: #{model_forward.9} parent=0 // pred_fallthru
    _
  %p14 = scmp.eq.s32.totalorder 0, 0
  // Predicated region
  $region14: #{model_forward.9} parent=0 // pred_check
    %p15 = pneg %p14
  $region15: #{model_forward.9} parent=0 // pred_check_branch
    %17 = sbr.rel (%p15) target = $region17
  $region16: #{model_forward.9} parent=0 // pred_region
    %18 = vst [vmem:[#allocation2] sm:$0xff] 0.0
    %19 = vst [vmem:[#allocation2 + $0x8] sm:$0xff] 0.0
    %20 = vst [vmem:[#allocation2 + $0x10] sm:$0xff] 0.0
    %21 = vst [vmem:[#allocation2 + $0x18] sm:$0xff] 0.0
    %22 = vst [vmem:[#allocation2 + $0x20] sm:$0xff] 0.0
    %23 = vst [vmem:[#allocation2 + $0x28] sm:$0xff] 0.0
    %24 = vst [vmem:[#allocation2 + $0x30] sm:$0xff] 0.0
    %25 = vst [vmem:[#allocation2 + $0x38] sm:$0xff] 0.0
    %26 = vst [vmem:[#allocation2 + $0x40] sm:$0xff] 0.0
    %27 = vst [vmem:[#allocation2 + $0x48] sm:$0xff] 0.0
    %28 = vst [vmem:[#allocation2 + $0x50] sm:$0xff] 0.0
    %29 = vst [vmem:[#allocation2 + $0x58] sm:$0xff] 0.0
    %30 = vst [vmem:[#allocation2 + $0x60] sm:$0xff] 0.0
    %31 = vst [vmem:[#allocation2 + $0x68] sm:$0xff] 0.0
    %32 = vst [vmem:[#allocation2 + $0x70] sm:$0xff] 0.0
    %33 = vst [vmem:[#allocation2 + $0x78] sm:$0xff] 0.0
  $region17: #{model_forward.9} parent=0 // pred_fallthru
    _
  %v34 = vld [vmem:[#allocation2] sm:$0xff]
  %v35 = vld [vmem:[#allocation2 + $0x8] sm:$0xff]
  %v36 = vld [vmem:[#allocation2 + $0x10] sm:$0xff]
  %v37 = vld [vmem:[#allocation2 + $0x18] sm:$0xff]
  %v38 = vld [vmem:[#allocation2 + $0x20] sm:$0xff]
  %v39 = vld [vmem:[#allocation2 + $0x28] sm:$0xff]
  %v40 = vld [vmem:[#allocation2 + $0x30] sm:$0xff]
  %v41 = vld [vmem:[#allocation2 + $0x38] sm:$0xff]
  %v42 = vld [vmem:[#allocation2 + $0x40] sm:$0xff]
  %v43 = vld [vmem:[#allocation2 + $0x48] sm:$0xff]
  %v44 = vld [vmem:[#allocation2 + $0x50] sm:$0xff]
  %v45 = vld [vmem:[#allocation2 + $0x58] sm:$0xff]
  %v46 = vld [vmem:[#allocation2 + $0x60] sm:$0xff]
  %v47 = vld [vmem:[#allocation2 + $0x68] sm:$0xff]
  %v48 = vld [vmem:[#allocation2 + $0x70] sm:$0xff]
  %v49 = vld [vmem:[#allocation2 + $0x78] sm:$0xff]
  %v50 = vld [vmem:[%s0] sm:$0xf]
  %v51 = vld [vmem:[%s0 + $0x4] sm:$0xf]
  %v52 = vld [vmem:[%s0 + $0x8] sm:$0xf]
  %v53 = vld [vmem:[%s0 + $0xc] sm:$0xf]
  %v54 = vld [vmem:[%s0 + $0x10] sm:$0xf]
  %v55 = vld [vmem:[%s0 + $0x14] sm:$0xf]
  %v56 = vld [vmem:[%s0 + $0x18] sm:$0xf]
  %v57 = vld [vmem:[%s0 + $0x1c] sm:$0xf]
  %v58 = vld [vmem:[%s0 + $0x20] sm:$0xf]
  %v59 = vld [vmem:[%s0 + $0x24] sm:$0xf]
  %v60 = vld [vmem:[%s0 + $0x28] sm:$0xf]
  %v61 = vld [vmem:[%s0 + $0x2c] sm:$0xf]
  %v62 = vld [vmem:[%s0 + $0x30] sm:$0xf]
  %v63 = vld [vmem:[%s0 + $0x34] sm:$0xf]
  %v64 = vld [vmem:[%s0 + $0x38] sm:$0xf]
  %v65 = vld [vmem:[%s0 + $0x3c] sm:$0xf]
  %v66 = vld [vmem:[%s1] sm:$0xf]
  %v67 = vld [vmem:[%s1 + $0x4] sm:$0xf]
  %v68 = vld [vmem:[%s1 + $0x8] sm:$0xf]
  %v69 = vld [vmem:[%s1 + $0xc] sm:$0xf]
  %v70 = vld [vmem:[%s1 + $0x10] sm:$0xf]
  %v71 = vld [vmem:[%s1 + $0x14] sm:$0xf]
  %v72 = vld [vmem:[%s1 + $0x18] sm:$0xf]
  %v73 = vld [vmem:[%s1 + $0x1c] sm:$0xf]
  %v74 = vld [vmem:[%s1 + $0x20] sm:$0xf]
  %v75 = vld [vmem:[%s1 + $0x24] sm:$0xf]
  %v76 = vld [vmem:[%s1 + $0x28] sm:$0xf]
  %v77 = vld [vmem:[%s1 + $0x2c] sm:$0xf]
  %v78 = vld [vmem:[%s1 + $0x30] sm:$0xf]
  %v79 = vld [vmem:[%s1 + $0x34] sm:$0xf]
  %v80 = vld [vmem:[%s1 + $0x38] sm:$0xf]
  %v81 = vld [vmem:[%s1 + $0x3c] sm:$0xf]
  %v98 = vunpack.c.l.b16 %v50
  %v99 = vunpack.c.l.b16 %v51
  %v100 = vunpack.c.l.b16 %v52
  %v101 = vunpack.c.l.b16 %v53
  %v102 = vunpack.c.l.b16 %v54
  %v103 = vunpack.c.l.b16 %v55
  %v104 = vunpack.c.l.b16 %v56
  %v105 = vunpack.c.l.b16 %v57
  %v106 = vunpack.c.l.b16 %v58
  %v107 = vunpack.c.l.b16 %v59
  %v108 = vunpack.c.l.b16 %v60
  %v109 = vunpack.c.l.b16 %v61
  %v110 = vunpack.c.l.b16 %v62
  %v111 = vunpack.c.l.b16 %v63
  %v112 = vunpack.c.l.b16 %v64
  %v113 = vunpack.c.l.b16 %v65
  %v114 = vpack.c.b16 %v99, %v98
  %v115 = vpack.c.b16 %v101, %v100
  %v116 = vpack.c.b16 %v103, %v102
  %v117 = vpack.c.b16 %v105, %v104
  %v118 = vpack.c.b16 %v107, %v106
  %v119 = vpack.c.b16 %v109, %v108
  %v120 = vpack.c.b16 %v111, %v110
  %v121 = vpack.c.b16 %v113, %v112
  %v146 = vunpack.c.l.b16 %v66
  %v147 = vunpack.c.l.b16 %v67
  %v148 = vunpack.c.l.b16 %v68
  %v149 = vunpack.c.l.b16 %v69
  %v150 = vunpack.c.l.b16 %v70
  %v151 = vunpack.c.l.b16 %v71
  %v152 = vunpack.c.l.b16 %v72
  %v153 = vunpack.c.l.b16 %v73
  %v154 = vunpack.c.l.b16 %v74
  %v155 = vunpack.c.l.b16 %v75
  %v156 = vunpack.c.l.b16 %v76
  %v157 = vunpack.c.l.b16 %v77
  %v158 = vunpack.c.l.b16 %v78
  %v159 = vunpack.c.l.b16 %v79
  %v160 = vunpack.c.l.b16 %v80
  %v161 = vunpack.c.l.b16 %v81
  %v162 = vpack.c.b16 %v147, %v146
  %v163 = vpack.c.b16 %v149, %v148
  %v164 = vpack.c.b16 %v151, %v150
  %v165 = vpack.c.b16 %v153, %v152
  %v166 = vpack.c.b16 %v155, %v154
  %v167 = vpack.c.b16 %v157, %v156
  %v168 = vpack.c.b16 %v159, %v158
  %v169 = vpack.c.b16 %v161, %v160
  %178 = vmatpush.bf16.msra.mxu0 %v169
  %179 = vmatpush.bf16.msra.mxu0 %v168
  %180 = vmatpush.bf16.msra.mxu0 %v167
  %181 = vmatpush.bf16.msra.mxu0 %v166
  %182 = vmatpush.bf16.msra.mxu0 %v165
  %183 = vmatpush.bf16.msra.mxu0 %v164
  %184 = vmatpush.bf16.msra.mxu0 %v163
  %185 = vmatpush.bf16.msra.mxu0 %v162
  %186 = vmatmul.bf16.gmra.mxu0 %v114
  %v187 = vpop.f32.mrf.mxu0
  %v188 = vadd.f32 0.0, %v187
  %v189 = vpop.f32.mrf.mxu0
  %v190 = vadd.f32 0.0, %v189
  %191 = vmatmul.bf16.gmra.mxu0 %v115
  %v192 = vpop.f32.mrf.mxu0
  %v193 = vadd.f32 0.0, %v192
  %v194 = vpop.f32.mrf.mxu0
  %v195 = vadd.f32 0.0, %v194
  %196 = vmatmul.bf16.gmra.mxu0 %v116
  %v197 = vpop.f32.mrf.mxu0
  %v198 = vadd.f32 0.0, %v197
  %v199 = vpop.f32.mrf.mxu0
  %v200 = vadd.f32 0.0, %v199
  %201 = vmatmul.bf16.gmra.mxu0 %v117
  %v202 = vpop.f32.mrf.mxu0
  %v203 = vadd.f32 0.0, %v202
  %v204 = vpop.f32.mrf.mxu0
  %v205 = vadd.f32 0.0, %v204
  %206 = vmatmul.bf16.gmra.mxu0 %v118
  %v207 = vpop.f32.mrf.mxu0
  %v208 = vadd.f32 0.0, %v207
  %v209 = vpop.f32.mrf.mxu0
  %v210 = vadd.f32 0.0, %v209
  %211 = vmatmul.bf16.gmra.mxu0 %v119
  %v212 = vpop.f32.mrf.mxu0
  %v213 = vadd.f32 0.0, %v212
  %v214 = vpop.f32.mrf.mxu0
  %v215 = vadd.f32 0.0, %v214
  %216 = vmatmul.bf16.gmra.mxu0 %v120
  %v217 = vpop.f32.mrf.mxu0
  %v218 = vadd.f32 0.0, %v217
  %v219 = vpop.f32.mrf.mxu0
  %v220 = vadd.f32 0.0, %v219
  %221 = vmatmul.bf16.gmra.mxu0 %v121
  %v222 = vpop.f32.mrf.mxu0
  %v223 = vadd.f32 0.0, %v222
  %v224 = vpop.f32.mrf.mxu0
  %v225 = vadd.f32 0.0, %v224
  %226 = vdwg.mxu0
  %v227 = vadd.f32 %v34, %v188
  %v228 = vadd.f32 %v35, %v190
  %v229 = vadd.f32 %v36, %v193
  %v230 = vadd.f32 %v37, %v195
  %v231 = vadd.f32 %v38, %v198
  %v232 = vadd.f32 %v39, %v200
  %v233 = vadd.f32 %v40, %v203
  %v234 = vadd.f32 %v41, %v205
  %v235 = vadd.f32 %v42, %v208
  %v236 = vadd.f32 %v43, %v210
  %v237 = vadd.f32 %v44, %v213
  %v238 = vadd.f32 %v45, %v215
  %v239 = vadd.f32 %v46, %v218
  %v240 = vadd.f32 %v47, %v220
  %v241 = vadd.f32 %v48, %v223
  %v242 = vadd.f32 %v49, %v225
  %243 = vst [vmem:[#allocation2] sm:$0xff] %v227
  %244 = vst [vmem:[#allocation2 + $0x8] sm:$0xff] %v228
  %245 = vst [vmem:[#allocation2 + $0x10] sm:$0xff] %v229
  %246 = vst [vmem:[#allocation2 + $0x18] sm:$0xff] %v230
  %247 = vst [vmem:[#allocation2 + $0x20] sm:$0xff] %v231
  %248 = vst [vmem:[#allocation2 + $0x28] sm:$0xff] %v232
  %249 = vst [vmem:[#allocation2 + $0x30] sm:$0xff] %v233
  %250 = vst [vmem:[#allocation2 + $0x38] sm:$0xff] %v234
  %251 = vst [vmem:[#allocation2 + $0x40] sm:$0xff] %v235
  %252 = vst [vmem:[#allocation2 + $0x48] sm:$0xff] %v236
  %253 = vst [vmem:[#allocation2 + $0x50] sm:$0xff] %v237
  %254 = vst [vmem:[#allocation2 + $0x58] sm:$0xff] %v238
  %255 = vst [vmem:[#allocation2 + $0x60] sm:$0xff] %v239
  %256 = vst [vmem:[#allocation2 + $0x68] sm:$0xff] %v240
  %257 = vst [vmem:[#allocation2 + $0x70] sm:$0xff] %v241
  %258 = vst [vmem:[#allocation2 + $0x78] sm:$0xff] %v242
  // Predicated region
  $region18: #{model_forward.9} parent=0 // pred_check
    %p259 = pneg %p14
  $region19: #{model_forward.9} parent=0 // pred_check_branch
    %261 = sbr.rel (%p259) target = $region21
  $region20: #{model_forward.9} parent=0 // pred_region
    %v262 = vld [vmem:[#allocation2] sm:$0xff]
    %v263 = vld [vmem:[#allocation2 + $0x8] sm:$0xff]
    %v264 = vld [vmem:[#allocation2 + $0x10] sm:$0xff]
    %v265 = vld [vmem:[#allocation2 + $0x18] sm:$0xff]
    %v266 = vld [vmem:[#allocation2 + $0x20] sm:$0xff]
    %v267 = vld [vmem:[#allocation2 + $0x28] sm:$0xff]
    %v268 = vld [vmem:[#allocation2 + $0x30] sm:$0xff]
    %v269 = vld [vmem:[#allocation2 + $0x38] sm:$0xff]
    %v270 = vld [vmem:[#allocation2 + $0x40] sm:$0xff]
    %v271 = vld [vmem:[#allocation2 + $0x48] sm:$0xff]
    %v272 = vld [vmem:[#allocation2 + $0x50] sm:$0xff]
    %v273 = vld [vmem:[#allocation2 + $0x58] sm:$0xff]
    %v274 = vld [vmem:[#allocation2 + $0x60] sm:$0xff]
    %v275 = vld [vmem:[#allocation2 + $0x68] sm:$0xff]
    %v276 = vld [vmem:[#allocation2 + $0x70] sm:$0xff]
    %v277 = vld [vmem:[#allocation2 + $0x78] sm:$0xff]
    %v278 = vld [vmem:[%s2] sm:$0x1]
    %v280 = vperm.slane %v278, 0
    %v282 = vadd.f32 %v262, %v280
    %v283 = vadd.f32 %v263, %v280
    %v284 = vadd.f32 %v264, %v280
    %v285 = vadd.f32 %v265, %v280
    %v286 = vadd.f32 %v266, %v280
    %v287 = vadd.f32 %v267, %v280
    %v288 = vadd.f32 %v268, %v280
    %v289 = vadd.f32 %v269, %v280
    %v290 = vadd.f32 %v270, %v280
    %v291 = vadd.f32 %v271, %v280
    %v292 = vadd.f32 %v272, %v280
    %v293 = vadd.f32 %v273, %v280
    %v294 = vadd.f32 %v274, %v280
    %v295 = vadd.f32 %v275, %v280
    %v296 = vadd.f32 %v276, %v280
    %v297 = vadd.f32 %v277, %v280
    %v298 = vpack.c.bf16 %v282, %v282
    %v299 = vpack.c.bf16 %v283, %v283
    %v300 = vpack.c.bf16 %v284, %v284
    %v301 = vpack.c.bf16 %v285, %v285
    %v302 = vpack.c.bf16 %v286, %v286
    %v303 = vpack.c.bf16 %v287, %v287
    %v304 = vpack.c.bf16 %v288, %v288
    %v305 = vpack.c.bf16 %v289, %v289
    %v306 = vpack.c.bf16 %v290, %v290
    %v307 = vpack.c.bf16 %v291, %v291
    %v308 = vpack.c.bf16 %v292, %v292
    %v309 = vpack.c.bf16 %v293, %v293
    %v310 = vpack.c.bf16 %v294, %v294
    %v311 = vpack.c.bf16 %v295, %v295
    %v312 = vpack.c.bf16 %v296, %v296
    %v313 = vpack.c.bf16 %v297, %v297
    %314 = vst [vmem:[%s3] sm:$0xf] %v298
    %315 = vst [vmem:[%s3 + $0x4] sm:$0xf] %v299
    %316 = vst [vmem:[%s3 + $0x8] sm:$0xf] %v300
    %317 = vst [vmem:[%s3 + $0xc] sm:$0xf] %v301
    %318 = vst [vmem:[%s3 + $0x10] sm:$0xf] %v302
    %319 = vst [vmem:[%s3 + $0x14] sm:$0xf] %v303
    %320 = vst [vmem:[%s3 + $0x18] sm:$0xf] %v304
    %321 = vst [vmem:[%s3 + $0x1c] sm:$0xf] %v305
    %322 = vst [vmem:[%s3 + $0x20] sm:$0xf] %v306
    %323 = vst [vmem:[%s3 + $0x24] sm:$0xf] %v307
    %324 = vst [vmem:[%s3 + $0x28] sm:$0xf] %v308
    %325 = vst [vmem:[%s3 + $0x2c] sm:$0xf] %v309
    %326 = vst [vmem:[%s3 + $0x30] sm:$0xf] %v310
    %327 = vst [vmem:[%s3 + $0x34] sm:$0xf] %v311
    %328 = vst [vmem:[%s3 + $0x38] sm:$0xf] %v312
    %329 = vst [vmem:[%s3 + $0x3c] sm:$0xf] %v313
  $region21: #{model_forward.9} parent=0 // pred_fallthru
    _
  // Predicated region
  $region22: #{model_forward.9} parent=0 // pred_check
    _
  $region23: #{model_forward.9} parent=0 // pred_check_branch
    %331 = sbr.rel (0) target = $region25
  $region24: #{model_forward.9} parent=0 // pred_region
    _
  $region25: #{model_forward.9} parent=0 // pred_fallthru
    _
  // Predicated region
  $region26: #{model_forward.9} parent=0 // pred_check
    _
  $region27: #{model_forward.9} parent=0 // pred_check_branch
    %333 = sbr.rel (0) target = $region29
  $region28: #{model_forward.9} parent=0 // pred_region
    _
  $region29: #{model_forward.9} parent=0 // pred_fallthru
    _

// kernel: model_forward.10
$region0: #{model_forward.10}
  #allocation0 [shape = 'u32[]', space=smem, size = 0x4, offset = 0x4, fixed_abs, tag = 'smem constant byte address 0x4 - core index']
  #allocation1 [shape = 'u32[72,128]{1,0:T(1,128)}', space=vmem, size = 0x9000, scoped, tag = 'internal scratch']
  #allocation2 [shape = 'f32[32,128]{1,0:T(8,128)}', space=vmem, size = 0x4000, scoped, tag = 'scratch operand']
  %s0 = inlined_call_operand.vmem [shape: bf16[32,512], index: 0, kind: input, shape index: {}]
  %s1 = inlined_call_operand.vmem [shape: bf16[512,128], index: 1, kind: input, shape index: {}]
  %s2 = inlined_call_operand.vmem [shape: f32[1,128], index: 2, kind: input, shape index: {}]
  %s3 = inlined_call_operand.vmem [shape: bf16[32,128], index: 3, kind: output, shape index: {}]
  %s4 = sld [smem:[#allocation0]]
  $region30: #{model_forward.10} parent=0
    _
  %s6 = ssub.s32 1, %s4
  %s7 = scalar_select 0, %s6, %s4
  // Predicated region
  $region2: #{model_forward.10} parent=0 // pred_check
    _
  $region3: #{model_forward.10} parent=0 // pred_check_branch
    %9 = sbr.rel (0) target = $region5
  $region4: #{model_forward.10} parent=0 // pred_region
    _
  $region5: #{model_forward.10} parent=0 // pred_fallthru
    _
  // Predicated region
  $region6: #{model_forward.10} parent=0 // pred_check
    _
  $region7: #{model_forward.10} parent=0 // pred_check_branch
    %11 = sbr.rel (0) target = $region9
  $region8: #{model_forward.10} parent=0 // pred_region
    _
  $region9: #{model_forward.10} parent=0 // pred_fallthru
    _
  // Predicated region
  $region10: #{model_forward.10} parent=0 // pred_check
    _
  $region11: #{model_forward.10} parent=0 // pred_check_branch
    %13 = sbr.rel (0) target = $region13
  $region12: #{model_forward.10} parent=0 // pred_region
    _
  $region13: #{model_forward.10} parent=0 // pred_fallthru
    _
  %p14 = scmp.eq.s32.totalorder 0, 0
  // Predicated region
  $region14: #{model_forward.10} parent=0 // pred_check
    %p15 = pneg %p14
  $region15: #{model_forward.10} parent=0 // pred_check_branch
    %17 = sbr.rel (%p15) target = $region17
  $region16: #{model_forward.10} parent=0 // pred_region
    %18 = vst [vmem:[#allocation2] sm:$0xff] 0.0
    %19 = vst [vmem:[#allocation2 + $0x8] sm:$0xff] 0.0
    %20 = vst [vmem:[#allocation2 + $0x10] sm:$0xff] 0.0
    %21 = vst [vmem:[#allocation2 + $0x18] sm:$0xff] 0.0
  $region17: #{model_forward.10} parent=0 // pred_fallthru
    _
  %v22 = vld [vmem:[#allocation2] sm:$0xff]
  %v23 = vld [vmem:[#allocation2 + $0x8] sm:$0xff]
  %v24 = vld [vmem:[#allocation2 + $0x10] sm:$0xff]
  %v25 = vld [vmem:[#allocation2 + $0x18] sm:$0xff]
  %v26 = vld [vmem:[%s0] sm:$0xff]
  %v27 = vld [vmem:[%s0 + $0x8] sm:$0xff]
  %v28 = vld [vmem:[%s0 + $0x10] sm:$0xff]
  %v29 = vld [vmem:[%s0 + $0x18] sm:$0xff]
  %v30 = vld [vmem:[%s0 + $0x20] sm:$0xff]
  %v31 = vld [vmem:[%s0 + $0x28] sm:$0xff]
  %v32 = vld [vmem:[%s0 + $0x30] sm:$0xff]
  %v33 = vld [vmem:[%s0 + $0x38] sm:$0xff]
  %v34 = vld [vmem:[%s1] sm:$0xf]
  %v35 = vld [vmem:[%s1 + $0x4] sm:$0xf]
  %v36 = vld [vmem:[%s1 + $0x8] sm:$0xf]
  %v37 = vld [vmem:[%s1 + $0xc] sm:$0xf]
  %v38 = vld [vmem:[%s1 + $0x10] sm:$0xf]
  %v39 = vld [vmem:[%s1 + $0x14] sm:$0xf]
  %v40 = vld [vmem:[%s1 + $0x18] sm:$0xf]
  %v41 = vld [vmem:[%s1 + $0x1c] sm:$0xf]
  %v42 = vld [vmem:[%s1 + $0x20] sm:$0xf]
  %v43 = vld [vmem:[%s1 + $0x24] sm:$0xf]
  %v44 = vld [vmem:[%s1 + $0x28] sm:$0xf]
  %v45 = vld [vmem:[%s1 + $0x2c] sm:$0xf]
  %v46 = vld [vmem:[%s1 + $0x30] sm:$0xf]
  %v47 = vld [vmem:[%s1 + $0x34] sm:$0xf]
  %v48 = vld [vmem:[%s1 + $0x38] sm:$0xf]
  %v49 = vld [vmem:[%s1 + $0x3c] sm:$0xf]
  %v50 = vld [vmem:[%s1 + $0x40] sm:$0xf]
  %v51 = vld [vmem:[%s1 + $0x44] sm:$0xf]
  %v52 = vld [vmem:[%s1 + $0x48] sm:$0xf]
  %v53 = vld [vmem:[%s1 + $0x4c] sm:$0xf]
  %v54 = vld [vmem:[%s1 + $0x50] sm:$0xf]
  %v55 = vld [vmem:[%s1 + $0x54] sm:$0xf]
  %v56 = vld [vmem:[%s1 + $0x58] sm:$0xf]
  %v57 = vld [vmem:[%s1 + $0x5c] sm:$0xf]
  %v58 = vld [vmem:[%s1 + $0x60] sm:$0xf]
  %v59 = vld [vmem:[%s1 + $0x64] sm:$0xf]
  %v60 = vld [vmem:[%s1 + $0x68] sm:$0xf]
  %v61 = vld [vmem:[%s1 + $0x6c] sm:$0xf]
  %v62 = vld [vmem:[%s1 + $0x70] sm:$0xf]
  %v63 = vld [vmem:[%s1 + $0x74] sm:$0xf]
  %v64 = vld [vmem:[%s1 + $0x78] sm:$0xf]
  %v65 = vld [vmem:[%s1 + $0x7c] sm:$0xf]
  %v66 = vld [vmem:[%s1 + $0x80] sm:$0xf]
  %v67 = vld [vmem:[%s1 + $0x84] sm:$0xf]
  %v68 = vld [vmem:[%s1 + $0x88] sm:$0xf]
  %v69 = vld [vmem:[%s1 + $0x8c] sm:$0xf]
  %v70 = vld [vmem:[%s1 + $0x90] sm:$0xf]
  %v71 = vld [vmem:[%s1 + $0x94] sm:$0xf]
  %v72 = vld [vmem:[%s1 + $0x98] sm:$0xf]
  %v73 = vld [vmem:[%s1 + $0x9c] sm:$0xf]
  %v74 = vld [vmem:[%s1 + $0xa0] sm:$0xf]
  %v75 = vld [vmem:[%s1 + $0xa4] sm:$0xf]
  %v76 = vld [vmem:[%s1 + $0xa8] sm:$0xf]
  %v77 = vld [vmem:[%s1 + $0xac] sm:$0xf]
  %v78 = vld [vmem:[%s1 + $0xb0] sm:$0xf]
  %v79 = vld [vmem:[%s1 + $0xb4] sm:$0xf]
  %v80 = vld [vmem:[%s1 + $0xb8] sm:$0xf]
  %v81 = vld [vmem:[%s1 + $0xbc] sm:$0xf]
  %v82 = vld [vmem:[%s1 + $0xc0] sm:$0xf]
  %v83 = vld [vmem:[%s1 + $0xc4] sm:$0xf]
  %v84 = vld [vmem:[%s1 + $0xc8] sm:$0xf]
  %v85 = vld [vmem:[%s1 + $0xcc] sm:$0xf]
  %v86 = vld [vmem:[%s1 + $0xd0] sm:$0xf]
  %v87 = vld [vmem:[%s1 + $0xd4] sm:$0xf]
  %v88 = vld [vmem:[%s1 + $0xd8] sm:$0xf]
  %v89 = vld [vmem:[%s1 + $0xdc] sm:$0xf]
  %v90 = vld [vmem:[%s1 + $0xe0] sm:$0xf]
  %v91 = vld [vmem:[%s1 + $0xe4] sm:$0xf]
  %v92 = vld [vmem:[%s1 + $0xe8] sm:$0xf]
  %v93 = vld [vmem:[%s1 + $0xec] sm:$0xf]
  %v94 = vld [vmem:[%s1 + $0xf0] sm:$0xf]
  %v95 = vld [vmem:[%s1 + $0xf4] sm:$0xf]
  %v96 = vld [vmem:[%s1 + $0xf8] sm:$0xf]
  %v97 = vld [vmem:[%s1 + $0xfc] sm:$0xf]
  %v106 = vunpack.c.l.b16 %v26
  %v107 = vunpack.c.h.b16 %v26
  %v108 = vunpack.c.l.b16 %v27
  %v109 = vunpack.c.h.b16 %v27
  %v110 = vunpack.c.l.b16 %v28
  %v111 = vunpack.c.h.b16 %v28
  %v112 = vunpack.c.l.b16 %v29
  %v113 = vunpack.c.h.b16 %v29
  %v114 = vunpack.c.l.b16 %v30
  %v115 = vunpack.c.h.b16 %v30
  %v116 = vunpack.c.l.b16 %v31
  %v117 = vunpack.c.h.b16 %v31
  %v118 = vunpack.c.l.b16 %v32
  %v119 = vunpack.c.h.b16 %v32
  %v120 = vunpack.c.l.b16 %v33
  %v121 = vunpack.c.h.b16 %v33
  %v122 = vpack.c.b16 %v110, %v106
  %v123 = vpack.c.b16 %v111, %v107
  %v124 = vpack.c.b16 %v112, %v108
  %v125 = vpack.c.b16 %v113, %v109
  %v126 = vpack.c.b16 %v118, %v114
  %v127 = vpack.c.b16 %v119, %v115
  %v128 = vpack.c.b16 %v120, %v116
  %v129 = vpack.c.b16 %v121, %v117
  %v202 = vunpack.c.l.b16 %v34
  %v203 = vunpack.c.l.b16 %v35
  %v204 = vunpack.c.l.b16 %v36
  %v205 = vunpack.c.l.b16 %v37
  %v206 = vunpack.c.l.b16 %v38
  %v207 = vunpack.c.l.b16 %v39
  %v208 = vunpack.c.l.b16 %v40
  %v209 = vunpack.c.l.b16 %v41
  %v210 = vunpack.c.l.b16 %v42
  %v211 = vunpack.c.l.b16 %v43
  %v212 = vunpack.c.l.b16 %v44
  %v213 = vunpack.c.l.b16 %v45
  %v214 = vunpack.c.l.b16 %v46
  %v215 = vunpack.c.l.b16 %v47
  %v216 = vunpack.c.l.b16 %v48
  %v217 = vunpack.c.l.b16 %v49
  %v218 = vunpack.c.l.b16 %v50
  %v219 = vunpack.c.l.b16 %v51
  %v220 = vunpack.c.l.b16 %v52
  %v221 = vunpack.c.l.b16 %v53
  %v222 = vunpack.c.l.b16 %v54
  %v223 = vunpack.c.l.b16 %v55
  %v224 = vunpack.c.l.b16 %v56
  %v225 = vunpack.c.l.b16 %v57
  %v226 = vunpack.c.l.b16 %v58
  %v227 = vunpack.c.l.b16 %v59
  %v228 = vunpack.c.l.b16 %v60
  %v229 = vunpack.c.l.b16 %v61
  %v230 = vunpack.c.l.b16 %v62
  %v231 = vunpack.c.l.b16 %v63
  %v232 = vunpack.c.l.b16 %v64
  %v233 = vunpack.c.l.b16 %v65
  %v234 = vunpack.c.l.b16 %v66
  %v235 = vunpack.c.l.b16 %v67
  %v236 = vunpack.c.l.b16 %v68
  %v237 = vunpack.c.l.b16 %v69
  %v238 = vunpack.c.l.b16 %v70
  %v239 = vunpack.c.l.b16 %v71
  %v240 = vunpack.c.l.b16 %v72
  %v241 = vunpack.c.l.b16 %v73
  %v242 = vunpack.c.l.b16 %v74
  %v243 = vunpack.c.l.b16 %v75
  %v244 = vunpack.c.l.b16 %v76
  %v245 = vunpack.c.l.b16 %v77
  %v246 = vunpack.c.l.b16 %v78
  %v247 = vunpack.c.l.b16 %v79
  %v248 = vunpack.c.l.b16 %v80
  %v249 = vunpack.c.l.b16 %v81
  %v250 = vunpack.c.l.b16 %v82
  %v251 = vunpack.c.l.b16 %v83
  %v252 = vunpack.c.l.b16 %v84
  %v253 = vunpack.c.l.b16 %v85
  %v254 = vunpack.c.l.b16 %v86
  %v255 = vunpack.c.l.b16 %v87
  %v256 = vunpack.c.l.b16 %v88
  %v257 = vunpack.c.l.b16 %v89
  %v258 = vunpack.c.l.b16 %v90
  %v259 = vunpack.c.l.b16 %v91
  %v260 = vunpack.c.l.b16 %v92
  %v261 = vunpack.c.l.b16 %v93
  %v262 = vunpack.c.l.b16 %v94
  %v263 = vunpack.c.l.b16 %v95
  %v264 = vunpack.c.l.b16 %v96
  %v265 = vunpack.c.l.b16 %v97
  %v266 = vpack.c.b16 %v203, %v202
  %v267 = vpack.c.b16 %v205, %v204
  %v268 = vpack.c.b16 %v207, %v206
  %v269 = vpack.c.b16 %v209, %v208
  %v270 = vpack.c.b16 %v211, %v210
  %v271 = vpack.c.b16 %v213, %v212
  %v272 = vpack.c.b16 %v215, %v214
  %v273 = vpack.c.b16 %v217, %v216
  %v274 = vpack.c.b16 %v219, %v218
  %v275 = vpack.c.b16 %v221, %v220
  %v276 = vpack.c.b16 %v223, %v222
  %v277 = vpack.c.b16 %v225, %v224
  %v278 = vpack.c.b16 %v227, %v226
  %v279 = vpack.c.b16 %v229, %v228
  %v280 = vpack.c.b16 %v231, %v230
  %v281 = vpack.c.b16 %v233, %v232
  %v282 = vpack.c.b16 %v235, %v234
  %v283 = vpack.c.b16 %v237, %v236
  %v284 = vpack.c.b16 %v239, %v238
  %v285 = vpack.c.b16 %v241, %v240
  %v286 = vpack.c.b16 %v243, %v242
  %v287 = vpack.c.b16 %v245, %v244
  %v288 = vpack.c.b16 %v247, %v246
  %v289 = vpack.c.b16 %v249, %v248
  %v290 = vpack.c.b16 %v251, %v250
  %v291 = vpack.c.b16 %v253, %v252
  %v292 = vpack.c.b16 %v255, %v254
  %v293 = vpack.c.b16 %v257, %v256
  %v294 = vpack.c.b16 %v259, %v258
  %v295 = vpack.c.b16 %v261, %v260
  %v296 = vpack.c.b16 %v263, %v262
  %v297 = vpack.c.b16 %v265, %v264
  %330 = vmatpush.bf16.msra.mxu0 %v273
  %331 = vmatpush.bf16.msra.mxu0 %v272
  %332 = vmatpush.bf16.msra.mxu0 %v271
  %333 = vmatpush.bf16.msra.mxu0 %v270
  %334 = vmatpush.bf16.msra.mxu0 %v269
  %335 = vmatpush.bf16.msra.mxu0 %v268
  %336 = vmatpush.bf16.msra.mxu0 %v267
  %337 = vmatpush.bf16.msra.mxu0 %v266
  %338 = vmatmul.bf16.gmra.mxu0 %v122
  %v339 = vpop.f32.mrf.mxu0
  %v340 = vadd.f32 0.0, %v339
  %v341 = vpop.f32.mrf.mxu0
  %v342 = vadd.f32 0.0, %v341
  %343 = vmatmul.bf16.gmra.mxu0 %v126
  %v344 = vpop.f32.mrf.mxu0
  %v345 = vadd.f32 0.0, %v344
  %v346 = vpop.f32.mrf.mxu0
  %v347 = vadd.f32 0.0, %v346
  %348 = vdwg.mxu0
  %349 = vmatpush.bf16.msra.mxu0 %v281
  %350 = vmatpush.bf16.msra.mxu0 %v280
  %351 = vmatpush.bf16.msra.mxu0 %v279
  %352 = vmatpush.bf16.msra.mxu0 %v278
  %353 = vmatpush.bf16.msra.mxu0 %v277
  %354 = vmatpush.bf16.msra.mxu0 %v276
  %355 = vmatpush.bf16.msra.mxu0 %v275
  %356 = vmatpush.bf16.msra.mxu0 %v274
  %357 = vmatmul.bf16.gmra.mxu0 %v123
  %v358 = vpop.f32.mrf.mxu0
  %v359 = vadd.f32 %v340, %v358
  %v360 = vpop.f32.mrf.mxu0
  %v361 = vadd.f32 %v342, %v360
  %362 = vmatmul.bf16.gmra.mxu0 %v127
  %v363 = vpop.f32.mrf.mxu0
  %v364 = vadd.f32 %v345, %v363
  %v365 = vpop.f32.mrf.mxu0
  %v366 = vadd.f32 %v347, %v365
  %367 = vdwg.mxu0
  %368 = vmatpush.bf16.msra.mxu0 %v289
  %369 = vmatpush.bf16.msra.mxu0 %v288
  %370 = vmatpush.bf16.msra.mxu0 %v287
  %371 = vmatpush.bf16.msra.mxu0 %v286
  %372 = vmatpush.bf16.msra.mxu0 %v285
  %373 = vmatpush.bf16.msra.mxu0 %v284
  %374 = vmatpush.bf16.msra.mxu0 %v283
  %375 = vmatpush.bf16.msra.mxu0 %v282
  %376 = vmatmul.bf16.gmra.mxu0 %v124
  %v377 = vpop.f32.mrf.mxu0
  %v378 = vadd.f32 %v359, %v377
  %v379 = vpop.f32.mrf.mxu0
  %v380 = vadd.f32 %v361, %v379
  %381 = vmatmul.bf16.gmra.mxu0 %v128
  %v382 = vpop.f32.mrf.mxu0
  %v383 = vadd.f32 %v364, %v382
  %v384 = vpop.f32.mrf.mxu0
  %v385 = vadd.f32 %v366, %v384
  %386 = vdwg.mxu0
  %387 = vmatpush.bf16.msra.mxu0 %v297
  %388 = vmatpush.bf16.msra.mxu0 %v296
  %389 = vmatpush.bf16.msra.mxu0 %v295
  %390 = vmatpush.bf16.msra.mxu0 %v294
  %391 = vmatpush.bf16.msra.mxu0 %v293
  %392 = vmatpush.bf16.msra.mxu0 %v292
  %393 = vmatpush.bf16.msra.mxu0 %v291
  %394 = vmatpush.bf16.msra.mxu0 %v290
  %395 = vmatmul.bf16.gmra.mxu0 %v125
  %v396 = vpop.f32.mrf.mxu0
  %v397 = vadd.f32 %v378, %v396
  %v398 = vpop.f32.mrf.mxu0
  %v399 = vadd.f32 %v380, %v398
  %400 = vmatmul.bf16.gmra.mxu0 %v129
  %v401 = vpop.f32.mrf.mxu0
  %v402 = vadd.f32 %v383, %v401
  %v403 = vpop.f32.mrf.mxu0
  %v404 = vadd.f32 %v385, %v403
  %405 = vdwg.mxu0
  %v406 = vadd.f32 %v22, %v397
  %v407 = vadd.f32 %v23, %v399
  %v408 = vadd.f32 %v24, %v402
  %v409 = vadd.f32 %v25, %v404
  %410 = vst [vmem:[#allocation2] sm:$0xff] %v406
  %411 = vst [vmem:[#allocation2 + $0x8] sm:$0xff] %v407
  %412 = vst [vmem:[#allocation2 + $0x10] sm:$0xff] %v408
  %413 = vst [vmem:[#allocation2 + $0x18] sm:$0xff] %v409
  // Predicated region
  $region18: #{model_forward.10} parent=0 // pred_check
    %p414 = pneg %p14
  $region19: #{model_forward.10} parent=0 // pred_check_branch
    %416 = sbr.rel (%p414) target = $region21
  $region20: #{model_forward.10} parent=0 // pred_region
    %v417 = vld [vmem:[#allocation2] sm:$0xff]
    %v418 = vld [vmem:[#allocation2 + $0x8] sm:$0xff]
    %v419 = vld [vmem:[#allocation2 + $0x10] sm:$0xff]
    %v420 = vld [vmem:[#allocation2 + $0x18] sm:$0xff]
    %v421 = vld [vmem:[%s2] sm:$0x1]
    %v423 = vperm.slane %v421, 0
    %v425 = vadd.f32 %v417, %v423
    %v426 = vadd.f32 %v418, %v423
    %v427 = vadd.f32 %v419, %v423
    %v428 = vadd.f32 %v420, %v423
    %v429 = vmax.f32 %v425, 0.0
    %v430 = vmax.f32 %v426, 0.0
    %v431 = vmax.f32 %v427, 0.0
    %v432 = vmax.f32 %v428, 0.0
    %v433 = vpack.c.bf16 %v429, %v429
    %v434 = vpack.c.bf16 %v430, %v430
    %v435 = vpack.c.bf16 %v431, %v431
    %v436 = vpack.c.bf16 %v432, %v432
    %437 = vst [vmem:[%s3] sm:$0xf] %v433
    %438 = vst [vmem:[%s3 + $0x4] sm:$0xf] %v434
    %439 = vst [vmem:[%s3 + $0x8] sm:$0xf] %v435
    %440 = vst [vmem:[%s3 + $0xc] sm:$0xf] %v436
  $region21: #{model_forward.10} parent=0 // pred_fallthru
    _
  // Predicated region
  $region22: #{model_forward.10} parent=0 // pred_check
    _
  $region23: #{model_forward.10} parent=0 // pred_check_branch
    %442 = sbr.rel (0) target = $region25
  $region24: #{model_forward.10} parent=0 // pred_region
    _
  $region25: #{model_forward.10} parent=0 // pred_fallthru
    _
  // Predicated region
  $region26: #{model_forward.10} parent=0 // pred_check
    _
  $region27: #{model_forward.10} parent=0 // pred_check_branch
    %444 = sbr.rel (0) target = $region29
  $region28: #{model_forward.10} parent=0 // pred_region
    _
  $region29: #{model_forward.10} parent=0 // pred_fallthru
    _

// kernel: model_forward.12
$region0: #{model_forward.12}
  #allocation0 [shape = 'u32[]', space=smem, size = 0x4, offset = 0x4, fixed_abs, tag = 'smem constant byte address 0x4 - core index']
  #allocation1 [shape = 'u32[72,128]{1,0:T(1,128)}', space=vmem, size = 0x9000, scoped, tag = 'internal scratch']
  %s0 = inlined_call_operand.vmem [shape: bf16[32,128], index: 0, kind: input, shape index: {}]
  %s1 = inlined_call_operand.vmem [shape: bf16[128,128], index: 1, kind: input, shape index: {}]
  %s2 = inlined_call_operand.vmem [shape: f32[1,128], index: 2, kind: input, shape index: {}]
  %s3 = inlined_call_operand.vmem [shape: bf16[128,128], index: 3, kind: input, shape index: {}]
  %s4 = inlined_call_operand.vmem [shape: f32[1,128], index: 4, kind: input, shape index: {}]
  %s5 = inlined_call_operand.vmem [shape: f32[32,128], index: 5, kind: output, shape index: {}]
  %s6 = sld [smem:[#allocation0]]
  $region30: #{model_forward.12} parent=0
    _
  %s8 = ssub.s32 1, %s6
  %s9 = scalar_select 0, %s8, %s6
  // Predicated region
  $region2: #{model_forward.12} parent=0 // pred_check
    _
  $region3: #{model_forward.12} parent=0 // pred_check_branch
    %11 = sbr.rel (0) target = $region5
  $region4: #{model_forward.12} parent=0 // pred_region
    _
  $region5: #{model_forward.12} parent=0 // pred_fallthru
    _
  // Predicated region
  $region6: #{model_forward.12} parent=0 // pred_check
    _
  $region7: #{model_forward.12} parent=0 // pred_check_branch
    %13 = sbr.rel (0) target = $region9
  $region8: #{model_forward.12} parent=0 // pred_region
    _
  $region9: #{model_forward.12} parent=0 // pred_fallthru
    _
  // Predicated region
  $region10: #{model_forward.12} parent=0 // pred_check
    _
  $region11: #{model_forward.12} parent=0 // pred_check_branch
    %15 = sbr.rel (0) target = $region13
  $region12: #{model_forward.12} parent=0 // pred_region
    _
  $region13: #{model_forward.12} parent=0 // pred_fallthru
    _
  // Predicated region
  $region14: #{model_forward.12} parent=0 // pred_check
    _
  $region15: #{model_forward.12} parent=0 // pred_check_branch
    %17 = sbr.rel (0) target = $region17
  $region16: #{model_forward.12} parent=0 // pred_region
    _
  $region17: #{model_forward.12} parent=0 // pred_fallthru
    _
  // Predicated region
  $region18: #{model_forward.12} parent=0 // pred_check
    _
  $region19: #{model_forward.12} parent=0 // pred_check_branch
    %19 = sbr.rel (0) target = $region21
  $region20: #{model_forward.12} parent=0 // pred_region
    _
  $region21: #{model_forward.12} parent=0 // pred_fallthru
    _
  %v20 = vld [vmem:[%s0] sm:$0xf]
  %v21 = vld [vmem:[%s0 + $0x4] sm:$0xf]
  %v22 = vld [vmem:[%s0 + $0x8] sm:$0xf]
  %v23 = vld [vmem:[%s0 + $0xc] sm:$0xf]
  %v24 = vld [vmem:[%s1] sm:$0xf]
  %v25 = vld [vmem:[%s1 + $0x4] sm:$0xf]
  %v26 = vld [vmem:[%s1 + $0x8] sm:$0xf]
  %v27 = vld [vmem:[%s1 + $0xc] sm:$0xf]
  %v28 = vld [vmem:[%s1 + $0x10] sm:$0xf]
  %v29 = vld [vmem:[%s1 + $0x14] sm:$0xf]
  %v30 = vld [vmem:[%s1 + $0x18] sm:$0xf]
  %v31 = vld [vmem:[%s1 + $0x1c] sm:$0xf]
  %v32 = vld [vmem:[%s1 + $0x20] sm:$0xf]
  %v33 = vld [vmem:[%s1 + $0x24] sm:$0xf]
  %v34 = vld [vmem:[%s1 + $0x28] sm:$0xf]
  %v35 = vld [vmem:[%s1 + $0x2c] sm:$0xf]
  %v36 = vld [vmem:[%s1 + $0x30] sm:$0xf]
  %v37 = vld [vmem:[%s1 + $0x34] sm:$0xf]
  %v38 = vld [vmem:[%s1 + $0x38] sm:$0xf]
  %v39 = vld [vmem:[%s1 + $0x3c] sm:$0xf]
  %v40 = vld [vmem:[%s2] sm:$0x1]
  %v42 = vperm.slane %v40, 0
  %v48 = vunpack.c.l.b16 %v20
  %v49 = vunpack.c.l.b16 %v21
  %v50 = vunpack.c.l.b16 %v22
  %v51 = vunpack.c.l.b16 %v23
  %v52 = vpack.c.b16 %v49, %v48
  %v53 = vpack.c.b16 %v51, %v50
  %v72 = vunpack.c.l.b16 %v24
  %v73 = vunpack.c.l.b16 %v25
  %v74 = vunpack.c.l.b16 %v26
  %v75 = vunpack.c.l.b16 %v27
  %v76 = vunpack.c.l.b16 %v28
  %v77 = vunpack.c.l.b16 %v29
  %v78 = vunpack.c.l.b16 %v30
  %v79 = vunpack.c.l.b16 %v31
  %v80 = vunpack.c.l.b16 %v32
  %v81 = vunpack.c.l.b16 %v33
  %v82 = vunpack.c.l.b16 %v34
  %v83 = vunpack.c.l.b16 %v35
  %v84 = vunpack.c.l.b16 %v36
  %v85 = vunpack.c.l.b16 %v37
  %v86 = vunpack.c.l.b16 %v38
  %v87 = vunpack.c.l.b16 %v39
  %v88 = vpack.c.b16 %v73, %v72
  %v89 = vpack.c.b16 %v75, %v74
  %v90 = vpack.c.b16 %v77, %v76
  %v91 = vpack.c.b16 %v79, %v78
  %v92 = vpack.c.b16 %v81, %v80
  %v93 = vpack.c.b16 %v83, %v82
  %v94 = vpack.c.b16 %v85, %v84
  %v95 = vpack.c.b16 %v87, %v86
  %104 = vmatpush.bf16.msra.mxu0 %v95
  %105 = vmatpush.bf16.msra.mxu0 %v94
  %106 = vmatpush.bf16.msra.mxu0 %v93
  %107 = vmatpush.bf16.msra.mxu0 %v92
  %108 = vmatpush.bf16.msra.mxu0 %v91
  %109 = vmatpush.bf16.msra.mxu0 %v90
  %110 = vmatpush.bf16.msra.mxu0 %v89
  %111 = vmatpush.bf16.msra.mxu0 %v88
  %112 = vmatmul.bf16.gmra.mxu0 %v52
  %v113 = vpop.f32.mrf.mxu0
  %v114 = vadd.f32 %v42, %v113
  %v115 = vpop.f32.mrf.mxu0
  %v116 = vadd.f32 %v42, %v115
  %117 = vmatmul.bf16.gmra.mxu0 %v53
  %v118 = vpop.f32.mrf.mxu0
  %v119 = vadd.f32 %v42, %v118
  %v120 = vpop.f32.mrf.mxu0
  %v121 = vadd.f32 %v42, %v120
  %122 = vdwg.mxu0
  %v123 = vunpack.c.l.bf16 %v20
  %v124 = vunpack.c.l.bf16 %v21
  %v125 = vunpack.c.l.bf16 %v22
  %v126 = vunpack.c.l.bf16 %v23
  %v127 = vadd.f32 %v114, %v123
  %v128 = vadd.f32 %v116, %v124
  %v129 = vadd.f32 %v119, %v125
  %v130 = vadd.f32 %v121, %v126
  %v131 = vpack.c.bf16 %v128, %v127
  %v132 = vpack.c.bf16 %v130, %v129
  %v133 = vld [vmem:[%s3] sm:$0xf]
  %v134 = vld [vmem:[%s3 + $0x4] sm:$0xf]
  %v135 = vld [vmem:[%s3 + $0x8] sm:$0xf]
  %v136 = vld [vmem:[%s3 + $0xc] sm:$0xf]
  %v137 = vld [vmem:[%s3 + $0x10] sm:$0xf]
  %v138 = vld [vmem:[%s3 + $0x14] sm:$0xf]
  %v139 = vld [vmem:[%s3 + $0x18] sm:$0xf]
  %v140 = vld [vmem:[%s3 + $0x1c] sm:$0xf]
  %v141 = vld [vmem:[%s3 + $0x20] sm:$0xf]
  %v142 = vld [vmem:[%s3 + $0x24] sm:$0xf]
  %v143 = vld [vmem:[%s3 + $0x28] sm:$0xf]
  %v144 = vld [vmem:[%s3 + $0x2c] sm:$0xf]
  %v145 = vld [vmem:[%s3 + $0x30] sm:$0xf]
  %v146 = vld [vmem:[%s3 + $0x34] sm:$0xf]
  %v147 = vld [vmem:[%s3 + $0x38] sm:$0xf]
  %v148 = vld [vmem:[%s3 + $0x3c] sm:$0xf]
  %v149 = vld [vmem:[%s4] sm:$0x1]
  %v151 = vperm.slane %v149, 0
  %v169 = vunpack.c.l.b16 %v133
  %v170 = vunpack.c.l.b16 %v134
  %v171 = vunpack.c.l.b16 %v135
  %v172 = vunpack.c.l.b16 %v136
  %v173 = vunpack.c.l.b16 %v137
  %v174 = vunpack.c.l.b16 %v138
  %v175 = vunpack.c.l.b16 %v139
  %v176 = vunpack.c.l.b16 %v140
  %v177 = vunpack.c.l.b16 %v141
  %v178 = vunpack.c.l.b16 %v142
  %v179 = vunpack.c.l.b16 %v143
  %v180 = vunpack.c.l.b16 %v144
  %v181 = vunpack.c.l.b16 %v145
  %v182 = vunpack.c.l.b16 %v146
  %v183 = vunpack.c.l.b16 %v147
  %v184 = vunpack.c.l.b16 %v148
  %v185 = vpack.c.b16 %v170, %v169
  %v186 = vpack.c.b16 %v172, %v171
  %v187 = vpack.c.b16 %v174, %v173
  %v188 = vpack.c.b16 %v176, %v175
  %v189 = vpack.c.b16 %v178, %v177
  %v190 = vpack.c.b16 %v180, %v179
  %v191 = vpack.c.b16 %v182, %v181
  %v192 = vpack.c.b16 %v184, %v183
  %201 = vmatpush.bf16.msra.mxu0 %v192
  %202 = vmatpush.bf16.msra.mxu0 %v191
  %203 = vmatpush.bf16.msra.mxu0 %v190
  %204 = vmatpush.bf16.msra.mxu0 %v189
  %205 = vmatpush.bf16.msra.mxu0 %v188
  %206 = vmatpush.bf16.msra.mxu0 %v187
  %207 = vmatpush.bf16.msra.mxu0 %v186
  %208 = vmatpush.bf16.msra.mxu0 %v185
  %209 = vmatmul.bf16.gmra.mxu0 %v131
  %v210 = vpop.f32.mrf.mxu0
  %v211 = vadd.f32 %v151, %v210
  %v212 = vpop.f32.mrf.mxu0
  %v213 = vadd.f32 %v151, %v212
  %214 = vmatmul.bf16.gmra.mxu0 %v132
  %v215 = vpop.f32.mrf.mxu0
  %v216 = vadd.f32 %v151, %v215
  %v217 = vpop.f32.mrf.mxu0
  %v218 = vadd.f32 %v151, %v217
  %219 = vdwg.mxu0
  %220 = vst [vmem:[%s5] sm:$0xff] %v211
  %221 = vst [vmem:[%s5 + $0x8] sm:$0xff] %v213
  %222 = vst [vmem:[%s5 + $0x10] sm:$0xff] %v216
  %223 = vst [vmem:[%s5 + $0x18] sm:$0xff] %v218
  // Predicated region
  $region22: #{model_forward.12} parent=0 // pred_check
    _
  $region23: #{model_forward.12} parent=0 // pred_check_branch
    %225 = sbr.rel (0) target = $region25
  $region24: #{model_forward.12} parent=0 // pred_region
    _
  $region25: #{model_forward.12} parent=0 // pred_fallthru
    _
  // Predicated region
  $region26: #{model_forward.12} parent=0 // pred_check
    _
  $region27: #{model_forward.12} parent=0 // pred_check_branch
    %227 = sbr.rel (0) target = $region29
  $region28: #{model_forward.12} parent=0 // pred_region
    _
  $region29: #{model_forward.12} parent=0 // pred_fallthru
    _

// kernel: model_forward.11
$region0: #{model_forward.11}
  #allocation0 [shape = 'u32[]', space=smem, size = 0x4, offset = 0x4, fixed_abs, tag = 'smem constant byte address 0x4 - core index']
  #allocation1 [shape = 'u32[72,128]{1,0:T(1,128)}', space=vmem, size = 0x9000, scoped, tag = 'internal scratch']
  #allocation2 [shape = 'f32[32,128]{1,0:T(8,128)}', space=vmem, size = 0x4000, scoped, tag = 'scratch operand']
  %s0 = inlined_call_operand.vmem [shape: bf16[32,384], index: 0, kind: input, shape index: {}]
  %s1 = inlined_call_operand.vmem [shape: bf16[384,128], index: 1, kind: input, shape index: {}]
  %s2 = inlined_call_operand.vmem [shape: f32[1,128], index: 2, kind: input, shape index: {}]
  %s3 = inlined_call_operand.vmem [shape: bf16[32,128], index: 3, kind: input, shape index: {}]
  %s4 = inlined_call_operand.vmem [shape: bf16[32,128], index: 4, kind: output, shape index: {}]
  %s5 = sld [smem:[#allocation0]]
  $region34: #{model_forward.11} parent=0
    _
  %s7 = ssub.s32 1, %s5
  %s8 = scalar_select 0, %s7, %s5
  // Predicated region
  $region2: #{model_forward.11} parent=0 // pred_check
    _
  $region3: #{model_forward.11} parent=0 // pred_check_branch
    %10 = sbr.rel (0) target = $region5
  $region4: #{model_forward.11} parent=0 // pred_region
    _
  $region5: #{model_forward.11} parent=0 // pred_fallthru
    _
  // Predicated region
  $region6: #{model_forward.11} parent=0 // pred_check
    _
  $region7: #{model_forward.11} parent=0 // pred_check_branch
    %12 = sbr.rel (0) target = $region9
  $region8: #{model_forward.11} parent=0 // pred_region
    _
  $region9: #{model_forward.11} parent=0 // pred_fallthru
    _
  // Predicated region
  $region10: #{model_forward.11} parent=0 // pred_check
    _
  $region11: #{model_forward.11} parent=0 // pred_check_branch
    %14 = sbr.rel (0) target = $region13
  $region12: #{model_forward.11} parent=0 // pred_region
    _
  $region13: #{model_forward.11} parent=0 // pred_fallthru
    _
  // Predicated region
  $region14: #{model_forward.11} parent=0 // pred_check
    _
  $region15: #{model_forward.11} parent=0 // pred_check_branch
    %16 = sbr.rel (0) target = $region17
  $region16: #{model_forward.11} parent=0 // pred_region
    _
  $region17: #{model_forward.11} parent=0 // pred_fallthru
    _
  %p17 = scmp.eq.s32.totalorder 0, 0
  // Predicated region
  $region18: #{model_forward.11} parent=0 // pred_check
    %p18 = pneg %p17
  $region19: #{model_forward.11} parent=0 // pred_check_branch
    %20 = sbr.rel (%p18) target = $region21
  $region20: #{model_forward.11} parent=0 // pred_region
    %21 = vst [vmem:[#allocation2] sm:$0xff] 0.0
    %22 = vst [vmem:[#allocation2 + $0x8] sm:$0xff] 0.0
    %23 = vst [vmem:[#allocation2 + $0x10] sm:$0xff] 0.0
    %24 = vst [vmem:[#allocation2 + $0x18] sm:$0xff] 0.0
  $region21: #{model_forward.11} parent=0 // pred_fallthru
    _
  %v25 = vld [vmem:[#allocation2] sm:$0xff]
  %v26 = vld [vmem:[#allocation2 + $0x8] sm:$0xff]
  %v27 = vld [vmem:[#allocation2 + $0x10] sm:$0xff]
  %v28 = vld [vmem:[#allocation2 + $0x18] sm:$0xff]
  %v29 = vld [vmem:[%s0] sm:$0xff]
  %v30 = vld [vmem:[%s0 + $0x8] sm:$0xf]
  %v31 = vld [vmem:[%s0 + $0xc] sm:$0xff]
  %v32 = vld [vmem:[%s0 + $0x14] sm:$0xf]
  %v33 = vld [vmem:[%s0 + $0x18] sm:$0xff]
  %v34 = vld [vmem:[%s0 + $0x20] sm:$0xf]
  %v35 = vld [vmem:[%s0 + $0x24] sm:$0xff]
  %v36 = vld [vmem:[%s0 + $0x2c] sm:$0xf]
  %v37 = vld [vmem:[%s1] sm:$0xf]
  %v38 = vld [vmem:[%s1 + $0x4] sm:$0xf]
  %v39 = vld [vmem:[%s1 + $0x8] sm:$0xf]
  %v40 = vld [vmem:[%s1 + $0xc] sm:$0xf]
  %v41 = vld [vmem:[%s1 + $0x10] sm:$0xf]
  %v42 = vld [vmem:[%s1 + $0x14] sm:$0xf]
  %v43 = vld [vmem:[%s1 + $0x18] sm:$0xf]
  %v44 = vld [vmem:[%s1 + $0x1c] sm:$0xf]
  %v45 = vld [vmem:[%s1 + $0x20] sm:$0xf]
  %v46 = vld [vmem:[%s1 + $0x24] sm:$0xf]
  %v47 = vld [vmem:[%s1 + $0x28] sm:$0xf]
  %v48 = vld [vmem:[%s1 + $0x2c] sm:$0xf]
  %v49 = vld [vmem:[%s1 + $0x30] sm:$0xf]
  %v50 = vld [vmem:[%s1 + $0x34] sm:$0xf]
  %v51 = vld [vmem:[%s1 + $0x38] sm:$0xf]
  %v52 = vld [vmem:[%s1 + $0x3c] sm:$0xf]
  %v53 = vld [vmem:[%s1 + $0x40] sm:$0xf]
  %v54 = vld [vmem:[%s1 + $0x44] sm:$0xf]
  %v55 = vld [vmem:[%s1 + $0x48] sm:$0xf]
  %v56 = vld [vmem:[%s1 + $0x4c] sm:$0xf]
  %v57 = vld [vmem:[%s1 + $0x50] sm:$0xf]
  %v58 = vld [vmem:[%s1 + $0x54] sm:$0xf]
  %v59 = vld [vmem:[%s1 + $0x58] sm:$0xf]
  %v60 = vld [vmem:[%s1 + $0x5c] sm:$0xf]
  %v61 = vld [vmem:[%s1 + $0x60] sm:$0xf]
  %v62 = vld [vmem:[%s1 + $0x64] sm:$0xf]
  %v63 = vld [vmem:[%s1 + $0x68] sm:$0xf]
  %v64 = vld [vmem:[%s1 + $0x6c] sm:$0xf]
  %v65 = vld [vmem:[%s1 + $0x70] sm:$0xf]
  %v66 = vld [vmem:[%s1 + $0x74] sm:$0xf]
  %v67 = vld [vmem:[%s1 + $0x78] sm:$0xf]
  %v68 = vld [vmem:[%s1 + $0x7c] sm:$0xf]
  %v69 = vld [vmem:[%s1 + $0x80] sm:$0xf]
  %v70 = vld [vmem:[%s1 + $0x84] sm:$0xf]
  %v71 = vld [vmem:[%s1 + $0x88] sm:$0xf]
  %v72 = vld [vmem:[%s1 + $0x8c] sm:$0xf]
  %v73 = vld [vmem:[%s1 + $0x90] sm:$0xf]
  %v74 = vld [vmem:[%s1 + $0x94] sm:$0xf]
  %v75 = vld [vmem:[%s1 + $0x98] sm:$0xf]
  %v76 = vld [vmem:[%s1 + $0x9c] sm:$0xf]
  %v77 = vld [vmem:[%s1 + $0xa0] sm:$0xf]
  %v78 = vld [vmem:[%s1 + $0xa4] sm:$0xf]
  %v79 = vld [vmem:[%s1 + $0xa8] sm:$0xf]
  %v80 = vld [vmem:[%s1 + $0xac] sm:$0xf]
  %v81 = vld [vmem:[%s1 + $0xb0] sm:$0xf]
  %v82 = vld [vmem:[%s1 + $0xb4] sm:$0xf]
  %v83 = vld [vmem:[%s1 + $0xb8] sm:$0xf]
  %v84 = vld [vmem:[%s1 + $0xbc] sm:$0xf]
  %v93 = vunpack.c.l.b16 %v29
  %v94 = vunpack.c.h.b16 %v29
  %v95 = vunpack.c.l.b16 %v30
  %v96 = vunpack.c.l.b16 %v31
  %v97 = vunpack.c.h.b16 %v31
  %v98 = vunpack.c.l.b16 %v32
  %v99 = vunpack.c.l.b16 %v33
  %v100 = vunpack.c.h.b16 %v33
  %v101 = vunpack.c.l.b16 %v34
  %v102 = vunpack.c.l.b16 %v35
  %v103 = vunpack.c.h.b16 %v35
  %v104 = vunpack.c.l.b16 %v36
  %v105 = vpack.c.b16 %v96, %v93
  %v106 = vpack.c.b16 %v97, %v94
  %v107 = vpack.c.b16 %v98, %v95
  %v108 = vpack.c.b16 %v102, %v99
  %v109 = vpack.c.b16 %v103, %v100
  %v110 = vpack.c.b16 %v104, %v101
  %v165 = vunpack.c.l.b16 %v37
  %v166 = vunpack.c.l.b16 %v38
  %v167 = vunpack.c.l.b16 %v39
  %v168 = vunpack.c.l.b16 %v40
  %v169 = vunpack.c.l.b16 %v41
  %v170 = vunpack.c.l.b16 %v42
  %v171 = vunpack.c.l.b16 %v43
  %v172 = vunpack.c.l.b16 %v44
  %v173 = vunpack.c.l.b16 %v45
  %v174 = vunpack.c.l.b16 %v46
  %v175 = vunpack.c.l.b16 %v47
  %v176 = vunpack.c.l.b16 %v48
  %v177 = vunpack.c.l.b16 %v49
  %v178 = vunpack.c.l.b16 %v50
  %v179 = vunpack.c.l.b16 %v51
  %v180 = vunpack.c.l.b16 %v52
  %v181 = vunpack.c.l.b16 %v53
  %v182 = vunpack.c.l.b16 %v54
  %v183 = vunpack.c.l.b16 %v55
  %v184 = vunpack.c.l.b16 %v56
  %v185 = vunpack.c.l.b16 %v57
  %v186 = vunpack.c.l.b16 %v58
  %v187 = vunpack.c.l.b16 %v59
  %v188 = vunpack.c.l.b16 %v60
  %v189 = vunpack.c.l.b16 %v61
  %v190 = vunpack.c.l.b16 %v62
  %v191 = vunpack.c.l.b16 %v63
  %v192 = vunpack.c.l.b16 %v64
  %v193 = vunpack.c.l.b16 %v65
  %v194 = vunpack.c.l.b16 %v66
  %v195 = vunpack.c.l.b16 %v67
  %v196 = vunpack.c.l.b16 %v68
  %v197 = vunpack.c.l.b16 %v69
  %v198 = vunpack.c.l.b16 %v70
  %v199 = vunpack.c.l.b16 %v71
  %v200 = vunpack.c.l.b16 %v72
  %v201 = vunpack.c.l.b16 %v73
  %v202 = vunpack.c.l.b16 %v74
  %v203 = vunpack.c.l.b16 %v75
  %v204 = vunpack.c.l.b16 %v76
  %v205 = vunpack.c.l.b16 %v77
  %v206 = vunpack.c.l.b16 %v78
  %v207 = vunpack.c.l.b16 %v79
  %v208 = vunpack.c.l.b16 %v80
  %v209 = vunpack.c.l.b16 %v81
  %v210 = vunpack.c.l.b16 %v82
  %v211 = vunpack.c.l.b16 %v83
  %v212 = vunpack.c.l.b16 %v84
  %v213 = vpack.c.b16 %v166, %v165
  %v214 = vpack.c.b16 %v168, %v167
  %v215 = vpack.c.b16 %v170, %v169
  %v216 = vpack.c.b16 %v172, %v171
  %v217 = vpack.c.b16 %v174, %v173
  %v218 = vpack.c.b16 %v176, %v175
  %v219 = vpack.c.b16 %v178, %v177
  %v220 = vpack.c.b16 %v180, %v179
  %v221 = vpack.c.b16 %v182, %v181
  %v222 = vpack.c.b16 %v184, %v183
  %v223 = vpack.c.b16 %v186, %v185
  %v224 = vpack.c.b16 %v188, %v187
  %v225 = vpack.c.b16 %v190, %v189
  %v226 = vpack.c.b16 %v192, %v191
  %v227 = vpack.c.b16 %v194, %v193
  %v228 = vpack.c.b16 %v196, %v195
  %v229 = vpack.c.b16 %v198, %v197
  %v230 = vpack.c.b16 %v200, %v199
  %v231 = vpack.c.b16 %v202, %v201
  %v232 = vpack.c.b16 %v204, %v203
  %v233 = vpack.c.b16 %v206, %v205
  %v234 = vpack.c.b16 %v208, %v207
  %v235 = vpack.c.b16 %v210, %v209
  %v236 = vpack.c.b16 %v212, %v211
  %261 = vmatpush.bf16.msra.mxu0 %v220
  %262 = vmatpush.bf16.msra.mxu0 %v219
  %263 = vmatpush.bf16.msra.mxu0 %v218
  %264 = vmatpush.bf16.msra.mxu0 %v217
  %265 = vmatpush.bf16.msra.mxu0 %v216
  %266 = vmatpush.bf16.msra.mxu0 %v215
  %267 = vmatpush.bf16.msra.mxu0 %v214
  %268 = vmatpush.bf16.msra.mxu0 %v213
  %269 = vmatmul.bf16.gmra.mxu0 %v105
  %v270 = vpop.f32.mrf.mxu0
  %v271 = vadd.f32 0.0, %v270
  %v272 = vpop.f32.mrf.mxu0
  %v273 = vadd.f32 0.0, %v272
  %274 = vmatmul.bf16.gmra.mxu0 %v108
  %v275 = vpop.f32.mrf.mxu0
  %v276 = vadd.f32 0.0, %v275
  %v277 = vpop.f32.mrf.mxu0
  %v278 = vadd.f32 0.0, %v277
  %279 = vdwg.mxu0
  %280 = vmatpush.bf16.msra.mxu0 %v228
  %281 = vmatpush.bf16.msra.mxu0 %v227
  %282 = vmatpush.bf16.msra.mxu0 %v226
  %283 = vmatpush.bf16.msra.mxu0 %v225
  %284 = vmatpush.bf16.msra.mxu0 %v224
  %285 = vmatpush.bf16.msra.mxu0 %v223
  %286 = vmatpush.bf16.msra.mxu0 %v222
  %287 = vmatpush.bf16.msra.mxu0 %v221
  %288 = vmatmul.bf16.gmra.mxu0 %v106
  %v289 = vpop.f32.mrf.mxu0
  %v290 = vadd.f32 %v271, %v289
  %v291 = vpop.f32.mrf.mxu0
  %v292 = vadd.f32 %v273, %v291
  %293 = vmatmul.bf16.gmra.mxu0 %v109
  %v294 = vpop.f32.mrf.mxu0
  %v295 = vadd.f32 %v276, %v294
  %v296 = vpop.f32.mrf.mxu0
  %v297 = vadd.f32 %v278, %v296
  %298 = vdwg.mxu0
  %299 = vmatpush.bf16.msra.mxu0 %v236
  %300 = vmatpush.bf16.msra.mxu0 %v235
  %301 = vmatpush.bf16.msra.mxu0 %v234
  %302 = vmatpush.bf16.msra.mxu0 %v233
  %303 = vmatpush.bf16.msra.mxu0 %v232
  %304 = vmatpush.bf16.msra.mxu0 %v231
  %305 = vmatpush.bf16.msra.mxu0 %v230
  %306 = vmatpush.bf16.msra.mxu0 %v229
  %307 = vmatmul.bf16.gmra.mxu0 %v107
  %v308 = vpop.f32.mrf.mxu0
  %v309 = vadd.f32 %v290, %v308
  %v310 = vpop.f32.mrf.mxu0
  %v311 = vadd.f32 %v292, %v310
  %312 = vmatmul.bf16.gmra.mxu0 %v110
  %v313 = vpop.f32.mrf.mxu0
  %v314 = vadd.f32 %v295, %v313
  %v315 = vpop.f32.mrf.mxu0
  %v316 = vadd.f32 %v297, %v315
  %317 = vdwg.mxu0
  %v318 = vadd.f32 %v25, %v309
  %v319 = vadd.f32 %v26, %v311
  %v320 = vadd.f32 %v27, %v314
  %v321 = vadd.f32 %v28, %v316
  %322 = vst [vmem:[#allocation2] sm:$0xff] %v318
  %323 = vst [vmem:[#allocation2 + $0x8] sm:$0xff] %v319
  %324 = vst [vmem:[#allocation2 + $0x10] sm:$0xff] %v320
  %325 = vst [vmem:[#allocation2 + $0x18] sm:$0xff] %v321
  // Predicated region
  $region22: #{model_forward.11} parent=0 // pred_check
    %p326 = pneg %p17
  $region23: #{model_forward.11} parent=0 // pred_check_branch
    %328 = sbr.rel (%p326) target = $region25
  $region24: #{model_forward.11} parent=0 // pred_region
    %v329 = vld [vmem:[#allocation2] sm:$0xff]
    %v330 = vld [vmem:[#allocation2 + $0x8] sm:$0xff]
    %v331 = vld [vmem:[#allocation2 + $0x10] sm:$0xff]
    %v332 = vld [vmem:[#allocation2 + $0x18] sm:$0xff]
    %v333 = vld [vmem:[%s2] sm:$0x1]
    %v335 = vperm.slane %v333, 0
    %v337 = vadd.f32 %v329, %v335
    %v338 = vadd.f32 %v330, %v335
    %v339 = vadd.f32 %v331, %v335
    %v340 = vadd.f32 %v332, %v335
    %v341 = vld [vmem:[%s3] sm:$0xf]
    %v342 = vld [vmem:[%s3 + $0x4] sm:$0xf]
    %v343 = vld [vmem:[%s3 + $0x8] sm:$0xf]
    %v344 = vld [vmem:[%s3 + $0xc] sm:$0xf]
    %v345 = vunpack.c.l.bf16 %v341
    %v346 = vunpack.c.l.bf16 %v342
    %v347 = vunpack.c.l.bf16 %v343
    %v348 = vunpack.c.l.bf16 %v344
    %v349 = vadd.f32 %v337, %v345
    %v350 = vadd.f32 %v338, %v346
    %v351 = vadd.f32 %v339, %v347
    %v352 = vadd.f32 %v340, %v348
    %v353 = vmax.f32 %v349, 0.0
    %v354 = vmax.f32 %v350, 0.0
    %v355 = vmax.f32 %v351, 0.0
    %v356 = vmax.f32 %v352, 0.0
    %v357 = vpack.c.bf16 %v353, %v353
    %v358 = vpack.c.bf16 %v354, %v354
    %v359 = vpack.c.bf16 %v355, %v355
    %v360 = vpack.c.bf16 %v356, %v356
    %361 = vst [vmem:[%s4] sm:$0xf] %v357
    %362 = vst [vmem:[%s4 + $0x4] sm:$0xf] %v358
    %363 = vst [vmem:[%s4 + $0x8] sm:$0xf] %v359
    %364 = vst [vmem:[%s4 + $0xc] sm:$0xf] %v360
  $region25: #{model_forward.11} parent=0 // pred_fallthru
    _
  // Predicated region
  $region26: #{model_forward.11} parent=0 // pred_check
    _
  $region27: #{model_forward.11} parent=0 // pred_check_branch
    %366 = sbr.rel (0) target = $region29
  $region28: #{model_forward.11} parent=0 // pred_region
    _
  $region29: #{model_forward.11} parent=0 // pred_fallthru
    _
  // Predicated region
  $region30: #{model_forward.11} parent=0 // pred_check
    _
  $region31: #{model_forward.11} parent=0 // pred_check_branch
    %368 = sbr.rel (0) target = $region33
  $region32: #{model_forward.11} parent=0 // pred_region
    _
  $region33: #{model_forward.11} parent=0 // pred_fallthru
    _

// kernel: model_forward.14
$region0: #{model_forward.14}
  #allocation0 [shape = 'u32[]', space=smem, size = 0x4, offset = 0x4, fixed_abs, tag = 'smem constant byte address 0x4 - core index']
  #allocation1 [shape = 'u32[72,128]{1,0:T(1,128)}', space=vmem, size = 0x9000, scoped, tag = 'internal scratch']
  %s0 = inlined_call_operand.vmem [shape: bf16[32,128], index: 0, kind: input, shape index: {}]
  %s1 = inlined_call_operand.vmem [shape: bf16[128,128], index: 1, kind: input, shape index: {}]
  %s2 = inlined_call_operand.vmem [shape: f32[1,128], index: 2, kind: input, shape index: {}]
  %s3 = inlined_call_operand.vmem [shape: bf16[128,128], index: 3, kind: input, shape index: {}]
  %s4 = inlined_call_operand.vmem [shape: f32[1,128], index: 4, kind: input, shape index: {}]
  %s5 = inlined_call_operand.vmem [shape: bf16[32,128], index: 5, kind: output, shape index: {}]
  %s6 = sld [smem:[#allocation0]]
  $region30: #{model_forward.14} parent=0
    _
  %s8 = ssub.s32 1, %s6
  %s9 = scalar_select 0, %s8, %s6
  // Predicated region
  $region2: #{model_forward.14} parent=0 // pred_check
    _
  $region3: #{model_forward.14} parent=0 // pred_check_branch
    %11 = sbr.rel (0) target = $region5
  $region4: #{model_forward.14} parent=0 // pred_region
    _
  $region5: #{model_forward.14} parent=0 // pred_fallthru
    _
  // Predicated region
  $region6: #{model_forward.14} parent=0 // pred_check
    _
  $region7: #{model_forward.14} parent=0 // pred_check_branch
    %13 = sbr.rel (0) target = $region9
  $region8: #{model_forward.14} parent=0 // pred_region
    _
  $region9: #{model_forward.14} parent=0 // pred_fallthru
    _
  // Predicated region
  $region10: #{model_forward.14} parent=0 // pred_check
    _
  $region11: #{model_forward.14} parent=0 // pred_check_branch
    %15 = sbr.rel (0) target = $region13
  $region12: #{model_forward.14} parent=0 // pred_region
    _
  $region13: #{model_forward.14} parent=0 // pred_fallthru
    _
  // Predicated region
  $region14: #{model_forward.14} parent=0 // pred_check
    _
  $region15: #{model_forward.14} parent=0 // pred_check_branch
    %17 = sbr.rel (0) target = $region17
  $region16: #{model_forward.14} parent=0 // pred_region
    _
  $region17: #{model_forward.14} parent=0 // pred_fallthru
    _
  // Predicated region
  $region18: #{model_forward.14} parent=0 // pred_check
    _
  $region19: #{model_forward.14} parent=0 // pred_check_branch
    %19 = sbr.rel (0) target = $region21
  $region20: #{model_forward.14} parent=0 // pred_region
    _
  $region21: #{model_forward.14} parent=0 // pred_fallthru
    _
  %v20 = vld [vmem:[%s0] sm:$0xf]
  %v21 = vld [vmem:[%s0 + $0x4] sm:$0xf]
  %v22 = vld [vmem:[%s0 + $0x8] sm:$0xf]
  %v23 = vld [vmem:[%s0 + $0xc] sm:$0xf]
  %v24 = vld [vmem:[%s1] sm:$0xf]
  %v25 = vld [vmem:[%s1 + $0x4] sm:$0xf]
  %v26 = vld [vmem:[%s1 + $0x8] sm:$0xf]
  %v27 = vld [vmem:[%s1 + $0xc] sm:$0xf]
  %v28 = vld [vmem:[%s1 + $0x10] sm:$0xf]
  %v29 = vld [vmem:[%s1 + $0x14] sm:$0xf]
  %v30 = vld [vmem:[%s1 + $0x18] sm:$0xf]
  %v31 = vld [vmem:[%s1 + $0x1c] sm:$0xf]
  %v32 = vld [vmem:[%s1 + $0x20] sm:$0xf]
  %v33 = vld [vmem:[%s1 + $0x24] sm:$0xf]
  %v34 = vld [vmem:[%s1 + $0x28] sm:$0xf]
  %v35 = vld [vmem:[%s1 + $0x2c] sm:$0xf]
  %v36 = vld [vmem:[%s1 + $0x30] sm:$0xf]
  %v37 = vld [vmem:[%s1 + $0x34] sm:$0xf]
  %v38 = vld [vmem:[%s1 + $0x38] sm:$0xf]
  %v39 = vld [vmem:[%s1 + $0x3c] sm:$0xf]
  %v40 = vld [vmem:[%s2] sm:$0x1]
  %v42 = vperm.slane %v40, 0
  %v48 = vunpack.c.l.b16 %v20
  %v49 = vunpack.c.l.b16 %v21
  %v50 = vunpack.c.l.b16 %v22
  %v51 = vunpack.c.l.b16 %v23
  %v52 = vpack.c.b16 %v49, %v48
  %v53 = vpack.c.b16 %v51, %v50
  %v72 = vunpack.c.l.b16 %v24
  %v73 = vunpack.c.l.b16 %v25
  %v74 = vunpack.c.l.b16 %v26
  %v75 = vunpack.c.l.b16 %v27
  %v76 = vunpack.c.l.b16 %v28
  %v77 = vunpack.c.l.b16 %v29
  %v78 = vunpack.c.l.b16 %v30
  %v79 = vunpack.c.l.b16 %v31
  %v80 = vunpack.c.l.b16 %v32
  %v81 = vunpack.c.l.b16 %v33
  %v82 = vunpack.c.l.b16 %v34
  %v83 = vunpack.c.l.b16 %v35
  %v84 = vunpack.c.l.b16 %v36
  %v85 = vunpack.c.l.b16 %v37
  %v86 = vunpack.c.l.b16 %v38
  %v87 = vunpack.c.l.b16 %v39
  %v88 = vpack.c.b16 %v73, %v72
  %v89 = vpack.c.b16 %v75, %v74
  %v90 = vpack.c.b16 %v77, %v76
  %v91 = vpack.c.b16 %v79, %v78
  %v92 = vpack.c.b16 %v81, %v80
  %v93 = vpack.c.b16 %v83, %v82
  %v94 = vpack.c.b16 %v85, %v84
  %v95 = vpack.c.b16 %v87, %v86
  %104 = vmatpush.bf16.msra.mxu0 %v95
  %105 = vmatpush.bf16.msra.mxu0 %v94
  %106 = vmatpush.bf16.msra.mxu0 %v93
  %107 = vmatpush.bf16.msra.mxu0 %v92
  %108 = vmatpush.bf16.msra.mxu0 %v91
  %109 = vmatpush.bf16.msra.mxu0 %v90
  %110 = vmatpush.bf16.msra.mxu0 %v89
  %111 = vmatpush.bf16.msra.mxu0 %v88
  %112 = vmatmul.bf16.gmra.mxu0 %v52
  %v113 = vpop.f32.mrf.mxu0
  %v114 = vadd.f32 %v42, %v113
  %v115 = vpop.f32.mrf.mxu0
  %v116 = vadd.f32 %v42, %v115
  %117 = vmatmul.bf16.gmra.mxu0 %v53
  %v118 = vpop.f32.mrf.mxu0
  %v119 = vadd.f32 %v42, %v118
  %v120 = vpop.f32.mrf.mxu0
  %v121 = vadd.f32 %v42, %v120
  %122 = vdwg.mxu0
  %v123 = vpack.c.bf16 %v116, %v114
  %v124 = vpack.c.bf16 %v121, %v119
  %v125 = vld [vmem:[%s3] sm:$0xf]
  %v126 = vld [vmem:[%s3 + $0x4] sm:$0xf]
  %v127 = vld [vmem:[%s3 + $0x8] sm:$0xf]
  %v128 = vld [vmem:[%s3 + $0xc] sm:$0xf]
  %v129 = vld [vmem:[%s3 + $0x10] sm:$0xf]
  %v130 = vld [vmem:[%s3 + $0x14] sm:$0xf]
  %v131 = vld [vmem:[%s3 + $0x18] sm:$0xf]
  %v132 = vld [vmem:[%s3 + $0x1c] sm:$0xf]
  %v133 = vld [vmem:[%s3 + $0x20] sm:$0xf]
  %v134 = vld [vmem:[%s3 + $0x24] sm:$0xf]
  %v135 = vld [vmem:[%s3 + $0x28] sm:$0xf]
  %v136 = vld [vmem:[%s3 + $0x2c] sm:$0xf]
  %v137 = vld [vmem:[%s3 + $0x30] sm:$0xf]
  %v138 = vld [vmem:[%s3 + $0x34] sm:$0xf]
  %v139 = vld [vmem:[%s3 + $0x38] sm:$0xf]
  %v140 = vld [vmem:[%s3 + $0x3c] sm:$0xf]
  %v141 = vld [vmem:[%s4] sm:$0x1]
  %v143 = vperm.slane %v141, 0
  %v161 = vunpack.c.l.b16 %v125
  %v162 = vunpack.c.l.b16 %v126
  %v163 = vunpack.c.l.b16 %v127
  %v164 = vunpack.c.l.b16 %v128
  %v165 = vunpack.c.l.b16 %v129
  %v166 = vunpack.c.l.b16 %v130
  %v167 = vunpack.c.l.b16 %v131
  %v168 = vunpack.c.l.b16 %v132
  %v169 = vunpack.c.l.b16 %v133
  %v170 = vunpack.c.l.b16 %v134
  %v171 = vunpack.c.l.b16 %v135
  %v172 = vunpack.c.l.b16 %v136
  %v173 = vunpack.c.l.b16 %v137
  %v174 = vunpack.c.l.b16 %v138
  %v175 = vunpack.c.l.b16 %v139
  %v176 = vunpack.c.l.b16 %v140
  %v177 = vpack.c.b16 %v162, %v161
  %v178 = vpack.c.b16 %v164, %v163
  %v179 = vpack.c.b16 %v166, %v165
  %v180 = vpack.c.b16 %v168, %v167
  %v181 = vpack.c.b16 %v170, %v169
  %v182 = vpack.c.b16 %v172, %v171
  %v183 = vpack.c.b16 %v174, %v173
  %v184 = vpack.c.b16 %v176, %v175
  %193 = vmatpush.bf16.msra.mxu0 %v184
  %194 = vmatpush.bf16.msra.mxu0 %v183
  %195 = vmatpush.bf16.msra.mxu0 %v182
  %196 = vmatpush.bf16.msra.mxu0 %v181
  %197 = vmatpush.bf16.msra.mxu0 %v180
  %198 = vmatpush.bf16.msra.mxu0 %v179
  %199 = vmatpush.bf16.msra.mxu0 %v178
  %200 = vmatpush.bf16.msra.mxu0 %v177
  %201 = vmatmul.bf16.gmra.mxu0 %v123
  %v202 = vpop.f32.mrf.mxu0
  %v203 = vadd.f32 %v143, %v202
  %v204 = vpop.f32.mrf.mxu0
  %v205 = vadd.f32 %v143, %v204
  %206 = vmatmul.bf16.gmra.mxu0 %v124
  %v207 = vpop.f32.mrf.mxu0
  %v208 = vadd.f32 %v143, %v207
  %v209 = vpop.f32.mrf.mxu0
  %v210 = vadd.f32 %v143, %v209
  %211 = vdwg.mxu0
  %v212 = vadd.f32 %v203, %v114
  %v213 = vadd.f32 %v205, %v116
  %v214 = vadd.f32 %v208, %v119
  %v215 = vadd.f32 %v210, %v121
  %v216 = vmax.f32 %v212, 0.0
  %v217 = vmax.f32 %v213, 0.0
  %v218 = vmax.f32 %v214, 0.0
  %v219 = vmax.f32 %v215, 0.0
  %v220 = vpack.c.bf16 %v216, %v216
  %v221 = vpack.c.bf16 %v217, %v217
  %v222 = vpack.c.bf16 %v218, %v218
  %v223 = vpack.c.bf16 %v219, %v219
  %224 = vst [vmem:[%s5] sm:$0xf] %v220
  %225 = vst [vmem:[%s5 + $0x4] sm:$0xf] %v221
  %226 = vst [vmem:[%s5 + $0x8] sm:$0xf] %v222
  %227 = vst [vmem:[%s5 + $0xc] sm:$0xf] %v223
  // Predicated region
  $region22: #{model_forward.14} parent=0 // pred_check
    _
  $region23: #{model_forward.14} parent=0 // pred_check_branch
    %229 = sbr.rel (0) target = $region25
  $region24: #{model_forward.14} parent=0 // pred_region
    _
  $region25: #{model_forward.14} parent=0 // pred_fallthru
    _
  // Predicated region
  $region26: #{model_forward.14} parent=0 // pred_check
    _
  $region27: #{model_forward.14} parent=0 // pred_check_branch
    %231 = sbr.rel (0) target = $region29
  $region28: #{model_forward.14} parent=0 // pred_region
    _
  $region29: #{model_forward.14} parent=0 // pred_fallthru
    _

// kernel: model_forward.13
$region0: #{model_forward.13}
  #allocation0 [shape = 'u32[]', space=smem, size = 0x4, offset = 0x4, fixed_abs, tag = 'smem constant byte address 0x4 - core index']
  #allocation1 [shape = 'u32[72,128]{1,0:T(1,128)}', space=vmem, size = 0x9000, scoped, tag = 'internal scratch']
  %s0 = inlined_call_operand.vmem [shape: f32[32,128], index: 0, kind: input, shape index: {}]
  %s1 = inlined_call_operand.vmem [shape: bf16[128,128], index: 1, kind: input, shape index: {}]
  %s2 = inlined_call_operand.vmem [shape: f32[128,128], index: 2, kind: input, shape index: {}]
  %s3 = inlined_call_operand.vmem [shape: f32[1,128], index: 3, kind: input, shape index: {}]
  %s4 = inlined_call_operand.vmem [shape: f32[32,128], index: 4, kind: output, shape index: {0}]
  %s5 = inlined_call_operand.vmem [shape: f32[32,1], index: 5, kind: output, shape index: {1}]
  %s6 = inlined_call_operand.vmem [shape: f32[32,1], index: 6, kind: output, shape index: {2}]
  %7 = xla_tuple %s4, %s5, %s6
  %s8 = sld [smem:[#allocation0]]
  $region42: #{model_forward.13} parent=0
    _
  %s10 = ssub.s32 1, %s8
  %s11 = scalar_select 0, %s10, %s8
  // Predicated region
  $region2: #{model_forward.13} parent=0 // pred_check
    _
  $region3: #{model_forward.13} parent=0 // pred_check_branch
    %13 = sbr.rel (0) target = $region5
  $region4: #{model_forward.13} parent=0 // pred_region
    _
  $region5: #{model_forward.13} parent=0 // pred_fallthru
    _
  // Predicated region
  $region6: #{model_forward.13} parent=0 // pred_check
    _
  $region7: #{model_forward.13} parent=0 // pred_check_branch
    %15 = sbr.rel (0) target = $region9
  $region8: #{model_forward.13} parent=0 // pred_region
    _
  $region9: #{model_forward.13} parent=0 // pred_fallthru
    _
  // Predicated region
  $region10: #{model_forward.13} parent=0 // pred_check
    _
  $region11: #{model_forward.13} parent=0 // pred_check_branch
    %17 = sbr.rel (0) target = $region13
  $region12: #{model_forward.13} parent=0 // pred_region
    _
  $region13: #{model_forward.13} parent=0 // pred_fallthru
    _
  // Predicated region
  $region14: #{model_forward.13} parent=0 // pred_check
    _
  $region15: #{model_forward.13} parent=0 // pred_check_branch
    %19 = sbr.rel (0) target = $region17
  $region16: #{model_forward.13} parent=0 // pred_region
    _
  $region17: #{model_forward.13} parent=0 // pred_fallthru
    _
  %v20 = vld [vmem:[%s0] sm:$0xff]
  %v21 = vld [vmem:[%s0 + $0x8] sm:$0xff]
  %v22 = vld [vmem:[%s0 + $0x10] sm:$0xff]
  %v23 = vld [vmem:[%s0 + $0x18] sm:$0xff]
  %v24 = vpack.c.bf16 %v21, %v20
  %v25 = vpack.c.bf16 %v23, %v22
  %v26 = vld [vmem:[%s1] sm:$0xf]
  %v27 = vld [vmem:[%s1 + $0x4] sm:$0xf]
  %v28 = vld [vmem:[%s1 + $0x8] sm:$0xf]
  %v29 = vld [vmem:[%s1 + $0xc] sm:$0xf]
  %v30 = vld [vmem:[%s1 + $0x10] sm:$0xf]
  %v31 = vld [vmem:[%s1 + $0x14] sm:$0xf]
  %v32 = vld [vmem:[%s1 + $0x18] sm:$0xf]
  %v33 = vld [vmem:[%s1 + $0x1c] sm:$0xf]
  %v34 = vld [vmem:[%s1 + $0x20] sm:$0xf]
  %v35 = vld [vmem:[%s1 + $0x24] sm:$0xf]
  %v36 = vld [vmem:[%s1 + $0x28] sm:$0xf]
  %v37 = vld [vmem:[%s1 + $0x2c] sm:$0xf]
  %v38 = vld [vmem:[%s1 + $0x30] sm:$0xf]
  %v39 = vld [vmem:[%s1 + $0x34] sm:$0xf]
  %v40 = vld [vmem:[%s1 + $0x38] sm:$0xf]
  %v41 = vld [vmem:[%s1 + $0x3c] sm:$0xf]
  %v58 = vunpack.c.l.b16 %v26
  %v59 = vunpack.c.l.b16 %v27
  %v60 = vunpack.c.l.b16 %v28
  %v61 = vunpack.c.l.b16 %v29
  %v62 = vunpack.c.l.b16 %v30
  %v63 = vunpack.c.l.b16 %v31
  %v64 = vunpack.c.l.b16 %v32
  %v65 = vunpack.c.l.b16 %v33
  %v66 = vunpack.c.l.b16 %v34
  %v67 = vunpack.c.l.b16 %v35
  %v68 = vunpack.c.l.b16 %v36
  %v69 = vunpack.c.l.b16 %v37
  %v70 = vunpack.c.l.b16 %v38
  %v71 = vunpack.c.l.b16 %v39
  %v72 = vunpack.c.l.b16 %v40
  %v73 = vunpack.c.l.b16 %v41
  %v74 = vpack.c.b16 %v59, %v58
  %v75 = vpack.c.b16 %v61, %v60
  %v76 = vpack.c.b16 %v63, %v62
  %v77 = vpack.c.b16 %v65, %v64
  %v78 = vpack.c.b16 %v67, %v66
  %v79 = vpack.c.b16 %v69, %v68
  %v80 = vpack.c.b16 %v71, %v70
  %v81 = vpack.c.b16 %v73, %v72
  %90 = vmatpush.bf16.msra.mxu0 %v81
  %91 = vmatpush.bf16.msra.mxu0 %v80
  %92 = vmatpush.bf16.msra.mxu0 %v79
  %93 = vmatpush.bf16.msra.mxu0 %v78
  %94 = vmatpush.bf16.msra.mxu0 %v77
  %95 = vmatpush.bf16.msra.mxu0 %v76
  %96 = vmatpush.bf16.msra.mxu0 %v75
  %97 = vmatpush.bf16.msra.mxu0 %v74
  %98 = vmatmul.bf16.gmra.mxu0 %v24
  %v99 = vpop.f32.mrf.mxu0
  %v100 = vadd.f32 0.0, %v99
  %v101 = vpop.f32.mrf.mxu0
  %v102 = vadd.f32 0.0, %v101
  %103 = vmatmul.bf16.gmra.mxu0 %v25
  %v104 = vpop.f32.mrf.mxu0
  %v105 = vadd.f32 0.0, %v104
  %v106 = vpop.f32.mrf.mxu0
  %v107 = vadd.f32 0.0, %v106
  %108 = vdwg.mxu0
  %v109 = vld [vmem:[%s3] sm:$0x1]
  %v110 = vmul.f32 %v100, 2.0
  %v111 = vmul.f32 %v102, 2.0
  %v112 = vmul.f32 %v105, 2.0
  %v113 = vmul.f32 %v107, 2.0
  %v115 = vperm.slane %v109, 0
  %v117 = vsub.f32 %v115, %v110
  %v118 = vsub.f32 %v115, %v111
  %v119 = vsub.f32 %v115, %v112
  %v120 = vsub.f32 %v115, %v113
  %v121 = vlaneseq
  %v122 = vand.u32 %v121, 127
  %vm123 = vcmp.lt.s32.totalorder %v122, 32
  %v124 = vsel %vm123, %v117, 1e+30
  %v125 = vsel %vm123, %v118, 1e+30
  %v126 = vsel %vm123, %v119, 1e+30
  %v127 = vsel %vm123, %v120, 1e+30
  %128 = vmin.xlane.f32.xlu0 %v124
  %v129 = vpop.xlane.xlu0 %128
  %130 = vmin.xlane.f32.xlu0 %v125
  %v131 = vpop.xlane.xlu0 %130
  %132 = vmin.xlane.f32.xlu0 %v126
  %v133 = vpop.xlane.xlu0 %132
  %134 = vmin.xlane.f32.xlu0 %v127
  %v135 = vpop.xlane.xlu0 %134
  %v136 = vcvt.s32.f32 %v122
  %vm137 = vcmp.le.f32.partialorder %v124, %v129
  %vm138 = vcmp.le.f32.partialorder %v125, %v131
  %vm139 = vcmp.le.f32.partialorder %v126, %v133
  %vm140 = vcmp.le.f32.partialorder %v127, %v135
  %v141 = vsel %vm137, %v136, 128.0
  %v142 = vsel %vm138, %v136, 128.0
  %v143 = vsel %vm139, %v136, 128.0
  %v144 = vsel %vm140, %v136, 128.0
  %145 = vmin.xlane.f32.xlu0 %v141
  %v146 = vpop.xlane.xlu0 %145
  %147 = vmin.xlane.f32.xlu0 %v142
  %v148 = vpop.xlane.xlu0 %147
  %149 = vmin.xlane.f32.xlu0 %v143
  %v150 = vpop.xlane.xlu0 %149
  %151 = vmin.xlane.f32.xlu0 %v144
  %v152 = vpop.xlane.xlu0 %151
  %vm153 = vcmp.eq.f32.partialorder %v136, %v146
  %vm154 = vcmp.eq.f32.partialorder %v136, %v148
  %vm155 = vcmp.eq.f32.partialorder %v136, %v150
  %vm156 = vcmp.eq.f32.partialorder %v136, %v152
  %v157 = vsel %vm153, 1, 0
  %v158 = vsel %vm154, 1, 0
  %v159 = vsel %vm155, 1, 0
  %v160 = vsel %vm156, 1, 0
  %v161 = vcvt.s32.f32 %v157
  %v162 = vcvt.s32.f32 %v158
  %v163 = vcvt.s32.f32 %v159
  %v164 = vcvt.s32.f32 %v160
  %v165 = vld [vmem:[%s2] sm:$0xff]
  %v166 = vld [vmem:[%s2 + $0x8] sm:$0xff]
  %v167 = vld [vmem:[%s2 + $0x10] sm:$0xff]
  %v168 = vld [vmem:[%s2 + $0x18] sm:$0xff]
  %v169 = vld [vmem:[%s2 + $0x20] sm:$0xff]
  %v170 = vld [vmem:[%s2 + $0x28] sm:$0xff]
  %v171 = vld [vmem:[%s2 + $0x30] sm:$0xff]
  %v172 = vld [vmem:[%s2 + $0x38] sm:$0xff]
  %v173 = vld [vmem:[%s2 + $0x40] sm:$0xff]
  %v174 = vld [vmem:[%s2 + $0x48] sm:$0xff]
  %v175 = vld [vmem:[%s2 + $0x50] sm:$0xff]
  %v176 = vld [vmem:[%s2 + $0x58] sm:$0xff]
  %v177 = vld [vmem:[%s2 + $0x60] sm:$0xff]
  %v178 = vld [vmem:[%s2 + $0x68] sm:$0xff]
  %v179 = vld [vmem:[%s2 + $0x70] sm:$0xff]
  %v180 = vld [vmem:[%s2 + $0x78] sm:$0xff]
  %181 = vmatpush.msra.mxu0 %v180
  %182 = vmatpush.msra.mxu0 %v179
  %183 = vmatpush.msra.mxu0 %v178
  %184 = vmatpush.msra.mxu0 %v177
  %185 = vmatpush.msra.mxu0 %v176
  %186 = vmatpush.msra.mxu0 %v175
  %187 = vmatpush.msra.mxu0 %v174
  %188 = vmatpush.msra.mxu0 %v173
  %189 = vmatpush.msra.mxu0 %v172
  %190 = vmatpush.msra.mxu0 %v171
  %191 = vmatpush.msra.mxu0 %v170
  %192 = vmatpush.msra.mxu0 %v169
  %193 = vmatpush.msra.mxu0 %v168
  %194 = vmatpush.msra.mxu0 %v167
  %195 = vmatpush.msra.mxu0 %v166
  %196 = vmatpush.msra.mxu0 %v165
  %197 = vmatmul.f32.gmra.mxu0 %v161
  %v198 = vpop.f32.mrf.mxu0
  %v199 = vadd.f32 0.0, %v198
  %200 = vmatmul.f32.gmra.mxu0 %v162
  %v201 = vpop.f32.mrf.mxu0
  %v202 = vadd.f32 0.0, %v201
  %203 = vmatmul.f32.gmra.mxu0 %v163
  %v204 = vpop.f32.mrf.mxu0
  %v205 = vadd.f32 0.0, %v204
  %206 = vmatmul.f32.gmra.mxu0 %v164
  %v207 = vpop.f32.mrf.mxu0
  %v208 = vadd.f32 0.0, %v207
  %209 = vdwg.mxu0
  %210 = vst [vmem:[%s4] sm:$0xff] %v199
  %211 = vst [vmem:[%s4 + $0x8] sm:$0xff] %v202
  %212 = vst [vmem:[%s4 + $0x10] sm:$0xff] %v205
  %213 = vst [vmem:[%s4 + $0x18] sm:$0xff] %v208
  %vm214 = vcmask 7168
  %215 = vst.msk [vmem:[%s5] sm:$0xff] %vm214, %v146
  %216 = vst.msk [vmem:[%s5 + $0x8] sm:$0xff] %vm214, %v148
  %217 = vst.msk [vmem:[%s5 + $0x10] sm:$0xff] %vm214, %v150
  %218 = vst.msk [vmem:[%s5 + $0x18] sm:$0xff] %vm214, %v152
  %v219 = vsub.f32 %v199, %v20
  %v220 = vsub.f32 %v202, %v21
  %v221 = vsub.f32 %v205, %v22
  %v222 = vsub.f32 %v208, %v23
  %v223 = vmul.f32 %v219, %v219
  %v224 = vmul.f32 %v220, %v220
  %v225 = vmul.f32 %v221, %v221
  %v226 = vmul.f32 %v222, %v222
  %227 = vadd.xlane.f32.xlu0 %v223
  %v228 = vpop.xlane.xlu0 %227
  %229 = vadd.xlane.f32.xlu0 %v224
  %v230 = vpop.xlane.xlu0 %229
  %231 = vadd.xlane.f32.xlu0 %v225
  %v232 = vpop.xlane.xlu0 %231
  %233 = vadd.xlane.f32.xlu0 %v226
  %v234 = vpop.xlane.xlu0 %233
  %235 = vst.msk [vmem:[%s6] sm:$0xff] %vm214, %v228
  %236 = vst.msk [vmem:[%s6 + $0x8] sm:$0xff] %vm214, %v230
  %237 = vst.msk [vmem:[%s6 + $0x10] sm:$0xff] %vm214, %v232
  %238 = vst.msk [vmem:[%s6 + $0x18] sm:$0xff] %vm214, %v234
  // Predicated region
  $region18: #{model_forward.13} parent=0 // pred_check
    _
  $region19: #{model_forward.13} parent=0 // pred_check_branch
    %240 = sbr.rel (0) target = $region21
  $region20: #{model_forward.13} parent=0 // pred_region
    _
  $region21: #{model_forward.13} parent=0 // pred_fallthru
    _
  // Predicated region
  $region22: #{model_forward.13} parent=0 // pred_check
    _
  $region23: #{model_forward.13} parent=0 // pred_check_branch
    %242 = sbr.rel (0) target = $region25
  $region24: #{model_forward.13} parent=0 // pred_region
    _
  $region25: #{model_forward.13} parent=0 // pred_fallthru
    _
  // Predicated region
  $region26: #{model_forward.13} parent=0 // pred_check
    _
  $region27: #{model_forward.13} parent=0 // pred_check_branch
    %244 = sbr.rel (0) target = $region29
  $region28: #{model_forward.13} parent=0 // pred_region
    _
  $region29: #{model_forward.13} parent=0 // pred_fallthru
    _
  // Predicated region
  $region30: #{model_forward.13} parent=0 // pred_check
    _
  $region31: #{model_forward.13} parent=0 // pred_check_branch
    %246 = sbr.rel (0) target = $region33
  $region32: #{model_forward.13} parent=0 // pred_region
    _
  $region33: #{model_forward.13} parent=0 // pred_fallthru
    _
  // Predicated region
  $region34: #{model_forward.13} parent=0 // pred_check
    _
  $region35: #{model_forward.13} parent=0 // pred_check_branch
    %248 = sbr.rel (0) target = $region37
  $region36: #{model_forward.13} parent=0 // pred_region
    _
  $region37: #{model_forward.13} parent=0 // pred_fallthru
    _
  // Predicated region
  $region38: #{model_forward.13} parent=0 // pred_check
    _
  $region39: #{model_forward.13} parent=0 // pred_check_branch
    %250 = sbr.rel (0) target = $region41
  $region40: #{model_forward.13} parent=0 // pred_region
    _
  $region41: #{model_forward.13} parent=0 // pred_fallthru
    _

// kernel: model_forward.16
$region0: #{model_forward.16}
  #allocation0 [shape = 'u32[]', space=smem, size = 0x4, offset = 0x4, fixed_abs, tag = 'smem constant byte address 0x4 - core index']
  #allocation1 [shape = 'u32[72,128]{1,0:T(1,128)}', space=vmem, size = 0x9000, scoped, tag = 'internal scratch']
  #allocation2 [shape = 'f32[32,128]{1,0:T(8,128)}', space=vmem, size = 0x4000, scoped, tag = 'scratch operand']
  %s0 = inlined_call_operand.vmem [shape: bf16[32,128], index: 0, kind: input, shape index: {}]
  %s1 = inlined_call_operand.vmem [shape: bf16[128,128], index: 1, kind: input, shape index: {}]
  %s2 = inlined_call_operand.vmem [shape: f32[1,128], index: 2, kind: input, shape index: {}]
  %s3 = inlined_call_operand.vmem [shape: bf16[32,128], index: 3, kind: output, shape index: {}]
  %s4 = sld [smem:[#allocation0]]
  $region30: #{model_forward.16} parent=0
    _
  %s6 = ssub.s32 1, %s4
  %s7 = scalar_select 0, %s6, %s4
  // Predicated region
  $region2: #{model_forward.16} parent=0 // pred_check
    _
  $region3: #{model_forward.16} parent=0 // pred_check_branch
    %9 = sbr.rel (0) target = $region5
  $region4: #{model_forward.16} parent=0 // pred_region
    _
  $region5: #{model_forward.16} parent=0 // pred_fallthru
    _
  // Predicated region
  $region6: #{model_forward.16} parent=0 // pred_check
    _
  $region7: #{model_forward.16} parent=0 // pred_check_branch
    %11 = sbr.rel (0) target = $region9
  $region8: #{model_forward.16} parent=0 // pred_region
    _
  $region9: #{model_forward.16} parent=0 // pred_fallthru
    _
  // Predicated region
  $region10: #{model_forward.16} parent=0 // pred_check
    _
  $region11: #{model_forward.16} parent=0 // pred_check_branch
    %13 = sbr.rel (0) target = $region13
  $region12: #{model_forward.16} parent=0 // pred_region
    _
  $region13: #{model_forward.16} parent=0 // pred_fallthru
    _
  %p14 = scmp.eq.s32.totalorder 0, 0
  // Predicated region
  $region14: #{model_forward.16} parent=0 // pred_check
    %p15 = pneg %p14
  $region15: #{model_forward.16} parent=0 // pred_check_branch
    %17 = sbr.rel (%p15) target = $region17
  $region16: #{model_forward.16} parent=0 // pred_region
    %18 = vst [vmem:[#allocation2] sm:$0xff] 0.0
    %19 = vst [vmem:[#allocation2 + $0x8] sm:$0xff] 0.0
    %20 = vst [vmem:[#allocation2 + $0x10] sm:$0xff] 0.0
    %21 = vst [vmem:[#allocation2 + $0x18] sm:$0xff] 0.0
  $region17: #{model_forward.16} parent=0 // pred_fallthru
    _
  %v22 = vld [vmem:[#allocation2] sm:$0xff]
  %v23 = vld [vmem:[#allocation2 + $0x8] sm:$0xff]
  %v24 = vld [vmem:[#allocation2 + $0x10] sm:$0xff]
  %v25 = vld [vmem:[#allocation2 + $0x18] sm:$0xff]
  %v26 = vld [vmem:[%s0] sm:$0xf]
  %v27 = vld [vmem:[%s0 + $0x4] sm:$0xf]
  %v28 = vld [vmem:[%s0 + $0x8] sm:$0xf]
  %v29 = vld [vmem:[%s0 + $0xc] sm:$0xf]
  %v30 = vld [vmem:[%s1] sm:$0xf]
  %v31 = vld [vmem:[%s1 + $0x4] sm:$0xf]
  %v32 = vld [vmem:[%s1 + $0x8] sm:$0xf]
  %v33 = vld [vmem:[%s1 + $0xc] sm:$0xf]
  %v34 = vld [vmem:[%s1 + $0x10] sm:$0xf]
  %v35 = vld [vmem:[%s1 + $0x14] sm:$0xf]
  %v36 = vld [vmem:[%s1 + $0x18] sm:$0xf]
  %v37 = vld [vmem:[%s1 + $0x1c] sm:$0xf]
  %v38 = vld [vmem:[%s1 + $0x20] sm:$0xf]
  %v39 = vld [vmem:[%s1 + $0x24] sm:$0xf]
  %v40 = vld [vmem:[%s1 + $0x28] sm:$0xf]
  %v41 = vld [vmem:[%s1 + $0x2c] sm:$0xf]
  %v42 = vld [vmem:[%s1 + $0x30] sm:$0xf]
  %v43 = vld [vmem:[%s1 + $0x34] sm:$0xf]
  %v44 = vld [vmem:[%s1 + $0x38] sm:$0xf]
  %v45 = vld [vmem:[%s1 + $0x3c] sm:$0xf]
  %v50 = vunpack.c.l.b16 %v26
  %v51 = vunpack.c.l.b16 %v27
  %v52 = vunpack.c.l.b16 %v28
  %v53 = vunpack.c.l.b16 %v29
  %v54 = vpack.c.b16 %v51, %v50
  %v55 = vpack.c.b16 %v53, %v52
  %v74 = vunpack.c.l.b16 %v30
  %v75 = vunpack.c.l.b16 %v31
  %v76 = vunpack.c.l.b16 %v32
  %v77 = vunpack.c.l.b16 %v33
  %v78 = vunpack.c.l.b16 %v34
  %v79 = vunpack.c.l.b16 %v35
  %v80 = vunpack.c.l.b16 %v36
  %v81 = vunpack.c.l.b16 %v37
  %v82 = vunpack.c.l.b16 %v38
  %v83 = vunpack.c.l.b16 %v39
  %v84 = vunpack.c.l.b16 %v40
  %v85 = vunpack.c.l.b16 %v41
  %v86 = vunpack.c.l.b16 %v42
  %v87 = vunpack.c.l.b16 %v43
  %v88 = vunpack.c.l.b16 %v44
  %v89 = vunpack.c.l.b16 %v45
  %v90 = vpack.c.b16 %v75, %v74
  %v91 = vpack.c.b16 %v77, %v76
  %v92 = vpack.c.b16 %v79, %v78
  %v93 = vpack.c.b16 %v81, %v80
  %v94 = vpack.c.b16 %v83, %v82
  %v95 = vpack.c.b16 %v85, %v84
  %v96 = vpack.c.b16 %v87, %v86
  %v97 = vpack.c.b16 %v89, %v88
  %106 = vmatpush.bf16.msra.mxu0 %v97
  %107 = vmatpush.bf16.msra.mxu0 %v96
  %108 = vmatpush.bf16.msra.mxu0 %v95
  %109 = vmatpush.bf16.msra.mxu0 %v94
  %110 = vmatpush.bf16.msra.mxu0 %v93
  %111 = vmatpush.bf16.msra.mxu0 %v92
  %112 = vmatpush.bf16.msra.mxu0 %v91
  %113 = vmatpush.bf16.msra.mxu0 %v90
  %114 = vmatmul.bf16.gmra.mxu0 %v54
  %v115 = vpop.f32.mrf.mxu0
  %v116 = vadd.f32 0.0, %v115
  %v117 = vpop.f32.mrf.mxu0
  %v118 = vadd.f32 0.0, %v117
  %119 = vmatmul.bf16.gmra.mxu0 %v55
  %v120 = vpop.f32.mrf.mxu0
  %v121 = vadd.f32 0.0, %v120
  %v122 = vpop.f32.mrf.mxu0
  %v123 = vadd.f32 0.0, %v122
  %124 = vdwg.mxu0
  %v125 = vadd.f32 %v22, %v116
  %v126 = vadd.f32 %v23, %v118
  %v127 = vadd.f32 %v24, %v121
  %v128 = vadd.f32 %v25, %v123
  %129 = vst [vmem:[#allocation2] sm:$0xff] %v125
  %130 = vst [vmem:[#allocation2 + $0x8] sm:$0xff] %v126
  %131 = vst [vmem:[#allocation2 + $0x10] sm:$0xff] %v127
  %132 = vst [vmem:[#allocation2 + $0x18] sm:$0xff] %v128
  // Predicated region
  $region18: #{model_forward.16} parent=0 // pred_check
    %p133 = pneg %p14
  $region19: #{model_forward.16} parent=0 // pred_check_branch
    %135 = sbr.rel (%p133) target = $region21
  $region20: #{model_forward.16} parent=0 // pred_region
    %v136 = vld [vmem:[#allocation2] sm:$0xff]
    %v137 = vld [vmem:[#allocation2 + $0x8] sm:$0xff]
    %v138 = vld [vmem:[#allocation2 + $0x10] sm:$0xff]
    %v139 = vld [vmem:[#allocation2 + $0x18] sm:$0xff]
    %v140 = vld [vmem:[%s2] sm:$0x1]
    %v142 = vperm.slane %v140, 0
    %v144 = vadd.f32 %v136, %v142
    %v145 = vadd.f32 %v137, %v142
    %v146 = vadd.f32 %v138, %v142
    %v147 = vadd.f32 %v139, %v142
    %v148 = vpack.c.bf16 %v144, %v144
    %v149 = vpack.c.bf16 %v145, %v145
    %v150 = vpack.c.bf16 %v146, %v146
    %v151 = vpack.c.bf16 %v147, %v147
    %152 = vst [vmem:[%s3] sm:$0xf] %v148
    %153 = vst [vmem:[%s3 + $0x4] sm:$0xf] %v149
    %154 = vst [vmem:[%s3 + $0x8] sm:$0xf] %v150
    %155 = vst [vmem:[%s3 + $0xc] sm:$0xf] %v151
  $region21: #{model_forward.16} parent=0 // pred_fallthru
    _
  // Predicated region
  $region22: #{model_forward.16} parent=0 // pred_check
    _
  $region23: #{model_forward.16} parent=0 // pred_check_branch
    %157 = sbr.rel (0) target = $region25
  $region24: #{model_forward.16} parent=0 // pred_region
    _
  $region25: #{model_forward.16} parent=0 // pred_fallthru
    _
  // Predicated region
  $region26: #{model_forward.16} parent=0 // pred_check
    _
  $region27: #{model_forward.16} parent=0 // pred_check_branch
    %159 = sbr.rel (0) target = $region29
  $region28: #{model_forward.16} parent=0 // pred_region
    _
  $region29: #{model_forward.16} parent=0 // pred_fallthru
    _

// kernel: model_forward.17
$region0: #{model_forward.17}
  #allocation0 [shape = 'u32[]', space=smem, size = 0x4, offset = 0x4, fixed_abs, tag = 'smem constant byte address 0x4 - core index']
  #allocation1 [shape = 'u32[72,128]{1,0:T(1,128)}', space=vmem, size = 0x9000, scoped, tag = 'internal scratch']
  #allocation2 [shape = 'f32[128,128]{1,0:T(8,128)}', space=vmem, size = 0x10000, scoped, tag = 'scratch operand']
  %s0 = inlined_call_operand.vmem [shape: bf16[128,128], index: 0, kind: input, shape index: {}]
  %s1 = inlined_call_operand.vmem [shape: bf16[128,128], index: 1, kind: input, shape index: {}]
  %s2 = inlined_call_operand.vmem [shape: f32[1,128], index: 2, kind: input, shape index: {}]
  %s3 = inlined_call_operand.vmem [shape: f32[128,128], index: 3, kind: output, shape index: {}]
  %s4 = sld [smem:[#allocation0]]
  $region30: #{model_forward.17} parent=0
    _
  %s6 = ssub.s32 1, %s4
  %s7 = scalar_select 0, %s6, %s4
  // Predicated region
  $region2: #{model_forward.17} parent=0 // pred_check
    _
  $region3: #{model_forward.17} parent=0 // pred_check_branch
    %9 = sbr.rel (0) target = $region5
  $region4: #{model_forward.17} parent=0 // pred_region
    _
  $region5: #{model_forward.17} parent=0 // pred_fallthru
    _
  // Predicated region
  $region6: #{model_forward.17} parent=0 // pred_check
    _
  $region7: #{model_forward.17} parent=0 // pred_check_branch
    %11 = sbr.rel (0) target = $region9
  $region8: #{model_forward.17} parent=0 // pred_region
    _
  $region9: #{model_forward.17} parent=0 // pred_fallthru
    _
  // Predicated region
  $region10: #{model_forward.17} parent=0 // pred_check
    _
  $region11: #{model_forward.17} parent=0 // pred_check_branch
    %13 = sbr.rel (0) target = $region13
  $region12: #{model_forward.17} parent=0 // pred_region
    _
  $region13: #{model_forward.17} parent=0 // pred_fallthru
    _
  %p14 = scmp.eq.s32.totalorder 0, 0
  // Predicated region
  $region14: #{model_forward.17} parent=0 // pred_check
    %p15 = pneg %p14
  $region15: #{model_forward.17} parent=0 // pred_check_branch
    %17 = sbr.rel (%p15) target = $region17
  $region16: #{model_forward.17} parent=0 // pred_region
    %18 = vst [vmem:[#allocation2] sm:$0xff] 0.0
    %19 = vst [vmem:[#allocation2 + $0x8] sm:$0xff] 0.0
    %20 = vst [vmem:[#allocation2 + $0x10] sm:$0xff] 0.0
    %21 = vst [vmem:[#allocation2 + $0x18] sm:$0xff] 0.0
    %22 = vst [vmem:[#allocation2 + $0x20] sm:$0xff] 0.0
    %23 = vst [vmem:[#allocation2 + $0x28] sm:$0xff] 0.0
    %24 = vst [vmem:[#allocation2 + $0x30] sm:$0xff] 0.0
    %25 = vst [vmem:[#allocation2 + $0x38] sm:$0xff] 0.0
    %26 = vst [vmem:[#allocation2 + $0x40] sm:$0xff] 0.0
    %27 = vst [vmem:[#allocation2 + $0x48] sm:$0xff] 0.0
    %28 = vst [vmem:[#allocation2 + $0x50] sm:$0xff] 0.0
    %29 = vst [vmem:[#allocation2 + $0x58] sm:$0xff] 0.0
    %30 = vst [vmem:[#allocation2 + $0x60] sm:$0xff] 0.0
    %31 = vst [vmem:[#allocation2 + $0x68] sm:$0xff] 0.0
    %32 = vst [vmem:[#allocation2 + $0x70] sm:$0xff] 0.0
    %33 = vst [vmem:[#allocation2 + $0x78] sm:$0xff] 0.0
  $region17: #{model_forward.17} parent=0 // pred_fallthru
    _
  %v34 = vld [vmem:[#allocation2] sm:$0xff]
  %v35 = vld [vmem:[#allocation2 + $0x8] sm:$0xff]
  %v36 = vld [vmem:[#allocation2 + $0x10] sm:$0xff]
  %v37 = vld [vmem:[#allocation2 + $0x18] sm:$0xff]
  %v38 = vld [vmem:[#allocation2 + $0x20] sm:$0xff]
  %v39 = vld [vmem:[#allocation2 + $0x28] sm:$0xff]
  %v40 = vld [vmem:[#allocation2 + $0x30] sm:$0xff]
  %v41 = vld [vmem:[#allocation2 + $0x38] sm:$0xff]
  %v42 = vld [vmem:[#allocation2 + $0x40] sm:$0xff]
  %v43 = vld [vmem:[#allocation2 + $0x48] sm:$0xff]
  %v44 = vld [vmem:[#allocation2 + $0x50] sm:$0xff]
  %v45 = vld [vmem:[#allocation2 + $0x58] sm:$0xff]
  %v46 = vld [vmem:[#allocation2 + $0x60] sm:$0xff]
  %v47 = vld [vmem:[#allocation2 + $0x68] sm:$0xff]
  %v48 = vld [vmem:[#allocation2 + $0x70] sm:$0xff]
  %v49 = vld [vmem:[#allocation2 + $0x78] sm:$0xff]
  %v50 = vld [vmem:[%s0] sm:$0xf]
  %v51 = vld [vmem:[%s0 + $0x4] sm:$0xf]
  %v52 = vld [vmem:[%s0 + $0x8] sm:$0xf]
  %v53 = vld [vmem:[%s0 + $0xc] sm:$0xf]
  %v54 = vld [vmem:[%s0 + $0x10] sm:$0xf]
  %v55 = vld [vmem:[%s0 + $0x14] sm:$0xf]
  %v56 = vld [vmem:[%s0 + $0x18] sm:$0xf]
  %v57 = vld [vmem:[%s0 + $0x1c] sm:$0xf]
  %v58 = vld [vmem:[%s0 + $0x20] sm:$0xf]
  %v59 = vld [vmem:[%s0 + $0x24] sm:$0xf]
  %v60 = vld [vmem:[%s0 + $0x28] sm:$0xf]
  %v61 = vld [vmem:[%s0 + $0x2c] sm:$0xf]
  %v62 = vld [vmem:[%s0 + $0x30] sm:$0xf]
  %v63 = vld [vmem:[%s0 + $0x34] sm:$0xf]
  %v64 = vld [vmem:[%s0 + $0x38] sm:$0xf]
  %v65 = vld [vmem:[%s0 + $0x3c] sm:$0xf]
  %v66 = vld [vmem:[%s1] sm:$0xf]
  %v67 = vld [vmem:[%s1 + $0x4] sm:$0xf]
  %v68 = vld [vmem:[%s1 + $0x8] sm:$0xf]
  %v69 = vld [vmem:[%s1 + $0xc] sm:$0xf]
  %v70 = vld [vmem:[%s1 + $0x10] sm:$0xf]
  %v71 = vld [vmem:[%s1 + $0x14] sm:$0xf]
  %v72 = vld [vmem:[%s1 + $0x18] sm:$0xf]
  %v73 = vld [vmem:[%s1 + $0x1c] sm:$0xf]
  %v74 = vld [vmem:[%s1 + $0x20] sm:$0xf]
  %v75 = vld [vmem:[%s1 + $0x24] sm:$0xf]
  %v76 = vld [vmem:[%s1 + $0x28] sm:$0xf]
  %v77 = vld [vmem:[%s1 + $0x2c] sm:$0xf]
  %v78 = vld [vmem:[%s1 + $0x30] sm:$0xf]
  %v79 = vld [vmem:[%s1 + $0x34] sm:$0xf]
  %v80 = vld [vmem:[%s1 + $0x38] sm:$0xf]
  %v81 = vld [vmem:[%s1 + $0x3c] sm:$0xf]
  %v98 = vunpack.c.l.b16 %v50
  %v99 = vunpack.c.l.b16 %v51
  %v100 = vunpack.c.l.b16 %v52
  %v101 = vunpack.c.l.b16 %v53
  %v102 = vunpack.c.l.b16 %v54
  %v103 = vunpack.c.l.b16 %v55
  %v104 = vunpack.c.l.b16 %v56
  %v105 = vunpack.c.l.b16 %v57
  %v106 = vunpack.c.l.b16 %v58
  %v107 = vunpack.c.l.b16 %v59
  %v108 = vunpack.c.l.b16 %v60
  %v109 = vunpack.c.l.b16 %v61
  %v110 = vunpack.c.l.b16 %v62
  %v111 = vunpack.c.l.b16 %v63
  %v112 = vunpack.c.l.b16 %v64
  %v113 = vunpack.c.l.b16 %v65
  %v114 = vpack.c.b16 %v99, %v98
  %v115 = vpack.c.b16 %v101, %v100
  %v116 = vpack.c.b16 %v103, %v102
  %v117 = vpack.c.b16 %v105, %v104
  %v118 = vpack.c.b16 %v107, %v106
  %v119 = vpack.c.b16 %v109, %v108
  %v120 = vpack.c.b16 %v111, %v110
  %v121 = vpack.c.b16 %v113, %v112
  %v146 = vunpack.c.l.b16 %v66
  %v147 = vunpack.c.l.b16 %v67
  %v148 = vunpack.c.l.b16 %v68
  %v149 = vunpack.c.l.b16 %v69
  %v150 = vunpack.c.l.b16 %v70
  %v151 = vunpack.c.l.b16 %v71
  %v152 = vunpack.c.l.b16 %v72
  %v153 = vunpack.c.l.b16 %v73
  %v154 = vunpack.c.l.b16 %v74
  %v155 = vunpack.c.l.b16 %v75
  %v156 = vunpack.c.l.b16 %v76
  %v157 = vunpack.c.l.b16 %v77
  %v158 = vunpack.c.l.b16 %v78
  %v159 = vunpack.c.l.b16 %v79
  %v160 = vunpack.c.l.b16 %v80
  %v161 = vunpack.c.l.b16 %v81
  %v162 = vpack.c.b16 %v147, %v146
  %v163 = vpack.c.b16 %v149, %v148
  %v164 = vpack.c.b16 %v151, %v150
  %v165 = vpack.c.b16 %v153, %v152
  %v166 = vpack.c.b16 %v155, %v154
  %v167 = vpack.c.b16 %v157, %v156
  %v168 = vpack.c.b16 %v159, %v158
  %v169 = vpack.c.b16 %v161, %v160
  %178 = vmatpush.bf16.msra.mxu0 %v169
  %179 = vmatpush.bf16.msra.mxu0 %v168
  %180 = vmatpush.bf16.msra.mxu0 %v167
  %181 = vmatpush.bf16.msra.mxu0 %v166
  %182 = vmatpush.bf16.msra.mxu0 %v165
  %183 = vmatpush.bf16.msra.mxu0 %v164
  %184 = vmatpush.bf16.msra.mxu0 %v163
  %185 = vmatpush.bf16.msra.mxu0 %v162
  %186 = vmatmul.bf16.gmra.mxu0 %v114
  %v187 = vpop.f32.mrf.mxu0
  %v188 = vadd.f32 0.0, %v187
  %v189 = vpop.f32.mrf.mxu0
  %v190 = vadd.f32 0.0, %v189
  %191 = vmatmul.bf16.gmra.mxu0 %v115
  %v192 = vpop.f32.mrf.mxu0
  %v193 = vadd.f32 0.0, %v192
  %v194 = vpop.f32.mrf.mxu0
  %v195 = vadd.f32 0.0, %v194
  %196 = vmatmul.bf16.gmra.mxu0 %v116
  %v197 = vpop.f32.mrf.mxu0
  %v198 = vadd.f32 0.0, %v197
  %v199 = vpop.f32.mrf.mxu0
  %v200 = vadd.f32 0.0, %v199
  %201 = vmatmul.bf16.gmra.mxu0 %v117
  %v202 = vpop.f32.mrf.mxu0
  %v203 = vadd.f32 0.0, %v202
  %v204 = vpop.f32.mrf.mxu0
  %v205 = vadd.f32 0.0, %v204
  %206 = vmatmul.bf16.gmra.mxu0 %v118
  %v207 = vpop.f32.mrf.mxu0
  %v208 = vadd.f32 0.0, %v207
  %v209 = vpop.f32.mrf.mxu0
  %v210 = vadd.f32 0.0, %v209
  %211 = vmatmul.bf16.gmra.mxu0 %v119
  %v212 = vpop.f32.mrf.mxu0
  %v213 = vadd.f32 0.0, %v212
  %v214 = vpop.f32.mrf.mxu0
  %v215 = vadd.f32 0.0, %v214
  %216 = vmatmul.bf16.gmra.mxu0 %v120
  %v217 = vpop.f32.mrf.mxu0
  %v218 = vadd.f32 0.0, %v217
  %v219 = vpop.f32.mrf.mxu0
  %v220 = vadd.f32 0.0, %v219
  %221 = vmatmul.bf16.gmra.mxu0 %v121
  %v222 = vpop.f32.mrf.mxu0
  %v223 = vadd.f32 0.0, %v222
  %v224 = vpop.f32.mrf.mxu0
  %v225 = vadd.f32 0.0, %v224
  %226 = vdwg.mxu0
  %v227 = vadd.f32 %v34, %v188
  %v228 = vadd.f32 %v35, %v190
  %v229 = vadd.f32 %v36, %v193
  %v230 = vadd.f32 %v37, %v195
  %v231 = vadd.f32 %v38, %v198
  %v232 = vadd.f32 %v39, %v200
  %v233 = vadd.f32 %v40, %v203
  %v234 = vadd.f32 %v41, %v205
  %v235 = vadd.f32 %v42, %v208
  %v236 = vadd.f32 %v43, %v210
  %v237 = vadd.f32 %v44, %v213
  %v238 = vadd.f32 %v45, %v215
  %v239 = vadd.f32 %v46, %v218
  %v240 = vadd.f32 %v47, %v220
  %v241 = vadd.f32 %v48, %v223
  %v242 = vadd.f32 %v49, %v225
  %243 = vst [vmem:[#allocation2] sm:$0xff] %v227
  %244 = vst [vmem:[#allocation2 + $0x8] sm:$0xff] %v228
  %245 = vst [vmem:[#allocation2 + $0x10] sm:$0xff] %v229
  %246 = vst [vmem:[#allocation2 + $0x18] sm:$0xff] %v230
  %247 = vst [vmem:[#allocation2 + $0x20] sm:$0xff] %v231
  %248 = vst [vmem:[#allocation2 + $0x28] sm:$0xff] %v232
  %249 = vst [vmem:[#allocation2 + $0x30] sm:$0xff] %v233
  %250 = vst [vmem:[#allocation2 + $0x38] sm:$0xff] %v234
  %251 = vst [vmem:[#allocation2 + $0x40] sm:$0xff] %v235
  %252 = vst [vmem:[#allocation2 + $0x48] sm:$0xff] %v236
  %253 = vst [vmem:[#allocation2 + $0x50] sm:$0xff] %v237
  %254 = vst [vmem:[#allocation2 + $0x58] sm:$0xff] %v238
  %255 = vst [vmem:[#allocation2 + $0x60] sm:$0xff] %v239
  %256 = vst [vmem:[#allocation2 + $0x68] sm:$0xff] %v240
  %257 = vst [vmem:[#allocation2 + $0x70] sm:$0xff] %v241
  %258 = vst [vmem:[#allocation2 + $0x78] sm:$0xff] %v242
  // Predicated region
  $region18: #{model_forward.17} parent=0 // pred_check
    %p259 = pneg %p14
  $region19: #{model_forward.17} parent=0 // pred_check_branch
    %261 = sbr.rel (%p259) target = $region21
  $region20: #{model_forward.17} parent=0 // pred_region
    %v262 = vld [vmem:[#allocation2] sm:$0xff]
    %v263 = vld [vmem:[#allocation2 + $0x8] sm:$0xff]
    %v264 = vld [vmem:[#allocation2 + $0x10] sm:$0xff]
    %v265 = vld [vmem:[#allocation2 + $0x18] sm:$0xff]
    %v266 = vld [vmem:[#allocation2 + $0x20] sm:$0xff]
    %v267 = vld [vmem:[#allocation2 + $0x28] sm:$0xff]
    %v268 = vld [vmem:[#allocation2 + $0x30] sm:$0xff]
    %v269 = vld [vmem:[#allocation2 + $0x38] sm:$0xff]
    %v270 = vld [vmem:[#allocation2 + $0x40] sm:$0xff]
    %v271 = vld [vmem:[#allocation2 + $0x48] sm:$0xff]
    %v272 = vld [vmem:[#allocation2 + $0x50] sm:$0xff]
    %v273 = vld [vmem:[#allocation2 + $0x58] sm:$0xff]
    %v274 = vld [vmem:[#allocation2 + $0x60] sm:$0xff]
    %v275 = vld [vmem:[#allocation2 + $0x68] sm:$0xff]
    %v276 = vld [vmem:[#allocation2 + $0x70] sm:$0xff]
    %v277 = vld [vmem:[#allocation2 + $0x78] sm:$0xff]
    %v278 = vld [vmem:[%s2] sm:$0x1]
    %v280 = vperm.slane %v278, 0
    %v282 = vadd.f32 %v262, %v280
    %v283 = vadd.f32 %v263, %v280
    %v284 = vadd.f32 %v264, %v280
    %v285 = vadd.f32 %v265, %v280
    %v286 = vadd.f32 %v266, %v280
    %v287 = vadd.f32 %v267, %v280
    %v288 = vadd.f32 %v268, %v280
    %v289 = vadd.f32 %v269, %v280
    %v290 = vadd.f32 %v270, %v280
    %v291 = vadd.f32 %v271, %v280
    %v292 = vadd.f32 %v272, %v280
    %v293 = vadd.f32 %v273, %v280
    %v294 = vadd.f32 %v274, %v280
    %v295 = vadd.f32 %v275, %v280
    %v296 = vadd.f32 %v276, %v280
    %v297 = vadd.f32 %v277, %v280
    %298 = vst [vmem:[%s3] sm:$0xff] %v282
    %299 = vst [vmem:[%s3 + $0x8] sm:$0xff] %v283
    %300 = vst [vmem:[%s3 + $0x10] sm:$0xff] %v284
    %301 = vst [vmem:[%s3 + $0x18] sm:$0xff] %v285
    %302 = vst [vmem:[%s3 + $0x20] sm:$0xff] %v286
    %303 = vst [vmem:[%s3 + $0x28] sm:$0xff] %v287
    %304 = vst [vmem:[%s3 + $0x30] sm:$0xff] %v288
    %305 = vst [vmem:[%s3 + $0x38] sm:$0xff] %v289
    %306 = vst [vmem:[%s3 + $0x40] sm:$0xff] %v290
    %307 = vst [vmem:[%s3 + $0x48] sm:$0xff] %v291
    %308 = vst [vmem:[%s3 + $0x50] sm:$0xff] %v292
    %309 = vst [vmem:[%s3 + $0x58] sm:$0xff] %v293
    %310 = vst [vmem:[%s3 + $0x60] sm:$0xff] %v294
    %311 = vst [vmem:[%s3 + $0x68] sm:$0xff] %v295
    %312 = vst [vmem:[%s3 + $0x70] sm:$0xff] %v296
    %313 = vst [vmem:[%s3 + $0x78] sm:$0xff] %v297
  $region21: #{model_forward.17} parent=0 // pred_fallthru
    _
  // Predicated region
  $region22: #{model_forward.17} parent=0 // pred_check
    _
  $region23: #{model_forward.17} parent=0 // pred_check_branch
    %315 = sbr.rel (0) target = $region25
  $region24: #{model_forward.17} parent=0 // pred_region
    _
  $region25: #{model_forward.17} parent=0 // pred_fallthru
    _
  // Predicated region
  $region26: #{model_forward.17} parent=0 // pred_check
    _
  $region27: #{model_forward.17} parent=0 // pred_check_branch
    %317 = sbr.rel (0) target = $region29
  $region28: #{model_forward.17} parent=0 // pred_region
    _
  $region29: #{model_forward.17} parent=0 // pred_fallthru
    _

</llo_original>
